<compile_context>
chip_gen: v7x
topology: tpu7x:2x2x1
jax: 0.10.0
libtpu: 0.0.40
codegen_flags: <defaults>
</compile_context>

<pallas_src>
import math

import numpy as np
import jax
import jax.numpy as jnp
from jax.experimental import pallas as pl
from jax.experimental.pallas import tpu as pltpu


# ---------------------------------------------------------------------------
# Tiny constant helpers (built once in numpy)
# ---------------------------------------------------------------------------
def _col_masks(H, W):
    """(2, H*W, 1): [0] zeroes window entries at w==0 (dx=-1 taps),
    [1] zeroes window entries at w==W-1 (dx=+1 taps)."""
    col = np.arange(H * W, dtype=np.int64) % W
    m = np.stack([(col != 0), (col != W - 1)]).astype(np.float32)
    return m.reshape(2, H * W, 1)


# ---------------------------------------------------------------------------
# Pallas kernel
# ---------------------------------------------------------------------------
def _make_kernel(H, W, Cin, Cout, normalize, downsample, learned_sc,
                 fuse_taps, slope, eps):
    HW = H * W
    Hp, Wp = (H // 2, W // 2) if downsample else (H, W)
    HWp = Hp * Wp
    PAD = -(-(W + 1) // 16) * 16            # 16-row aligned halo (bf16 packing)
    tap_offsets = [(dy, dx) for dy in (-1, 0, 1) for dx in (-1, 0, 1)]
    inv_sqrt2 = 1.0 / math.sqrt(2.0)

    def leaky(v):
        return jnp.where(v >= 0, v, slope * v)

    def inorm(v, g, b, n_spatial):
        # one-pass statistics per (sample, channel) = per lane, with var guard
        s = jnp.sum(v, axis=0, keepdims=True)
        ss = jnp.sum(v * v, axis=0, keepdims=True)
        mu = s * (1.0 / n_spatial)
        var = jnp.maximum(ss * (1.0 / n_spatial) - mu * mu, 0.0)
        return (v - mu) * jax.lax.rsqrt(var + eps) * g + b

    def conv3x3(act_f32, pad_ref, col_ref, cmask_ref, w_ref, b_ref,
                h_cur, w_cur, zero_bottom_halo):
        """3x3 SAME conv: act (h_cur*w_cur, Cin) f32 -> (h_cur*w_cur, Cout) f32."""
        hw = h_cur * w_cur
        # cast once, store once (bf16 pad scratch)
        pad_ref[pl.ds(PAD, hw), :] = act_f32.astype(jnp.bfloat16)
        if zero_bottom_halo:                 # only when a shorter conv follows a longer one
            pad_ref[pl.ds(PAD + hw, PAD), :] = jnp.zeros((PAD, Cin), jnp.bfloat16)

        mask_l = cmask_ref[0]                # (hw, 1) bf16: valid input for dx == -1
        mask_r = cmask_ref[1]                # (hw, 1) bf16: valid input for dx == +1

        if fuse_taps:
            # build bf16 im2col: tap k occupies lanes [k*Cin, (k+1)*Cin)
            for k, (dy, dx) in enumerate(tap_offsets):         # static unroll, 9 taps
                off = dy * w_cur + dx
                win = pad_ref[pl.ds(PAD + off, hw), :]          # shifted window, bf16
                if dx == -1:
                    win = win * mask_l
                elif dx == 1:
                    win = win * mask_r
                col_ref[pl.ds(0, hw), pl.ds(k * Cin, Cin)] = win
            acc = jnp.dot(col_ref[pl.ds(0, hw), :], w_ref[...],   # K = 9*Cin
                          preferred_element_type=jnp.float32)
        else:
            acc = jnp.zeros((hw, w_ref.shape[-1]), jnp.float32)
            for k, (dy, dx) in enumerate(tap_offsets):
                off = dy * w_cur + dx
                win = pad_ref[pl.ds(PAD + off, hw), :]
                if dx == -1:
                    win = win * mask_l
                elif dx == 1:
                    win = win * mask_r
                acc = acc + jnp.dot(win, w_ref[k],
                                    preferred_element_type=jnp.float32)
        return acc + b_ref[...]

    def avgpool2x2(v, pin_ref, pmid_ref):
        """2x2 / stride-2 average pool of v (H*W, C) -> (Hp*Wp, C), VPU only."""
        pin_ref[...] = v
        a = pin_ref[pl.ds(0, H * Wp, stride=2), :]   # columns w = 0, 2, 4, ...
        b = pin_ref[pl.ds(1, H * Wp, stride=2), :]   # columns w = 1, 3, 5, ...
        # horizontal sum s has row index h*Wp + wp; pair image rows via a
        # (Hp, 2, Wp, C) staging scratch indexed statically on the pair axis.
        pmid_ref[...] = (a + b).reshape(Hp, 2, Wp, Cin)
        top = pmid_ref[:, 0, :, :]                   # even image rows
        bot = pmid_ref[:, 1, :, :]                   # odd image rows
        return ((top + bot) * 0.25).reshape(HWp, Cin)

    def kernel(*refs):
        it = iter(refs)
        x_ref = next(it)
        cm1_ref = next(it)
        cm2_ref = next(it) if downsample else cm1_ref   # reuse at equal resolution
        w1_ref = next(it)
        b1_ref = next(it)
        w2_ref = next(it)
        b2_ref = next(it)
        wsc_ref = next(it) if learned_sc else None
        if normalize:
            g1_ref = next(it)
            be1_ref = next(it)
            g2_ref = next(it)
            be2_ref = next(it)
        out_ref = next(it)
        pad_ref = next(it)
        col_ref = next(it) if fuse_taps else None
        pin_ref = next(it) if downsample else None
        pmid_ref = next(it) if downsample else None

        # per-step halo zeroing (top halo + conv1 bottom halo); megacore-safe
        zeros_halo = jnp.zeros((PAD, Cin), jnp.bfloat16)
        pad_ref[pl.ds(0, PAD), :] = zeros_halo
        pad_ref[pl.ds(PAD + HW, PAD), :] = zeros_halo

        x = x_ref[0]                                    # (HW, Cin) f32

        # ----- shortcut (pool first: commutes with the 1x1 conv, 4x fewer rows) -----
        sc = x
        if downsample:
            sc = avgpool2x2(sc, pin_ref, pmid_ref)      # (HWp, Cin)
        if learned_sc:
            sc = jnp.dot(sc.astype(jnp.bfloat16), wsc_ref[...],
                         preferred_element_type=jnp.float32)   # (HWp, Cout)

        # ----- residual -----
        h = x
        if normalize:
            h = inorm(h, g1_ref[...], be1_ref[...], HW)
        h = leaky(h)
        h = conv3x3(h, pad_ref, col_ref, cm1_ref, w1_ref, b1_ref, H, W,
                    zero_bottom_halo=False)             # (HW, Cin)
        if downsample:
            h = avgpool2x2(h, pin_ref, pmid_ref)        # (HWp, Cin)
        if normalize:
            h = inorm(h, g2_ref[...], be2_ref[...], HWp)
        h = leaky(h)
        h = conv3x3(h, pad_ref, col_ref, cm2_ref, w2_ref, b2_ref, Hp, Wp,
                    zero_bottom_halo=downsample)        # (HWp, Cout)

        out_ref[0] = ((sc + h) * inv_sqrt2).astype(out_ref.dtype)

    return kernel


# ---------------------------------------------------------------------------
# Wrapper
# ---------------------------------------------------------------------------
def resblk_pallas(x_nchw, params, *, normalize, downsample):
    N, Cin, H, W = x_nchw.shape
    Cout = params["w_conv2"].shape[0]
    learned_sc = Cin != Cout
    HW = H * W
    Hp, Wp = (H // 2, W // 2) if downsample else (H, W)
    HWp = Hp * Wp
    PAD = -(-(W + 1) // 16) * 16
    fuse_taps = Cin < 128          # fused (HW, 9*Cin) matmul when Cin is small

    # NCHW -> flattened NHWC
    x = jnp.transpose(x_nchw, (0, 2, 3, 1)).reshape(N, HW, Cin).astype(jnp.float32)

    def taps_fused(w):   # OIHW -> (9*Cin, Cout) bf16, row block k = tap kh*3+kw
        return (jnp.transpose(w, (2, 3, 1, 0))
                .reshape(9 * w.shape[1], w.shape[0]).astype(jnp.bfloat16))

    def taps_split(w):   # OIHW -> (9, Cin, Cout) bf16
        return (jnp.transpose(w, (2, 3, 1, 0))
                .reshape(9, w.shape[1], w.shape[0]).astype(jnp.bfloat16))

    taps = taps_fused if fuse_taps else taps_split

    inputs = [x, jnp.asarray(_col_masks(H, W)).astype(jnp.bfloat16)]
    in_specs = [
        pl.BlockSpec((1, HW, Cin), lambda n: (n, 0, 0)),
        pl.BlockSpec((2, HW, 1), lambda n: (0, 0, 0)),
    ]
    if downsample:
        inputs.append(jnp.asarray(_col_masks(Hp, Wp)).astype(jnp.bfloat16))
        in_specs.append(pl.BlockSpec((2, HWp, 1), lambda n: (0, 0, 0)))

    inputs += [
        taps(params["w_conv1"]),
        params["b_conv1"].reshape(1, Cin).astype(jnp.float32),
        taps(params["w_conv2"]),
        params["b_conv2"].reshape(1, Cout).astype(jnp.float32),
    ]
    if fuse_taps:
        in_specs += [
            pl.BlockSpec((9 * Cin, Cin), lambda n: (0, 0)),
            pl.BlockSpec((1, Cin), lambda n: (0, 0)),
            pl.BlockSpec((9 * Cin, Cout), lambda n: (0, 0)),
            pl.BlockSpec((1, Cout), lambda n: (0, 0)),
        ]
    else:
        in_specs += [
            pl.BlockSpec((9, Cin, Cin), lambda n: (0, 0, 0)),
            pl.BlockSpec((1, Cin), lambda n: (0, 0)),
            pl.BlockSpec((9, Cin, Cout), lambda n: (0, 0, 0)),
            pl.BlockSpec((1, Cout), lambda n: (0, 0)),
        ]
    if learned_sc:
        inputs.append(jnp.transpose(params["w_sc"][:, :, 0, 0], (1, 0)).astype(jnp.bfloat16))
        in_specs.append(pl.BlockSpec((Cin, Cout), lambda n: (0, 0)))
    if normalize:
        for name in ("g1", "be1", "g2", "be2"):
            inputs.append(params[name].reshape(1, Cin).astype(jnp.float32))
            in_specs.append(pl.BlockSpec((1, Cin), lambda n: (0, 0)))

    # VMEM scratch: bf16 padded conv input, bf16 im2col, f32 pooling buffers
    scratch_shapes = [pltpu.VMEM((HW + 2 * PAD, Cin), jnp.bfloat16)]
    if fuse_taps:
        scratch_shapes.append(pltpu.VMEM((HW, 9 * Cin), jnp.bfloat16))
    if downsample:
        scratch_shapes.append(pltpu.VMEM((HW, Cin), jnp.float32))
        scratch_shapes.append(pltpu.VMEM((Hp, 2, Wp, Cin), jnp.float32))

    kernel = _make_kernel(H, W, Cin, Cout, normalize, downsample, learned_sc,
                          fuse_taps, slope=0.2, eps=1e-5)

    # explicit VMEM budget: above the 16/32 MiB scoped defaults, below v7x's 64 MiB
    w_elems = 9 * Cin * Cin + 9 * Cin * Cout + (Cin * Cout if learned_sc else 0)
    footprint = (
        2 * HW * Cin * 4                                 # x block, double-buffered
        + 2 * HWp * Cout * 4                             # out block, double-buffered
        + (HW + 2 * PAD) * Cin * 2                       # bf16 pad scratch
        + (HW * 9 * Cin * 2 if fuse_taps else 0)         # bf16 im2col scratch
        + ((HW * Cin + HW * Cin // 2) * 4 if downsample else 0)   # pool scratches
        + 2 * 2 * w_elems                                # bf16 weights, double-buffered
        + (1 << 20)                                      # masks / biases / affine / slack
    )
    vmem_limit = int(min(max(2 * footprint, 32 * 2**20), 48 * 2**20))

    out = pl.pallas_call(
        kernel,
        out_shape=jax.ShapeDtypeStruct((N, HWp, Cout), jnp.float32),
        grid=(N,),
        in_specs=in_specs,
        out_specs=pl.BlockSpec((1, HWp, Cout), lambda n: (n, 0, 0)),
        scratch_shapes=scratch_shapes,
        compiler_params=pltpu.CompilerParams(
            dimension_semantics=("parallel",),
            vmem_limit_bytes=vmem_limit),
    )(*inputs)

    # back to NCHW like the PyTorch module
    return jnp.transpose(out.reshape(N, Hp, Wp, Cout), (0, 3, 1, 2))


# ---------------------------------------------------------------------------
# Pure-JAX reference (mirrors the PyTorch module exactly, f32 throughout)
# ---------------------------------------------------------------------------
def resblk_ref(x_nchw, params, *, normalize, downsample):
    x = jnp.transpose(x_nchw, (0, 2, 3, 1))  # NHWC

    def conv(v, w, b=None, pad="SAME"):
        w_hwio = jnp.transpose(w, (2, 3, 1, 0))
        o = jax.lax.conv_general_dilated(
            v, w_hwio, (1, 1), pad, dimension_numbers=("NHWC", "HWIO", "NHWC"))
        if b is not None:
            o = o + b
        return o

    def pool(v):
        n, h, w, c = v.shape
        return v.reshape(n, h // 2, 2, w // 2, 2, c).mean(axis=(2, 4))

    def inorm(v, g, b):
        mu = v.mean(axis=(1, 2), keepdims=True)
        var = ((v - mu) ** 2).mean(axis=(1, 2), keepdims=True)
        return (v - mu) / jnp.sqrt(var + 1e-5) * g + b

    leaky = lambda v: jnp.where(v >= 0, v, 0.2 * v)

    Cin = x.shape[-1]
    Cout = params["w_conv2"].shape[0]
    learned_sc = Cin != Cout

    sc = x
    if learned_sc:
        sc = conv(sc, params["w_sc"], None, "VALID")
    if downsample:
        sc = pool(sc)

    h = x
    if normalize:
        h = inorm(h, params["g1"], params["be1"])
    h = leaky(h)
    h = conv(h, params["w_conv1"], params["b_conv1"])
    if downsample:
        h = pool(h)
    if normalize:
        h = inorm(h, params["g2"], params["be2"])
    h = leaky(h)
    h = conv(h, params["w_conv2"], params["b_conv2"])

    out = (sc + h) / math.sqrt(2.0)
    return jnp.transpose(out, (0, 3, 1, 2))


# ---------------------------------------------------------------------------
if __name__ == "__main__":
    key = jax.random.PRNGKey(0)
    N, Cin, Cout, H, W = 2, 4, 8, 16, 16
    normalize, downsample = True, True  # exercises all branches (learned_sc since Cin != Cout)

    ks = jax.random.split(key, 10)
    params = {
        "w_conv1": 0.3 * jax.random.normal(ks[0], (Cin, Cin, 3, 3), jnp.float32),
        "b_conv1": 0.1 * jax.random.normal(ks[1], (Cin,), jnp.float32),
        "w_conv2": 0.3 * jax.random.normal(ks[2], (Cout, Cin, 3, 3), jnp.float32),
        "b_conv2": 0.1 * jax.random.normal(ks[3], (Cout,), jnp.float32),
        "w_sc":    0.3 * jax.random.normal(ks[4], (Cout, Cin, 1, 1), jnp.float32),
        "g1":  1.0 + 0.1 * jax.random.normal(ks[5], (Cin,), jnp.float32),
        "be1": 0.1 * jax.random.normal(ks[6], (Cin,), jnp.float32),
        "g2":  1.0 + 0.1 * jax.random.normal(ks[7], (Cin,), jnp.float32),
        "be2": 0.1 * jax.random.normal(ks[8], (Cin,), jnp.float32),
    }
    x = jax.random.normal(ks[9], (N, Cin, H, W), jnp.float32)

    out = jax.block_until_ready(
        resblk_pallas(x, params, normalize=normalize, downsample=downsample))
    ref = jax.block_until_ready(
        resblk_ref(x, params, normalize=normalize, downsample=downsample))

    assert out.shape == (N, Cout, H // 2, W // 2), out.shape
    # Matmul operands are bf16 (MXU-native) with f32 accumulation, so allow a
    # bf16-appropriate tolerance; structural bugs would give O(1) errors.
    err = float(jnp.max(jnp.abs(out - ref)))
    assert err < 1e-1, f"max abs err {err}"
    print("KERNEL_OK")
</pallas_src>

<mosaic_0001>
module attributes {stable_mosaic.version = 11 : i64} {
  func.func @kernel(%arg0: i32, %arg1: memref<1x256x4xf32, #tpu.memory_space<vmem>>, %arg2: memref<2x256x1xbf16, #tpu.memory_space<vmem>>, %arg3: memref<2x64x1xbf16, #tpu.memory_space<vmem>>, %arg4: memref<36x4xbf16, #tpu.memory_space<vmem>>, %arg5: memref<1x4xf32, #tpu.memory_space<vmem>>, %arg6: memref<36x8xbf16, #tpu.memory_space<vmem>>, %arg7: memref<1x8xf32, #tpu.memory_space<vmem>>, %arg8: memref<4x8xbf16, #tpu.memory_space<vmem>>, %arg9: memref<1x4xf32, #tpu.memory_space<vmem>>, %arg10: memref<1x4xf32, #tpu.memory_space<vmem>>, %arg11: memref<1x4xf32, #tpu.memory_space<vmem>>, %arg12: memref<1x4xf32, #tpu.memory_space<vmem>>, %arg13: memref<1x64x8xf32, #tpu.memory_space<vmem>>, %arg14: memref<320x4xbf16, #tpu.memory_space<vmem>>, %arg15: memref<256x36xbf16, #tpu.memory_space<vmem>>, %arg16: memref<256x4xf32, #tpu.memory_space<vmem>>, %arg17: memref<8x2x8x4xf32, #tpu.memory_space<vmem>>) attributes {dimension_semantics = [#tpu.dimension_semantics<parallel>], iteration_bounds = array<i64: 2>, scalar_prefetch = 0 : i64, scratch_operands = 4 : i64, tpu.core_type = #tpu.core_type<tc>, window_params = [{transform_indices = @transform_0, window_bounds = array<i64: 1, 256, 4>}, {pipeline_mode = #tpu.pipeline_mode<synchronous>, transform_indices = @transform_1, window_bounds = array<i64: 2, 256, 1>}, {pipeline_mode = #tpu.pipeline_mode<synchronous>, transform_indices = @transform_2, window_bounds = array<i64: 2, 64, 1>}, {pipeline_mode = #tpu.pipeline_mode<synchronous>, transform_indices = @transform_3, window_bounds = array<i64: 36, 4>}, {pipeline_mode = #tpu.pipeline_mode<synchronous>, transform_indices = @transform_4, window_bounds = array<i64: 1, 4>}, {pipeline_mode = #tpu.pipeline_mode<synchronous>, transform_indices = @transform_5, window_bounds = array<i64: 36, 8>}, {pipeline_mode = #tpu.pipeline_mode<synchronous>, transform_indices = @transform_6, window_bounds = array<i64: 1, 8>}, {pipeline_mode = #tpu.pipeline_mode<synchronous>, transform_indices = @transform_7, window_bounds = array<i64: 4, 8>}, {pipeline_mode = #tpu.pipeline_mode<synchronous>, transform_indices = @transform_8, window_bounds = array<i64: 1, 4>}, {pipeline_mode = #tpu.pipeline_mode<synchronous>, transform_indices = @transform_9, window_bounds = array<i64: 1, 4>}, {pipeline_mode = #tpu.pipeline_mode<synchronous>, transform_indices = @transform_10, window_bounds = array<i64: 1, 4>}, {pipeline_mode = #tpu.pipeline_mode<synchronous>, transform_indices = @transform_11, window_bounds = array<i64: 1, 4>}, {transform_indices = @transform_12, window_bounds = array<i64: 1, 64, 8>}]} {
    %cst = arith.constant 0.000000e+00 : bf16
    %0 = vector.broadcast %cst : bf16 to vector<32x4xbf16>
    %c0 = arith.constant 0 : index
    %c0_0 = arith.constant 0 : index
    %1 = vector.load %arg14[%c0, %c0_0] : memref<320x4xbf16, #tpu.memory_space<vmem>>, vector<32x4xbf16>
    tpu.vector_store %arg14[%c0, %c0_0], %0 {strides = array<i32>} : memref<320x4xbf16, #tpu.memory_space<vmem>>, vector<32x4xbf16>,
    %c288 = arith.constant 288 : index
    %c0_1 = arith.constant 0 : index
    %2 = vector.load %arg14[%c288, %c0_1] : memref<320x4xbf16, #tpu.memory_space<vmem>>, vector<32x4xbf16>
    tpu.vector_store %arg14[%c288, %c0_1], %0 {strides = array<i32>} : memref<320x4xbf16, #tpu.memory_space<vmem>>, vector<32x4xbf16>,
    %c0_2 = arith.constant 0 : index
    %c0_3 = arith.constant 0 : index
    %c0_4 = arith.constant 0 : index
    %3 = vector.load %arg1[%c0_2, %c0_3, %c0_4] : memref<1x256x4xf32, #tpu.memory_space<vmem>>, vector<1x256x4xf32>
    %4 = vector.shape_cast %3 : vector<1x256x4xf32> to vector<256x4xf32>
    %c0_5 = arith.constant 0 : index
    %c0_6 = arith.constant 0 : index
    %5 = vector.load %arg16[%c0_5, %c0_6] : memref<256x4xf32, #tpu.memory_space<vmem>>, vector<256x4xf32>
    tpu.vector_store %arg16[%c0_5, %c0_6], %4 {strides = array<i32>} : memref<256x4xf32, #tpu.memory_space<vmem>>, vector<256x4xf32>,
    %c0_7 = arith.constant 0 : index
    %c0_8 = arith.constant 0 : index
    %6 = tpu.strided_load %arg16[%c0_7, %c0_8] {strides = array<i32: 2, 1>} : memref<256x4xf32, #tpu.memory_space<vmem>>, vector<128x4xf32>
    %c1 = arith.constant 1 : index
    %c0_9 = arith.constant 0 : index
    %7 = tpu.strided_load %arg16[%c1, %c0_9] {strides = array<i32: 2, 1>} : memref<256x4xf32, #tpu.memory_space<vmem>>, vector<128x4xf32>
    %8 = arith.addf %6, %7 : vector<128x4xf32>
    %9 = vector.shape_cast %8 : vector<128x4xf32> to vector<8x2x8x4xf32>
    %c0_10 = arith.constant 0 : index
    %c0_11 = arith.constant 0 : index
    %c0_12 = arith.constant 0 : index
    %c0_13 = arith.constant 0 : index
    %10 = vector.load %arg17[%c0_10, %c0_11, %c0_12, %c0_13] : memref<8x2x8x4xf32, #tpu.memory_space<vmem>>, vector<8x2x8x4xf32>
    tpu.vector_store %arg17[%c0_10, %c0_11, %c0_12, %c0_13], %9 {strides = array<i32>} : memref<8x2x8x4xf32, #tpu.memory_space<vmem>>, vector<8x2x8x4xf32>,
    %c0_14 = arith.constant 0 : index
    %c0_15 = arith.constant 0 : index
    %c0_16 = arith.constant 0 : index
    %c0_17 = arith.constant 0 : index
    %11 = vector.load %arg17[%c0_14, %c0_15, %c0_16, %c0_17] : memref<8x2x8x4xf32, #tpu.memory_space<vmem>>, vector<8x1x8x4xf32>
    %12 = vector.shape_cast %11 : vector<8x1x8x4xf32> to vector<8x8x4xf32>
    %c0_18 = arith.constant 0 : index
    %c1_19 = arith.constant 1 : index
    %c0_20 = arith.constant 0 : index
    %c0_21 = arith.constant 0 : index
    %13 = vector.load %arg17[%c0_18, %c1_19, %c0_20, %c0_21] : memref<8x2x8x4xf32, #tpu.memory_space<vmem>>, vector<8x1x8x4xf32>
    %14 = vector.shape_cast %13 : vector<8x1x8x4xf32> to vector<8x8x4xf32>
    %15 = arith.addf %12, %14 : vector<8x8x4xf32>
    %cst_22 = arith.constant 2.500000e-01 : f32
    %16 = vector.broadcast %cst_22 : f32 to vector<8x8x4xf32>
    %17 = arith.mulf %15, %16 : vector<8x8x4xf32>
    %18 = vector.shape_cast %17 : vector<8x8x4xf32> to vector<64x4xf32>
    %19 = arith.truncf %18 : vector<64x4xf32> to vector<64x4xbf16>
    %c0_23 = arith.constant 0 : index
    %c0_24 = arith.constant 0 : index
    %20 = vector.load %arg8[%c0_23, %c0_24] : memref<4x8xbf16, #tpu.memory_space<vmem>>, vector<4x8xbf16>
    %cst_25 = arith.constant dense<0.000000e+00> : vector<64x8xf32>
    %21 = tpu.matmul %19, %20, %cst_25 {dimension_numbers = #tpu.dot_dimension_numbers<[1], [0], [0], [1], [0, 0, 1, 1], [], []>} : vector<64x4xbf16>, vector<4x8xbf16>, vector<64x8xf32> -> vector<64x8xf32>
    %c0_26 = arith.constant 0 : index
    %c0_27 = arith.constant 0 : index
    %22 = vector.load %arg9[%c0_26, %c0_27] : memref<1x4xf32, #tpu.memory_space<vmem>>, vector<1x4xf32>
    %c0_28 = arith.constant 0 : index
    %c0_29 = arith.constant 0 : index
    %23 = vector.load %arg10[%c0_28, %c0_29] : memref<1x4xf32, #tpu.memory_space<vmem>>, vector<1x4xf32>
    %cst_30 = arith.constant dense<0.000000e+00> : vector<4xf32>
    %24 = vector.multi_reduction <add>, %4, %cst_30 [0] : vector<256x4xf32> to vector<4xf32>
    %25 = vector.shape_cast %24 : vector<4xf32> to vector<1x4xf32>
    %26 = arith.mulf %4, %4 : vector<256x4xf32>
    %cst_31 = arith.constant dense<0.000000e+00> : vector<4xf32>
    %27 = vector.multi_reduction <add>, %26, %cst_31 [0] : vector<256x4xf32> to vector<4xf32>
    %28 = vector.shape_cast %27 : vector<4xf32> to vector<1x4xf32>
    %cst_32 = arith.constant 3.906250e-03 : f32
    %29 = vector.broadcast %cst_32 : f32 to vector<1x4xf32>
    %30 = arith.mulf %25, %29 : vector<1x4xf32>
    %cst_33 = arith.constant 3.906250e-03 : f32
    %31 = vector.broadcast %cst_33 : f32 to vector<1x4xf32>
    %32 = arith.mulf %28, %31 : vector<1x4xf32>
    %33 = arith.mulf %30, %30 : vector<1x4xf32>
    %34 = arith.subf %32, %33 : vector<1x4xf32>
    %cst_34 = arith.constant 0.000000e+00 : f32
    %35 = vector.broadcast %cst_34 : f32 to vector<1x4xf32>
    %36 = arith.maximumf %34, %35 : vector<1x4xf32>
    %37 = vector.broadcast %30 : vector<1x4xf32> to vector<256x4xf32>
    %38 = arith.subf %4, %37 : vector<256x4xf32>
    %cst_35 = arith.constant 9.99999974E-6 : f32
    %39 = vector.broadcast %cst_35 : f32 to vector<1x4xf32>
    %40 = arith.addf %36, %39 : vector<1x4xf32>
    %41 = math.rsqrt %40 : vector<1x4xf32>
    %42 = vector.broadcast %41 : vector<1x4xf32> to vector<256x4xf32>
    %43 = arith.mulf %38, %42 : vector<256x4xf32>
    %44 = vector.broadcast %22 : vector<1x4xf32> to vector<256x4xf32>
    %45 = arith.mulf %43, %44 : vector<256x4xf32>
    %46 = vector.broadcast %23 : vector<1x4xf32> to vector<256x4xf32>
    %47 = arith.addf %45, %46 : vector<256x4xf32>
    %cst_36 = arith.constant 0.000000e+00 : f32
    %48 = vector.broadcast %cst_36 : f32 to vector<256x4xf32>
    %49 = arith.cmpf oge, %47, %48 : vector<256x4xf32>
    %cst_37 = arith.constant 2.000000e-01 : f32
    %50 = vector.broadcast %cst_37 : f32 to vector<256x4xf32>
    %51 = arith.mulf %50, %47 : vector<256x4xf32>
    %52 = arith.select %49, %47, %51 : vector<256x4xi1>, vector<256x4xf32>
    %53 = arith.truncf %52 : vector<256x4xf32> to vector<256x4xbf16>
    %c32 = arith.constant 32 : index
    %c0_38 = arith.constant 0 : index
    %54 = vector.load %arg14[%c32, %c0_38] : memref<320x4xbf16, #tpu.memory_space<vmem>>, vector<256x4xbf16>
    tpu.vector_store %arg14[%c32, %c0_38], %53 {strides = array<i32>} : memref<320x4xbf16, #tpu.memory_space<vmem>>, vector<256x4xbf16>,
    %c0_39 = arith.constant 0 : index
    %c0_40 = arith.constant 0 : index
    %c0_41 = arith.constant 0 : index
    %55 = vector.load %arg2[%c0_39, %c0_40, %c0_41] : memref<2x256x1xbf16, #tpu.memory_space<vmem>>, vector<1x256x1xbf16>
    %56 = vector.shape_cast %55 : vector<1x256x1xbf16> to vector<256x1xbf16>
    %c1_42 = arith.constant 1 : index
    %c0_43 = arith.constant 0 : index
    %c0_44 = arith.constant 0 : index
    %57 = vector.load %arg2[%c1_42, %c0_43, %c0_44] : memref<2x256x1xbf16, #tpu.memory_space<vmem>>, vector<1x256x1xbf16>
    %58 = vector.shape_cast %57 : vector<1x256x1xbf16> to vector<256x1xbf16>
    %c15 = arith.constant 15 : index
    %c0_45 = arith.constant 0 : index
    %59 = vector.load %arg14[%c15, %c0_45] : memref<320x4xbf16, #tpu.memory_space<vmem>>, vector<256x4xbf16>
    %60 = vector.broadcast %56 : vector<256x1xbf16> to vector<256x4xbf16>
    %61 = arith.mulf %59, %60 : vector<256x4xbf16>
    %c0_46 = arith.constant 0 : index
    %c0_47 = arith.constant 0 : index
    %62 = vector.load %arg15[%c0_46, %c0_47] : memref<256x36xbf16, #tpu.memory_space<vmem>>, vector<256x4xbf16>
    tpu.vector_store %arg15[%c0_46, %c0_47], %61 {strides = array<i32>} : memref<256x36xbf16, #tpu.memory_space<vmem>>, vector<256x4xbf16>,
    %c16 = arith.constant 16 : index
    %c0_48 = arith.constant 0 : index
    %63 = vector.load %arg14[%c16, %c0_48] : memref<320x4xbf16, #tpu.memory_space<vmem>>, vector<256x4xbf16>
    %c0_49 = arith.constant 0 : index
    %c4 = arith.constant 4 : index
    %64 = vector.load %arg15[%c0_49, %c4] : memref<256x36xbf16, #tpu.memory_space<vmem>>, vector<256x4xbf16>
    tpu.vector_store %arg15[%c0_49, %c4], %63 {strides = array<i32>} : memref<256x36xbf16, #tpu.memory_space<vmem>>, vector<256x4xbf16>,
    %c17 = arith.constant 17 : index
    %c0_50 = arith.constant 0 : index
    %65 = vector.load %arg14[%c17, %c0_50] : memref<320x4xbf16, #tpu.memory_space<vmem>>, vector<256x4xbf16>
    %66 = vector.broadcast %58 : vector<256x1xbf16> to vector<256x4xbf16>
    %67 = arith.mulf %65, %66 : vector<256x4xbf16>
    %c0_51 = arith.constant 0 : index
    %c8 = arith.constant 8 : index
    %68 = vector.load %arg15[%c0_51, %c8] : memref<256x36xbf16, #tpu.memory_space<vmem>>, vector<256x4xbf16>
    tpu.vector_store %arg15[%c0_51, %c8], %67 {strides = array<i32>} : memref<256x36xbf16, #tpu.memory_space<vmem>>, vector<256x4xbf16>,
    %c31 = arith.constant 31 : index
    %c0_52 = arith.constant 0 : index
    %69 = vector.load %arg14[%c31, %c0_52] : memref<320x4xbf16, #tpu.memory_space<vmem>>, vector<256x4xbf16>
    %70 = vector.broadcast %56 : vector<256x1xbf16> to vector<256x4xbf16>
    %71 = arith.mulf %69, %70 : vector<256x4xbf16>
    %c0_53 = arith.constant 0 : index
    %c12 = arith.constant 12 : index
    %72 = vector.load %arg15[%c0_53, %c12] : memref<256x36xbf16, #tpu.memory_space<vmem>>, vector<256x4xbf16>
    tpu.vector_store %arg15[%c0_53, %c12], %71 {strides = array<i32>} : memref<256x36xbf16, #tpu.memory_space<vmem>>, vector<256x4xbf16>,
    %c32_54 = arith.constant 32 : index
    %c0_55 = arith.constant 0 : index
    %73 = vector.load %arg14[%c32_54, %c0_55] : memref<320x4xbf16, #tpu.memory_space<vmem>>, vector<256x4xbf16>
    %c0_56 = arith.constant 0 : index
    %c16_57 = arith.constant 16 : index
    %74 = vector.load %arg15[%c0_56, %c16_57] : memref<256x36xbf16, #tpu.memory_space<vmem>>, vector<256x4xbf16>
    tpu.vector_store %arg15[%c0_56, %c16_57], %73 {strides = array<i32>} : memref<256x36xbf16, #tpu.memory_space<vmem>>, vector<256x4xbf16>,
    %c33 = arith.constant 33 : index
    %c0_58 = arith.constant 0 : index
    %75 = vector.load %arg14[%c33, %c0_58] : memref<320x4xbf16, #tpu.memory_space<vmem>>, vector<256x4xbf16>
    %76 = vector.broadcast %58 : vector<256x1xbf16> to vector<256x4xbf16>
    %77 = arith.mulf %75, %76 : vector<256x4xbf16>
    %c0_59 = arith.constant 0 : index
    %c20 = arith.constant 20 : index
    %78 = vector.load %arg15[%c0_59, %c20] : memref<256x36xbf16, #tpu.memory_space<vmem>>, vector<256x4xbf16>
    tpu.vector_store %arg15[%c0_59, %c20], %77 {strides = array<i32>} : memref<256x36xbf16, #tpu.memory_space<vmem>>, vector<256x4xbf16>,
    %c47 = arith.constant 47 : index
    %c0_60 = arith.constant 0 : index
    %79 = vector.load %arg14[%c47, %c0_60] : memref<320x4xbf16, #tpu.memory_space<vmem>>, vector<256x4xbf16>
    %80 = vector.broadcast %56 : vector<256x1xbf16> to vector<256x4xbf16>
    %81 = arith.mulf %79, %80 : vector<256x4xbf16>
    %c0_61 = arith.constant 0 : index
    %c24 = arith.constant 24 : index
    %82 = vector.load %arg15[%c0_61, %c24] : memref<256x36xbf16, #tpu.memory_space<vmem>>, vector<256x4xbf16>
    tpu.vector_store %arg15[%c0_61, %c24], %81 {strides = array<i32>} : memref<256x36xbf16, #tpu.memory_space<vmem>>, vector<256x4xbf16>,
    %c48 = arith.constant 48 : index
    %c0_62 = arith.constant 0 : index
    %83 = vector.load %arg14[%c48, %c0_62] : memref<320x4xbf16, #tpu.memory_space<vmem>>, vector<256x4xbf16>
    %c0_63 = arith.constant 0 : index
    %c28 = arith.constant 28 : index
    %84 = vector.load %arg15[%c0_63, %c28] : memref<256x36xbf16, #tpu.memory_space<vmem>>, vector<256x4xbf16>
    tpu.vector_store %arg15[%c0_63, %c28], %83 {strides = array<i32>} : memref<256x36xbf16, #tpu.memory_space<vmem>>, vector<256x4xbf16>,
    %c49 = arith.constant 49 : index
    %c0_64 = arith.constant 0 : index
    %85 = vector.load %arg14[%c49, %c0_64] : memref<320x4xbf16, #tpu.memory_space<vmem>>, vector<256x4xbf16>
    %86 = vector.broadcast %58 : vector<256x1xbf16> to vector<256x4xbf16>
    %87 = arith.mulf %85, %86 : vector<256x4xbf16>
    %c0_65 = arith.constant 0 : index
    %c32_66 = arith.constant 32 : index
    %88 = vector.load %arg15[%c0_65, %c32_66] : memref<256x36xbf16, #tpu.memory_space<vmem>>, vector<256x4xbf16>
    tpu.vector_store %arg15[%c0_65, %c32_66], %87 {strides = array<i32>} : memref<256x36xbf16, #tpu.memory_space<vmem>>, vector<256x4xbf16>,
    %c0_67 = arith.constant 0 : index
    %c0_68 = arith.constant 0 : index
    %89 = vector.load %arg15[%c0_67, %c0_68] : memref<256x36xbf16, #tpu.memory_space<vmem>>, vector<256x36xbf16>
    %c0_69 = arith.constant 0 : index
    %c0_70 = arith.constant 0 : index
    %90 = vector.load %arg4[%c0_69, %c0_70] : memref<36x4xbf16, #tpu.memory_space<vmem>>, vector<36x4xbf16>
    %cst_71 = arith.constant dense<0.000000e+00> : vector<256x4xf32>
    %91 = tpu.matmul %89, %90, %cst_71 {dimension_numbers = #tpu.dot_dimension_numbers<[1], [0], [0], [1], [0, 0, 1, 1], [], []>} : vector<256x36xbf16>, vector<36x4xbf16>, vector<256x4xf32> -> vector<256x4xf32>
    %c0_72 = arith.constant 0 : index
    %c0_73 = arith.constant 0 : index
    %92 = vector.load %arg5[%c0_72, %c0_73] : memref<1x4xf32, #tpu.memory_space<vmem>>, vector<1x4xf32>
    %93 = vector.broadcast %92 : vector<1x4xf32> to vector<256x4xf32>
    %94 = arith.addf %91, %93 : vector<256x4xf32>
    %c0_74 = arith.constant 0 : index
    %c0_75 = arith.constant 0 : index
    %95 = vector.load %arg16[%c0_74, %c0_75] : memref<256x4xf32, #tpu.memory_space<vmem>>, vector<256x4xf32>
    tpu.vector_store %arg16[%c0_74, %c0_75], %94 {strides = array<i32>} : memref<256x4xf32, #tpu.memory_space<vmem>>, vector<256x4xf32>,
    %c0_76 = arith.constant 0 : index
    %c0_77 = arith.constant 0 : index
    %96 = tpu.strided_load %arg16[%c0_76, %c0_77] {strides = array<i32: 2, 1>} : memref<256x4xf32, #tpu.memory_space<vmem>>, vector<128x4xf32>
    %c1_78 = arith.constant 1 : index
    %c0_79 = arith.constant 0 : index
    %97 = tpu.strided_load %arg16[%c1_78, %c0_79] {strides = array<i32: 2, 1>} : memref<256x4xf32, #tpu.memory_space<vmem>>, vector<128x4xf32>
    %98 = arith.addf %96, %97 : vector<128x4xf32>
    %99 = vector.shape_cast %98 : vector<128x4xf32> to vector<8x2x8x4xf32>
    %c0_80 = arith.constant 0 : index
    %c0_81 = arith.constant 0 : index
    %c0_82 = arith.constant 0 : index
    %c0_83 = arith.constant 0 : index
    %100 = vector.load %arg17[%c0_80, %c0_81, %c0_82, %c0_83] : memref<8x2x8x4xf32, #tpu.memory_space<vmem>>, vector<8x2x8x4xf32>
    tpu.vector_store %arg17[%c0_80, %c0_81, %c0_82, %c0_83], %99 {strides = array<i32>} : memref<8x2x8x4xf32, #tpu.memory_space<vmem>>, vector<8x2x8x4xf32>,
    %c0_84 = arith.constant 0 : index
    %c0_85 = arith.constant 0 : index
    %c0_86 = arith.constant 0 : index
    %c0_87 = arith.constant 0 : index
    %101 = vector.load %arg17[%c0_84, %c0_85, %c0_86, %c0_87] : memref<8x2x8x4xf32, #tpu.memory_space<vmem>>, vector<8x1x8x4xf32>
    %102 = vector.shape_cast %101 : vector<8x1x8x4xf32> to vector<8x8x4xf32>
    %c0_88 = arith.constant 0 : index
    %c1_89 = arith.constant 1 : index
    %c0_90 = arith.constant 0 : index
    %c0_91 = arith.constant 0 : index
    %103 = vector.load %arg17[%c0_88, %c1_89, %c0_90, %c0_91] : memref<8x2x8x4xf32, #tpu.memory_space<vmem>>, vector<8x1x8x4xf32>
    %104 = vector.shape_cast %103 : vector<8x1x8x4xf32> to vector<8x8x4xf32>
    %105 = arith.addf %102, %104 : vector<8x8x4xf32>
    %cst_92 = arith.constant 2.500000e-01 : f32
    %106 = vector.broadcast %cst_92 : f32 to vector<8x8x4xf32>
    %107 = arith.mulf %105, %106 : vector<8x8x4xf32>
    %108 = vector.shape_cast %107 : vector<8x8x4xf32> to vector<64x4xf32>
    %c0_93 = arith.constant 0 : index
    %c0_94 = arith.constant 0 : index
    %109 = vector.load %arg11[%c0_93, %c0_94] : memref<1x4xf32, #tpu.memory_space<vmem>>, vector<1x4xf32>
    %c0_95 = arith.constant 0 : index
    %c0_96 = arith.constant 0 : index
    %110 = vector.load %arg12[%c0_95, %c0_96] : memref<1x4xf32, #tpu.memory_space<vmem>>, vector<1x4xf32>
    %cst_97 = arith.constant dense<0.000000e+00> : vector<4xf32>
    %111 = vector.multi_reduction <add>, %108, %cst_97 [0] : vector<64x4xf32> to vector<4xf32>
    %112 = vector.shape_cast %111 : vector<4xf32> to vector<1x4xf32>
    %113 = arith.mulf %108, %108 : vector<64x4xf32>
    %cst_98 = arith.constant dense<0.000000e+00> : vector<4xf32>
    %114 = vector.multi_reduction <add>, %113, %cst_98 [0] : vector<64x4xf32> to vector<4xf32>
    %115 = vector.shape_cast %114 : vector<4xf32> to vector<1x4xf32>
    %cst_99 = arith.constant 1.562500e-02 : f32
    %116 = vector.broadcast %cst_99 : f32 to vector<1x4xf32>
    %117 = arith.mulf %112, %116 : vector<1x4xf32>
    %cst_100 = arith.constant 1.562500e-02 : f32
    %118 = vector.broadcast %cst_100 : f32 to vector<1x4xf32>
    %119 = arith.mulf %115, %118 : vector<1x4xf32>
    %120 = arith.mulf %117, %117 : vector<1x4xf32>
    %121 = arith.subf %119, %120 : vector<1x4xf32>
    %cst_101 = arith.constant 0.000000e+00 : f32
    %122 = vector.broadcast %cst_101 : f32 to vector<1x4xf32>
    %123 = arith.maximumf %121, %122 : vector<1x4xf32>
    %124 = vector.broadcast %117 : vector<1x4xf32> to vector<64x4xf32>
    %125 = arith.subf %108, %124 : vector<64x4xf32>
    %cst_102 = arith.constant 9.99999974E-6 : f32
    %126 = vector.broadcast %cst_102 : f32 to vector<1x4xf32>
    %127 = arith.addf %123, %126 : vector<1x4xf32>
    %128 = math.rsqrt %127 : vector<1x4xf32>
    %129 = vector.broadcast %128 : vector<1x4xf32> to vector<64x4xf32>
    %130 = arith.mulf %125, %129 : vector<64x4xf32>
    %131 = vector.broadcast %109 : vector<1x4xf32> to vector<64x4xf32>
    %132 = arith.mulf %130, %131 : vector<64x4xf32>
    %133 = vector.broadcast %110 : vector<1x4xf32> to vector<64x4xf32>
    %134 = arith.addf %132, %133 : vector<64x4xf32>
    %cst_103 = arith.constant 0.000000e+00 : f32
    %135 = vector.broadcast %cst_103 : f32 to vector<64x4xf32>
    %136 = arith.cmpf oge, %134, %135 : vector<64x4xf32>
    %cst_104 = arith.constant 2.000000e-01 : f32
    %137 = vector.broadcast %cst_104 : f32 to vector<64x4xf32>
    %138 = arith.mulf %137, %134 : vector<64x4xf32>
    %139 = arith.select %136, %134, %138 : vector<64x4xi1>, vector<64x4xf32>
    %140 = arith.truncf %139 : vector<64x4xf32> to vector<64x4xbf16>
    %c32_105 = arith.constant 32 : index
    %c0_106 = arith.constant 0 : index
    %141 = vector.load %arg14[%c32_105, %c0_106] : memref<320x4xbf16, #tpu.memory_space<vmem>>, vector<64x4xbf16>
    tpu.vector_store %arg14[%c32_105, %c0_106], %140 {strides = array<i32>} : memref<320x4xbf16, #tpu.memory_space<vmem>>, vector<64x4xbf16>,
    %cst_107 = arith.constant 0.000000e+00 : bf16
    %142 = vector.broadcast %cst_107 : bf16 to vector<32x4xbf16>
    %c96 = arith.constant 96 : index
    %c0_108 = arith.constant 0 : index
    %143 = vector.load %arg14[%c96, %c0_108] : memref<320x4xbf16, #tpu.memory_space<vmem>>, vector<32x4xbf16>
    tpu.vector_store %arg14[%c96, %c0_108], %142 {strides = array<i32>} : memref<320x4xbf16, #tpu.memory_space<vmem>>, vector<32x4xbf16>,
    %c0_109 = arith.constant 0 : index
    %c0_110 = arith.constant 0 : index
    %c0_111 = arith.constant 0 : index
    %144 = vector.load %arg3[%c0_109, %c0_110, %c0_111] : memref<2x64x1xbf16, #tpu.memory_space<vmem>>, vector<1x64x1xbf16>
    %145 = vector.shape_cast %144 : vector<1x64x1xbf16> to vector<64x1xbf16>
    %c1_112 = arith.constant 1 : index
    %c0_113 = arith.constant 0 : index
    %c0_114 = arith.constant 0 : index
    %146 = vector.load %arg3[%c1_112, %c0_113, %c0_114] : memref<2x64x1xbf16, #tpu.memory_space<vmem>>, vector<1x64x1xbf16>
    %147 = vector.shape_cast %146 : vector<1x64x1xbf16> to vector<64x1xbf16>
    %c23 = arith.constant 23 : index
    %c0_115 = arith.constant 0 : index
    %148 = vector.load %arg14[%c23, %c0_115] : memref<320x4xbf16, #tpu.memory_space<vmem>>, vector<64x4xbf16>
    %149 = vector.broadcast %145 : vector<64x1xbf16> to vector<64x4xbf16>
    %150 = arith.mulf %148, %149 : vector<64x4xbf16>
    %c0_116 = arith.constant 0 : index
    %c0_117 = arith.constant 0 : index
    %151 = vector.load %arg15[%c0_116, %c0_117] : memref<256x36xbf16, #tpu.memory_space<vmem>>, vector<64x4xbf16>
    tpu.vector_store %arg15[%c0_116, %c0_117], %150 {strides = array<i32>} : memref<256x36xbf16, #tpu.memory_space<vmem>>, vector<64x4xbf16>,
    %c24_118 = arith.constant 24 : index
    %c0_119 = arith.constant 0 : index
    %152 = vector.load %arg14[%c24_118, %c0_119] : memref<320x4xbf16, #tpu.memory_space<vmem>>, vector<64x4xbf16>
    %c0_120 = arith.constant 0 : index
    %c4_121 = arith.constant 4 : index
    %153 = vector.load %arg15[%c0_120, %c4_121] : memref<256x36xbf16, #tpu.memory_space<vmem>>, vector<64x4xbf16>
    tpu.vector_store %arg15[%c0_120, %c4_121], %152 {strides = array<i32>} : memref<256x36xbf16, #tpu.memory_space<vmem>>, vector<64x4xbf16>,
    %c25 = arith.constant 25 : index
    %c0_122 = arith.constant 0 : index
    %154 = vector.load %arg14[%c25, %c0_122] : memref<320x4xbf16, #tpu.memory_space<vmem>>, vector<64x4xbf16>
    %155 = vector.broadcast %147 : vector<64x1xbf16> to vector<64x4xbf16>
    %156 = arith.mulf %154, %155 : vector<64x4xbf16>
    %c0_123 = arith.constant 0 : index
    %c8_124 = arith.constant 8 : index
    %157 = vector.load %arg15[%c0_123, %c8_124] : memref<256x36xbf16, #tpu.memory_space<vmem>>, vector<64x4xbf16>
    tpu.vector_store %arg15[%c0_123, %c8_124], %156 {strides = array<i32>} : memref<256x36xbf16, #tpu.memory_space<vmem>>, vector<64x4xbf16>,
    %c31_125 = arith.constant 31 : index
    %c0_126 = arith.constant 0 : index
    %158 = vector.load %arg14[%c31_125, %c0_126] : memref<320x4xbf16, #tpu.memory_space<vmem>>, vector<64x4xbf16>
    %159 = vector.broadcast %145 : vector<64x1xbf16> to vector<64x4xbf16>
    %160 = arith.mulf %158, %159 : vector<64x4xbf16>
    %c0_127 = arith.constant 0 : index
    %c12_128 = arith.constant 12 : index
    %161 = vector.load %arg15[%c0_127, %c12_128] : memref<256x36xbf16, #tpu.memory_space<vmem>>, vector<64x4xbf16>
    tpu.vector_store %arg15[%c0_127, %c12_128], %160 {strides = array<i32>} : memref<256x36xbf16, #tpu.memory_space<vmem>>, vector<64x4xbf16>,
    %c32_129 = arith.constant 32 : index
    %c0_130 = arith.constant 0 : index
    %162 = vector.load %arg14[%c32_129, %c0_130] : memref<320x4xbf16, #tpu.memory_space<vmem>>, vector<64x4xbf16>
    %c0_131 = arith.constant 0 : index
    %c16_132 = arith.constant 16 : index
    %163 = vector.load %arg15[%c0_131, %c16_132] : memref<256x36xbf16, #tpu.memory_space<vmem>>, vector<64x4xbf16>
    tpu.vector_store %arg15[%c0_131, %c16_132], %162 {strides = array<i32>} : memref<256x36xbf16, #tpu.memory_space<vmem>>, vector<64x4xbf16>,
    %c33_133 = arith.constant 33 : index
    %c0_134 = arith.constant 0 : index
    %164 = vector.load %arg14[%c33_133, %c0_134] : memref<320x4xbf16, #tpu.memory_space<vmem>>, vector<64x4xbf16>
    %165 = vector.broadcast %147 : vector<64x1xbf16> to vector<64x4xbf16>
    %166 = arith.mulf %164, %165 : vector<64x4xbf16>
    %c0_135 = arith.constant 0 : index
    %c20_136 = arith.constant 20 : index
    %167 = vector.load %arg15[%c0_135, %c20_136] : memref<256x36xbf16, #tpu.memory_space<vmem>>, vector<64x4xbf16>
    tpu.vector_store %arg15[%c0_135, %c20_136], %166 {strides = array<i32>} : memref<256x36xbf16, #tpu.memory_space<vmem>>, vector<64x4xbf16>,
    %c39 = arith.constant 39 : index
    %c0_137 = arith.constant 0 : index
    %168 = vector.load %arg14[%c39, %c0_137] : memref<320x4xbf16, #tpu.memory_space<vmem>>, vector<64x4xbf16>
    %169 = vector.broadcast %145 : vector<64x1xbf16> to vector<64x4xbf16>
    %170 = arith.mulf %168, %169 : vector<64x4xbf16>
    %c0_138 = arith.constant 0 : index
    %c24_139 = arith.constant 24 : index
    %171 = vector.load %arg15[%c0_138, %c24_139] : memref<256x36xbf16, #tpu.memory_space<vmem>>, vector<64x4xbf16>
    tpu.vector_store %arg15[%c0_138, %c24_139], %170 {strides = array<i32>} : memref<256x36xbf16, #tpu.memory_space<vmem>>, vector<64x4xbf16>,
    %c40 = arith.constant 40 : index
    %c0_140 = arith.constant 0 : index
    %172 = vector.load %arg14[%c40, %c0_140] : memref<320x4xbf16, #tpu.memory_space<vmem>>, vector<64x4xbf16>
    %c0_141 = arith.constant 0 : index
    %c28_142 = arith.constant 28 : index
    %173 = vector.load %arg15[%c0_141, %c28_142] : memref<256x36xbf16, #tpu.memory_space<vmem>>, vector<64x4xbf16>
    tpu.vector_store %arg15[%c0_141, %c28_142], %172 {strides = array<i32>} : memref<256x36xbf16, #tpu.memory_space<vmem>>, vector<64x4xbf16>,
    %c41 = arith.constant 41 : index
    %c0_143 = arith.constant 0 : index
    %174 = vector.load %arg14[%c41, %c0_143] : memref<320x4xbf16, #tpu.memory_space<vmem>>, vector<64x4xbf16>
    %175 = vector.broadcast %147 : vector<64x1xbf16> to vector<64x4xbf16>
    %176 = arith.mulf %174, %175 : vector<64x4xbf16>
    %c0_144 = arith.constant 0 : index
    %c32_145 = arith.constant 32 : index
    %177 = vector.load %arg15[%c0_144, %c32_145] : memref<256x36xbf16, #tpu.memory_space<vmem>>, vector<64x4xbf16>
    tpu.vector_store %arg15[%c0_144, %c32_145], %176 {strides = array<i32>} : memref<256x36xbf16, #tpu.memory_space<vmem>>, vector<64x4xbf16>,
    %c0_146 = arith.constant 0 : index
    %c0_147 = arith.constant 0 : index
    %178 = vector.load %arg15[%c0_146, %c0_147] : memref<256x36xbf16, #tpu.memory_space<vmem>>, vector<64x36xbf16>
    %c0_148 = arith.constant 0 : index
    %c0_149 = arith.constant 0 : index
    %179 = vector.load %arg6[%c0_148, %c0_149] : memref<36x8xbf16, #tpu.memory_space<vmem>>, vector<36x8xbf16>
    %cst_150 = arith.constant dense<0.000000e+00> : vector<64x8xf32>
    %180 = tpu.matmul %178, %179, %cst_150 {dimension_numbers = #tpu.dot_dimension_numbers<[1], [0], [0], [1], [0, 0, 1, 1], [], []>} : vector<64x36xbf16>, vector<36x8xbf16>, vector<64x8xf32> -> vector<64x8xf32>
    %c0_151 = arith.constant 0 : index
    %c0_152 = arith.constant 0 : index
    %181 = vector.load %arg7[%c0_151, %c0_152] : memref<1x8xf32, #tpu.memory_space<vmem>>, vector<1x8xf32>
    %182 = vector.broadcast %181 : vector<1x8xf32> to vector<64x8xf32>
    %183 = arith.addf %180, %182 : vector<64x8xf32>
    %184 = arith.addf %21, %183 : vector<64x8xf32>
    %cst_153 = arith.constant 0.707106769 : f32
    %185 = vector.broadcast %cst_153 : f32 to vector<64x8xf32>
    %186 = arith.mulf %184, %185 : vector<64x8xf32>
    %c0_154 = arith.constant 0 : index
    %c0_155 = arith.constant 0 : index
    %c0_156 = arith.constant 0 : index
    %187 = vector.load %arg13[%c0_154, %c0_155, %c0_156] : memref<1x64x8xf32, #tpu.memory_space<vmem>>, vector<1x64x8xf32>
    %188 = vector.shape_cast %187 : vector<1x64x8xf32> to vector<64x8xf32>
    %189 = vector.shape_cast %186 : vector<64x8xf32> to vector<1x64x8xf32>
    tpu.vector_store %arg13[%c0_154, %c0_155, %c0_156], %189 {strides = array<i32>} : memref<1x64x8xf32, #tpu.memory_space<vmem>>, vector<1x64x8xf32>,
    return
  }
  func.func @transform_0(%arg0: i32) -> (i32, i32, i32) {
    %c0_i32 = arith.constant 0 : i32
    %c0_i32_0 = arith.constant 0 : i32
    %c0_i32_1 = arith.constant 0 : i32
    return %arg0, %c0_i32, %c0_i32_0 : i32, i32, i32
  }
  func.func @transform_1(%arg0: i32) -> (i32, i32, i32) {
    %c0_i32 = arith.constant 0 : i32
    %c0_i32_0 = arith.constant 0 : i32
    %c0_i32_1 = arith.constant 0 : i32
    %c0_i32_2 = arith.constant 0 : i32
    return %c0_i32, %c0_i32_0, %c0_i32_1 : i32, i32, i32
  }
  func.func @transform_2(%arg0: i32) -> (i32, i32, i32) {
    %c0_i32 = arith.constant 0 : i32
    %c0_i32_0 = arith.constant 0 : i32
    %c0_i32_1 = arith.constant 0 : i32
    %c0_i32_2 = arith.constant 0 : i32
    return %c0_i32, %c0_i32_0, %c0_i32_1 : i32, i32, i32
  }
  func.func @transform_3(%arg0: i32) -> (i32, i32) {
    %c0_i32 = arith.constant 0 : i32
    %c0_i32_0 = arith.constant 0 : i32
    %c0_i32_1 = arith.constant 0 : i32
    return %c0_i32, %c0_i32_0 : i32, i32
  }
  func.func @transform_4(%arg0: i32) -> (i32, i32) {
    %c0_i32 = arith.constant 0 : i32
    %c0_i32_0 = arith.constant 0 : i32
    %c0_i32_1 = arith.constant 0 : i32
    return %c0_i32, %c0_i32_0 : i32, i32
  }
  func.func @transform_5(%arg0: i32) -> (i32, i32) {
    %c0_i32 = arith.constant 0 : i32
    %c0_i32_0 = arith.constant 0 : i32
    %c0_i32_1 = arith.constant 0 : i32
    return %c0_i32, %c0_i32_0 : i32, i32
  }
  func.func @transform_6(%arg0: i32) -> (i32, i32) {
    %c0_i32 = arith.constant 0 : i32
    %c0_i32_0 = arith.constant 0 : i32
    %c0_i32_1 = arith.constant 0 : i32
    return %c0_i32, %c0_i32_0 : i32, i32
  }
  func.func @transform_7(%arg0: i32) -> (i32, i32) {
    %c0_i32 = arith.constant 0 : i32
    %c0_i32_0 = arith.constant 0 : i32
    %c0_i32_1 = arith.constant 0 : i32
    return %c0_i32, %c0_i32_0 : i32, i32
  }
  func.func @transform_8(%arg0: i32) -> (i32, i32) {
    %c0_i32 = arith.constant 0 : i32
    %c0_i32_0 = arith.constant 0 : i32
    %c0_i32_1 = arith.constant 0 : i32
    return %c0_i32, %c0_i32_0 : i32, i32
  }
  func.func @transform_9(%arg0: i32) -> (i32, i32) {
    %c0_i32 = arith.constant 0 : i32
    %c0_i32_0 = arith.constant 0 : i32
    %c0_i32_1 = arith.constant 0 : i32
    return %c0_i32, %c0_i32_0 : i32, i32
  }
  func.func @transform_10(%arg0: i32) -> (i32, i32) {
    %c0_i32 = arith.constant 0 : i32
    %c0_i32_0 = arith.constant 0 : i32
    %c0_i32_1 = arith.constant 0 : i32
    return %c0_i32, %c0_i32_0 : i32, i32
  }
  func.func @transform_11(%arg0: i32) -> (i32, i32) {
    %c0_i32 = arith.constant 0 : i32
    %c0_i32_0 = arith.constant 0 : i32
    %c0_i32_1 = arith.constant 0 : i32
    return %c0_i32, %c0_i32_0 : i32, i32
  }
  func.func @transform_12(%arg0: i32) -> (i32, i32, i32) {
    %c0_i32 = arith.constant 0 : i32
    %c0_i32_0 = arith.constant 0 : i32
    %c0_i32_1 = arith.constant 0 : i32
    return %arg0, %c0_i32, %c0_i32_0 : i32, i32, i32
  }
}

</mosaic_0001>

<llo_original>
// kernel: tpu_custom_call.1
$region0: #{tpu_custom_call.1}
  #allocation0 [shape = 'u32[]', space=smem, size = 0x4, offset = 0x4, fixed_abs, tag = 'smem constant byte address 0x4 - core index']
  #allocation1 [shape = 'u32[144,128]{1,0:T(1,128)}', space=vmem, size = 0x12000, scoped, tag = 'internal scratch']
  #allocation2 [shape = 'bf16[320,4]{1,0:T(16,128)(2,1)}', space=vmem, size = 0x14000, scoped, tag = 'scratch operand']
  #allocation3 [shape = 'bf16[256,36]{1,0:T(16,128)(2,1)}', space=vmem, size = 0x10000, scoped, tag = 'scratch operand']
  #allocation4 [shape = 'f32[256,4]{1,0:T(8,128)}', space=vmem, size = 0x20000, scoped, tag = 'scratch operand']
  #allocation5 [shape = 'f32[8,2,8,4]{3,2,1,0:T(8,128)}', space=vmem, size = 0x10000, scoped, tag = 'scratch operand']
  %s0 = inlined_call_operand.vmem [shape: f32[2,256,4], index: 0, kind: input, shape index: {}]
  %s1 = inlined_call_operand.vmem [shape: bf16[2,256,1], index: 1, kind: input, shape index: {}]
  %s2 = inlined_call_operand.vmem [shape: bf16[2,64,1], index: 2, kind: input, shape index: {}]
  %s3 = inlined_call_operand.vmem [shape: bf16[36,4], index: 3, kind: input, shape index: {}]
  %s4 = inlined_call_operand.vmem [shape: f32[1,4], index: 4, kind: input, shape index: {}]
  %s5 = inlined_call_operand.vmem [shape: bf16[36,8], index: 5, kind: input, shape index: {}]
  %s6 = inlined_call_operand.vmem [shape: f32[1,8], index: 6, kind: input, shape index: {}]
  %s7 = inlined_call_operand.vmem [shape: bf16[4,8], index: 7, kind: input, shape index: {}]
  %s8 = inlined_call_operand.vmem [shape: f32[1,4], index: 8, kind: input, shape index: {}]
  %s9 = inlined_call_operand.vmem [shape: f32[1,4], index: 9, kind: input, shape index: {}]
  %s10 = inlined_call_operand.vmem [shape: f32[1,4], index: 10, kind: input, shape index: {}]
  %s11 = inlined_call_operand.vmem [shape: f32[1,4], index: 11, kind: input, shape index: {}]
  %s12 = inlined_call_operand.vmem [shape: f32[2,64,8], index: 12, kind: output, shape index: {}]
  %s13 = sld [smem:[#allocation0]]
  $region81: #{tpu_custom_call.1} parent=0
    _
  %s15 = ssub.s32 1, %s13
  %s16 = scalar_select 0, %s15, %s13
  loop: start=0, step=1, limit=4
  $region2: #{tpu_custom_call.1} parent=0 // loop_pre_header
    _
  $region3: #{tpu_custom_call.1} parent=0 // loop_header
    %s18 = sphi 0, %s22
    %p19 = scmp.ge.s32.totalorder %s18, 4
    %s28 = sphi 0, %s30
    %s31 = sphi 0, %s28
    %s32 = sphi 0, %s31
    %s48 = sphi 0, %s32
    %s52 = sphi 0, %s52
    %s54 = sphi 0, %s52
    %s55 = sphi 0, %s54
    %s69 = sphi 0, %s55
    %s73 = sphi 0, %s73
    %s75 = sphi 0, %s73
    %s76 = sphi 0, %s75
    %s90 = sphi 0, %s76
    %s94 = sphi 0, %s94
    %s96 = sphi 0, %s94
    %s97 = sphi 0, %s96
    %s111 = sphi 0, %s97
    %s115 = sphi 0, %s115
    %s117 = sphi 0, %s115
    %s118 = sphi 0, %s117
    %s132 = sphi 0, %s118
    %s136 = sphi 0, %s136
    %s138 = sphi 0, %s136
    %s139 = sphi 0, %s138
    %s153 = sphi 0, %s139
    %s157 = sphi 0, %s157
    %s159 = sphi 0, %s157
    %s160 = sphi 0, %s159
    %s174 = sphi 0, %s160
    %s178 = sphi 0, %s178
    %s180 = sphi 0, %s178
    %s181 = sphi 0, %s180
    %s195 = sphi 0, %s181
    %s199 = sphi 0, %s199
    %s201 = sphi 0, %s199
    %s202 = sphi 0, %s201
    %s216 = sphi 0, %s202
    %s220 = sphi 0, %s220
    %s222 = sphi 0, %s220
    %s223 = sphi 0, %s222
    %s237 = sphi 0, %s223
    %s241 = sphi 0, %s241
    %s243 = sphi 0, %s241
    %s244 = sphi 0, %s243
    %s258 = sphi 0, %s244
    %s262 = sphi 0, %s262
    %s264 = sphi 0, %s262
    %s265 = sphi 0, %s264
    %s279 = sphi 0, %s265
    %s285 = sphi 0, %s287
    %s288 = sphi 0, %s285
    %s289 = sphi 0, %s288
    %s305 = sphi 0, %s289
  $region4: #{tpu_custom_call.1} parent=0 // loop_header_branch
    %21 = sbr.rel (%p19) target = $region8
  $region5: #{tpu_custom_call.1} parent=0 // loop_body
    %s23 = ssub.s32 %s18, 1
    %s24 = ssub.s32 %s18, 2
    %s25 = sadd.s32 %s18, 1
    %s26 = ssub.s32 %s18, %s25
    %p27 = scmp.eq.s32.totalorder %s26, 0
    %s29 = sadd.s32 %s28, 1
    %s30 = scalar_select %p27, %s28, %s29
    %p33 = pneg %p27
    %p34 = scmp.eq.s32.totalorder %s18, 1
    %p35 = por %p33, %p34
    %p36 = scmp.ne.s32.totalorder %s28, %s31
    %p37 = scmp.eq.s32.totalorder %s18, 0
    %p38 = por %p36, %p37
    %p39 = scmp.ne.s32.totalorder %s28, %s31
    %p40 = scmp.eq.s32.totalorder %s23, 1
    %p41 = por %p39, %p40
    %p42 = scmp.ne.s32.totalorder %s31, %s32
    %p43 = scmp.eq.s32.totalorder %s23, 0
    %p44 = por %p42, %p43
    %p45 = scmp.ne.s32.totalorder %s31, %s32
    %p46 = scmp.eq.s32.totalorder %s24, 1
    %p47 = por %p45, %p46
    %p49 = scmp.ne.s32.totalorder %s32, %s48
    %p50 = scmp.eq.s32.totalorder %s24, 0
    %p51 = por %p49, %p50
    %s53 = sadd.s32 %s52, 1
    %p56 = scmp.eq.s32.totalorder %s18, 1
    %p57 = scmp.ne.s32.totalorder %s52, %s54
    %p58 = scmp.eq.s32.totalorder %s18, 0
    %p59 = por %p57, %p58
    %p60 = scmp.ne.s32.totalorder %s52, %s54
    %p61 = scmp.eq.s32.totalorder %s23, 1
    %p62 = por %p60, %p61
    %p63 = scmp.ne.s32.totalorder %s54, %s55
    %p64 = scmp.eq.s32.totalorder %s23, 0
    %p65 = por %p63, %p64
    %p66 = scmp.ne.s32.totalorder %s54, %s55
    %p67 = scmp.eq.s32.totalorder %s24, 1
    %p68 = por %p66, %p67
    %p70 = scmp.ne.s32.totalorder %s55, %s69
    %p71 = scmp.eq.s32.totalorder %s24, 0
    %p72 = por %p70, %p71
    %s74 = sadd.s32 %s73, 1
    %p77 = scmp.eq.s32.totalorder %s18, 1
    %p78 = scmp.ne.s32.totalorder %s73, %s75
    %p79 = scmp.eq.s32.totalorder %s18, 0
    %p80 = por %p78, %p79
    %p81 = scmp.ne.s32.totalorder %s73, %s75
    %p82 = scmp.eq.s32.totalorder %s23, 1
    %p83 = por %p81, %p82
    %p84 = scmp.ne.s32.totalorder %s75, %s76
    %p85 = scmp.eq.s32.totalorder %s23, 0
    %p86 = por %p84, %p85
    %p87 = scmp.ne.s32.totalorder %s75, %s76
    %p88 = scmp.eq.s32.totalorder %s24, 1
    %p89 = por %p87, %p88
    %p91 = scmp.ne.s32.totalorder %s76, %s90
    %p92 = scmp.eq.s32.totalorder %s24, 0
    %p93 = por %p91, %p92
    %s95 = sadd.s32 %s94, 1
    %p98 = scmp.eq.s32.totalorder %s18, 1
    %p99 = scmp.ne.s32.totalorder %s94, %s96
    %p100 = scmp.eq.s32.totalorder %s18, 0
    %p101 = por %p99, %p100
    %p102 = scmp.ne.s32.totalorder %s94, %s96
    %p103 = scmp.eq.s32.totalorder %s23, 1
    %p104 = por %p102, %p103
    %p105 = scmp.ne.s32.totalorder %s96, %s97
    %p106 = scmp.eq.s32.totalorder %s23, 0
    %p107 = por %p105, %p106
    %p108 = scmp.ne.s32.totalorder %s96, %s97
    %p109 = scmp.eq.s32.totalorder %s24, 1
    %p110 = por %p108, %p109
    %p112 = scmp.ne.s32.totalorder %s97, %s111
    %p113 = scmp.eq.s32.totalorder %s24, 0
    %p114 = por %p112, %p113
    %s116 = sadd.s32 %s115, 1
    %p119 = scmp.eq.s32.totalorder %s18, 1
    %p120 = scmp.ne.s32.totalorder %s115, %s117
    %p121 = scmp.eq.s32.totalorder %s18, 0
    %p122 = por %p120, %p121
    %p123 = scmp.ne.s32.totalorder %s115, %s117
    %p124 = scmp.eq.s32.totalorder %s23, 1
    %p125 = por %p123, %p124
    %p126 = scmp.ne.s32.totalorder %s117, %s118
    %p127 = scmp.eq.s32.totalorder %s23, 0
    %p128 = por %p126, %p127
    %p129 = scmp.ne.s32.totalorder %s117, %s118
    %p130 = scmp.eq.s32.totalorder %s24, 1
    %p131 = por %p129, %p130
    %p133 = scmp.ne.s32.totalorder %s118, %s132
    %p134 = scmp.eq.s32.totalorder %s24, 0
    %p135 = por %p133, %p134
    %s137 = sadd.s32 %s136, 1
    %p140 = scmp.eq.s32.totalorder %s18, 1
    %p141 = scmp.ne.s32.totalorder %s136, %s138
    %p142 = scmp.eq.s32.totalorder %s18, 0
    %p143 = por %p141, %p142
    %p144 = scmp.ne.s32.totalorder %s136, %s138
    %p145 = scmp.eq.s32.totalorder %s23, 1
    %p146 = por %p144, %p145
    %p147 = scmp.ne.s32.totalorder %s138, %s139
    %p148 = scmp.eq.s32.totalorder %s23, 0
    %p149 = por %p147, %p148
    %p150 = scmp.ne.s32.totalorder %s138, %s139
    %p151 = scmp.eq.s32.totalorder %s24, 1
    %p152 = por %p150, %p151
    %p154 = scmp.ne.s32.totalorder %s139, %s153
    %p155 = scmp.eq.s32.totalorder %s24, 0
    %p156 = por %p154, %p155
    %s158 = sadd.s32 %s157, 1
    %p161 = scmp.eq.s32.totalorder %s18, 1
    %p162 = scmp.ne.s32.totalorder %s157, %s159
    %p163 = scmp.eq.s32.totalorder %s18, 0
    %p164 = por %p162, %p163
    %p165 = scmp.ne.s32.totalorder %s157, %s159
    %p166 = scmp.eq.s32.totalorder %s23, 1
    %p167 = por %p165, %p166
    %p168 = scmp.ne.s32.totalorder %s159, %s160
    %p169 = scmp.eq.s32.totalorder %s23, 0
    %p170 = por %p168, %p169
    %p171 = scmp.ne.s32.totalorder %s159, %s160
    %p172 = scmp.eq.s32.totalorder %s24, 1
    %p173 = por %p171, %p172
    %p175 = scmp.ne.s32.totalorder %s160, %s174
    %p176 = scmp.eq.s32.totalorder %s24, 0
    %p177 = por %p175, %p176
    %s179 = sadd.s32 %s178, 1
    %p182 = scmp.eq.s32.totalorder %s18, 1
    %p183 = scmp.ne.s32.totalorder %s178, %s180
    %p184 = scmp.eq.s32.totalorder %s18, 0
    %p185 = por %p183, %p184
    %p186 = scmp.ne.s32.totalorder %s178, %s180
    %p187 = scmp.eq.s32.totalorder %s23, 1
    %p188 = por %p186, %p187
    %p189 = scmp.ne.s32.totalorder %s180, %s181
    %p190 = scmp.eq.s32.totalorder %s23, 0
    %p191 = por %p189, %p190
    %p192 = scmp.ne.s32.totalorder %s180, %s181
    %p193 = scmp.eq.s32.totalorder %s24, 1
    %p194 = por %p192, %p193
    %p196 = scmp.ne.s32.totalorder %s181, %s195
    %p197 = scmp.eq.s32.totalorder %s24, 0
    %p198 = por %p196, %p197
    %s200 = sadd.s32 %s199, 1
    %p203 = scmp.eq.s32.totalorder %s18, 1
    %p204 = scmp.ne.s32.totalorder %s199, %s201
    %p205 = scmp.eq.s32.totalorder %s18, 0
    %p206 = por %p204, %p205
    %p207 = scmp.ne.s32.totalorder %s199, %s201
    %p208 = scmp.eq.s32.totalorder %s23, 1
    %p209 = por %p207, %p208
    %p210 = scmp.ne.s32.totalorder %s201, %s202
    %p211 = scmp.eq.s32.totalorder %s23, 0
    %p212 = por %p210, %p211
    %p213 = scmp.ne.s32.totalorder %s201, %s202
    %p214 = scmp.eq.s32.totalorder %s24, 1
    %p215 = por %p213, %p214
    %p217 = scmp.ne.s32.totalorder %s202, %s216
    %p218 = scmp.eq.s32.totalorder %s24, 0
    %p219 = por %p217, %p218
    %s221 = sadd.s32 %s220, 1
    %p224 = scmp.eq.s32.totalorder %s18, 1
    %p225 = scmp.ne.s32.totalorder %s220, %s222
    %p226 = scmp.eq.s32.totalorder %s18, 0
    %p227 = por %p225, %p226
    %p228 = scmp.ne.s32.totalorder %s220, %s222
    %p229 = scmp.eq.s32.totalorder %s23, 1
    %p230 = por %p228, %p229
    %p231 = scmp.ne.s32.totalorder %s222, %s223
    %p232 = scmp.eq.s32.totalorder %s23, 0
    %p233 = por %p231, %p232
    %p234 = scmp.ne.s32.totalorder %s222, %s223
    %p235 = scmp.eq.s32.totalorder %s24, 1
    %p236 = por %p234, %p235
    %p238 = scmp.ne.s32.totalorder %s223, %s237
    %p239 = scmp.eq.s32.totalorder %s24, 0
    %p240 = por %p238, %p239
    %s242 = sadd.s32 %s241, 1
    %p245 = scmp.eq.s32.totalorder %s18, 1
    %p246 = scmp.ne.s32.totalorder %s241, %s243
    %p247 = scmp.eq.s32.totalorder %s18, 0
    %p248 = por %p246, %p247
    %p249 = scmp.ne.s32.totalorder %s241, %s243
    %p250 = scmp.eq.s32.totalorder %s23, 1
    %p251 = por %p249, %p250
    %p252 = scmp.ne.s32.totalorder %s243, %s244
    %p253 = scmp.eq.s32.totalorder %s23, 0
    %p254 = por %p252, %p253
    %p255 = scmp.ne.s32.totalorder %s243, %s244
    %p256 = scmp.eq.s32.totalorder %s24, 1
    %p257 = por %p255, %p256
    %p259 = scmp.ne.s32.totalorder %s244, %s258
    %p260 = scmp.eq.s32.totalorder %s24, 0
    %p261 = por %p259, %p260
    %s263 = sadd.s32 %s262, 1
    %p266 = scmp.eq.s32.totalorder %s18, 1
    %p267 = scmp.ne.s32.totalorder %s262, %s264
    %p268 = scmp.eq.s32.totalorder %s18, 0
    %p269 = por %p267, %p268
    %p270 = scmp.ne.s32.totalorder %s262, %s264
    %p271 = scmp.eq.s32.totalorder %s23, 1
    %p272 = por %p270, %p271
    %p273 = scmp.ne.s32.totalorder %s264, %s265
    %p274 = scmp.eq.s32.totalorder %s23, 0
    %p275 = por %p273, %p274
    %p276 = scmp.ne.s32.totalorder %s264, %s265
    %p277 = scmp.eq.s32.totalorder %s24, 1
    %p278 = por %p276, %p277
    %p280 = scmp.ne.s32.totalorder %s265, %s279
    %p281 = scmp.eq.s32.totalorder %s24, 0
    %p282 = por %p280, %p281
    %s283 = ssub.s32 %s18, %s25
    %p284 = scmp.eq.s32.totalorder %s283, 0
    %s286 = sadd.s32 %s285, 1
    %s287 = scalar_select %p284, %s285, %s286
    %p290 = pneg %p284
    %p291 = scmp.eq.s32.totalorder %s18, 1
    %p292 = por %p290, %p291
    %p293 = scmp.ne.s32.totalorder %s285, %s288
    %p294 = scmp.eq.s32.totalorder %s18, 0
    %p295 = por %p293, %p294
    %p296 = scmp.ne.s32.totalorder %s285, %s288
    %p297 = scmp.eq.s32.totalorder %s23, 1
    %p298 = por %p296, %p297
    %p299 = scmp.ne.s32.totalorder %s288, %s289
    %p300 = scmp.eq.s32.totalorder %s23, 0
    %p301 = por %p299, %p300
    %p302 = scmp.ne.s32.totalorder %s288, %s289
    %p303 = scmp.eq.s32.totalorder %s24, 1
    %p304 = por %p302, %p303
    %p306 = scmp.ne.s32.totalorder %s289, %s305
    %p307 = scmp.eq.s32.totalorder %s24, 0
    %p308 = por %p306, %p307
    %p309 = scmp.le.s32.totalorder 1, %s18
    %p310 = scmp.lt.s32.totalorder %s18, 3
    %p311 = pnand %p309, %p310
    %p312 = pneg %p311
    // Predicated region
    $region9: #{tpu_custom_call.1} parent=5 // pred_check
      _
    $region10: #{tpu_custom_call.1} parent=5 // pred_check_branch
      %314 = sbr.rel (%p311) target = $region12
    $region11: #{tpu_custom_call.1} parent=5 // pred_region
      %s315 = ssub.s32 %s18, 1
      // Predicated region
      $region13: #{tpu_custom_call.1} parent=11 // pred_check
        %p316 = pneg %p65
      $region14: #{tpu_custom_call.1} parent=11 // pred_check_branch
        %318 = sbr.rel (%p316) target = $region16
      $region15: #{tpu_custom_call.1} parent=11 // pred_region
        _
      $region16: #{tpu_custom_call.1} parent=11 // pred_fallthru
        _
      // Predicated region
      $region17: #{tpu_custom_call.1} parent=11 // pred_check
        %p319 = pneg %p86
      $region18: #{tpu_custom_call.1} parent=11 // pred_check_branch
        %321 = sbr.rel (%p319) target = $region20
      $region19: #{tpu_custom_call.1} parent=11 // pred_region
        _
      $region20: #{tpu_custom_call.1} parent=11 // pred_fallthru
        _
      // Predicated region
      $region21: #{tpu_custom_call.1} parent=11 // pred_check
        %p322 = pneg %p107
      $region22: #{tpu_custom_call.1} parent=11 // pred_check_branch
        %324 = sbr.rel (%p322) target = $region24
      $region23: #{tpu_custom_call.1} parent=11 // pred_region
        _
      $region24: #{tpu_custom_call.1} parent=11 // pred_fallthru
        _
      // Predicated region
      $region25: #{tpu_custom_call.1} parent=11 // pred_check
        %p325 = pneg %p128
      $region26: #{tpu_custom_call.1} parent=11 // pred_check_branch
        %327 = sbr.rel (%p325) target = $region28
      $region27: #{tpu_custom_call.1} parent=11 // pred_region
        _
      $region28: #{tpu_custom_call.1} parent=11 // pred_fallthru
        _
      // Predicated region
      $region29: #{tpu_custom_call.1} parent=11 // pred_check
        %p328 = pneg %p149
      $region30: #{tpu_custom_call.1} parent=11 // pred_check_branch
        %330 = sbr.rel (%p328) target = $region32
      $region31: #{tpu_custom_call.1} parent=11 // pred_region
        _
      $region32: #{tpu_custom_call.1} parent=11 // pred_fallthru
        _
      // Predicated region
      $region33: #{tpu_custom_call.1} parent=11 // pred_check
        %p331 = pneg %p170
      $region34: #{tpu_custom_call.1} parent=11 // pred_check_branch
        %333 = sbr.rel (%p331) target = $region36
      $region35: #{tpu_custom_call.1} parent=11 // pred_region
        _
      $region36: #{tpu_custom_call.1} parent=11 // pred_fallthru
        _
      // Predicated region
      $region37: #{tpu_custom_call.1} parent=11 // pred_check
        %p334 = pneg %p191
      $region38: #{tpu_custom_call.1} parent=11 // pred_check_branch
        %336 = sbr.rel (%p334) target = $region40
      $region39: #{tpu_custom_call.1} parent=11 // pred_region
        _
      $region40: #{tpu_custom_call.1} parent=11 // pred_fallthru
        _
      // Predicated region
      $region41: #{tpu_custom_call.1} parent=11 // pred_check
        %p337 = pneg %p212
      $region42: #{tpu_custom_call.1} parent=11 // pred_check_branch
        %339 = sbr.rel (%p337) target = $region44
      $region43: #{tpu_custom_call.1} parent=11 // pred_region
        _
      $region44: #{tpu_custom_call.1} parent=11 // pred_fallthru
        _
      // Predicated region
      $region45: #{tpu_custom_call.1} parent=11 // pred_check
        %p340 = pneg %p233
      $region46: #{tpu_custom_call.1} parent=11 // pred_check_branch
        %342 = sbr.rel (%p340) target = $region48
      $region47: #{tpu_custom_call.1} parent=11 // pred_region
        _
      $region48: #{tpu_custom_call.1} parent=11 // pred_fallthru
        _
      // Predicated region
      $region49: #{tpu_custom_call.1} parent=11 // pred_check
        %p343 = pneg %p254
      $region50: #{tpu_custom_call.1} parent=11 // pred_check_branch
        %345 = sbr.rel (%p343) target = $region52
      $region51: #{tpu_custom_call.1} parent=11 // pred_region
        _
      $region52: #{tpu_custom_call.1} parent=11 // pred_fallthru
        _
      // Predicated region
      $region53: #{tpu_custom_call.1} parent=11 // pred_check
        %p346 = pneg %p275
      $region54: #{tpu_custom_call.1} parent=11 // pred_check_branch
        %348 = sbr.rel (%p346) target = $region56
      $region55: #{tpu_custom_call.1} parent=11 // pred_region
        _
      $region56: #{tpu_custom_call.1} parent=11 // pred_fallthru
        _
    $region12: #{tpu_custom_call.1} parent=5 // pred_fallthru
      _
    %p349 = scmp.lt.s32.totalorder %s18, 2
    // Predicated region
    $region57: #{tpu_custom_call.1} parent=5 // pred_check
      %p350 = pneg %p349
    $region58: #{tpu_custom_call.1} parent=5 // pred_check_branch
      %352 = sbr.rel (%p350) target = $region60
    $region59: #{tpu_custom_call.1} parent=5 // pred_region
      // Predicated region
      $region61: #{tpu_custom_call.1} parent=59 // pred_check
        %p353 = pneg %p38
      $region62: #{tpu_custom_call.1} parent=59 // pred_check_branch
        %355 = sbr.rel (%p353) target = $region64
      $region63: #{tpu_custom_call.1} parent=59 // pred_region
        %p356 = scmp.lt.s32.totalorder %s18, 1
        %s357 = scalar_select %p356, %s18, 1
        %s358 = smul.addr %s357, 32
        %s359 = smul.addr %s358, 8
        %s360 = scalar_lea.vmem %s0, %s359
      $region64: #{tpu_custom_call.1} parent=59 // pred_fallthru
        _
    $region60: #{tpu_custom_call.1} parent=5 // pred_fallthru
      _
    %p361 = scmp.le.s32.totalorder 1, %s18
    %p362 = scmp.lt.s32.totalorder %s18, 3
    %p363 = pnand %p361, %p362
    %p364 = pneg %p363
    // Predicated region
    $region65: #{tpu_custom_call.1} parent=5 // pred_check
      _
    $region66: #{tpu_custom_call.1} parent=5 // pred_check_branch
      %366 = sbr.rel (%p363) target = $region68
    $region67: #{tpu_custom_call.1} parent=5 // pred_region
      %s367 = ssub.s32 %s18, 1
      %p368 = scmp.lt.s32.totalorder %s23, 1
      %s369 = scalar_select %p368, %s23, 1
      %s370 = smul.addr %s369, 32
      %s371 = smul.addr %s370, 8
      %s372 = scalar_lea.vmem %s0, %s371
      %p373 = pneg %p44
      %p374 = pneg %p41
      %p375 = pneg %p65
      %p376 = pneg %p62
      %p377 = pneg %p86
      %p378 = pneg %p83
      %p379 = pneg %p107
      %p380 = pneg %p104
      %p381 = pneg %p128
      %p382 = pneg %p125
      %p383 = pneg %p149
      %p384 = pneg %p146
      %p385 = pneg %p170
      %p386 = pneg %p167
      %p387 = pneg %p191
      %p388 = pneg %p188
      %p389 = pneg %p212
      %p390 = pneg %p209
      %p391 = pneg %p233
      %p392 = pneg %p230
      %p393 = pneg %p254
      %p394 = pneg %p251
      %p395 = pneg %p275
      %p396 = pneg %p272
      %p397 = pneg %p301
      %p398 = pneg %p298
      %p399 = scmp.lt.s32.totalorder %s23, 1
      %s400 = scalar_select %p399, %s23, 1
      %s401 = smul.addr %s400, 8
      %s402 = smul.addr %s401, 8
      %s403 = scalar_lea.vmem %s12, %s402
      %p404 = scmp.lt.s32.totalorder %s23, 1
      %s405 = scalar_select %p404, %s23, 1
      %s406 = smul.addr %s405, 32
      %s407 = smul.addr %s406, 8
      %s408 = scalar_lea.vmem %s0, %s407
      %p409 = scmp.lt.s32.totalorder %s23, 1
      %s410 = scalar_select %p409, %s23, 1
      %s411 = smul.addr %s410, 8
      %s412 = smul.addr %s411, 8
      %s413 = scalar_lea.vmem %s12, %s412
      %vm415 = vcmask 31744
      %416 = vst.msk [vmem:[#allocation2] sm:$0xff] %vm415, 0
      %417 = vst.msk [vmem:[#allocation2 + $0x8] sm:$0xff] %vm415, 0
      %418 = vst.msk [vmem:[#allocation2 + $0x90] sm:$0xff] %vm415, 0
      %419 = vst.msk [vmem:[#allocation2 + $0x98] sm:$0xff] %vm415, 0
      %v420 = vld [vmem:[%s408] sm:$0xff]
      %v421 = vld [vmem:[%s408 + $0x8] sm:$0xff]
      %v422 = vld [vmem:[%s408 + $0x10] sm:$0xff]
      %v423 = vld [vmem:[%s408 + $0x18] sm:$0xff]
      %v424 = vld [vmem:[%s408 + $0x20] sm:$0xff]
      %v425 = vld [vmem:[%s408 + $0x28] sm:$0xff]
      %v426 = vld [vmem:[%s408 + $0x30] sm:$0xff]
      %v427 = vld [vmem:[%s408 + $0x38] sm:$0xff]
      %v428 = vld [vmem:[%s408 + $0x40] sm:$0xff]
      %v429 = vld [vmem:[%s408 + $0x48] sm:$0xff]
      %v430 = vld [vmem:[%s408 + $0x50] sm:$0xff]
      %v431 = vld [vmem:[%s408 + $0x58] sm:$0xff]
      %v432 = vld [vmem:[%s408 + $0x60] sm:$0xff]
      %v433 = vld [vmem:[%s408 + $0x68] sm:$0xff]
      %v434 = vld [vmem:[%s408 + $0x70] sm:$0xff]
      %v435 = vld [vmem:[%s408 + $0x78] sm:$0xff]
      %v436 = vld [vmem:[%s408 + $0x80] sm:$0xff]
      %v437 = vld [vmem:[%s408 + $0x88] sm:$0xff]
      %v438 = vld [vmem:[%s408 + $0x90] sm:$0xff]
      %v439 = vld [vmem:[%s408 + $0x98] sm:$0xff]
      %v440 = vld [vmem:[%s408 + $0xa0] sm:$0xff]
      %v441 = vld [vmem:[%s408 + $0xa8] sm:$0xff]
      %v442 = vld [vmem:[%s408 + $0xb0] sm:$0xff]
      %v443 = vld [vmem:[%s408 + $0xb8] sm:$0xff]
      %v444 = vld [vmem:[%s408 + $0xc0] sm:$0xff]
      %v445 = vld [vmem:[%s408 + $0xc8] sm:$0xff]
      %v446 = vld [vmem:[%s408 + $0xd0] sm:$0xff]
      %v447 = vld [vmem:[%s408 + $0xd8] sm:$0xff]
      %v448 = vld [vmem:[%s408 + $0xe0] sm:$0xff]
      %v449 = vld [vmem:[%s408 + $0xe8] sm:$0xff]
      %v450 = vld [vmem:[%s408 + $0xf0] sm:$0xff]
      %v451 = vld [vmem:[%s408 + $0xf8] sm:$0xff]
      %452 = vst.msk [vmem:[#allocation4] sm:$0xff] %vm415, %v420
      %453 = vst.msk [vmem:[#allocation4 + $0x8] sm:$0xff] %vm415, %v421
      %454 = vst.msk [vmem:[#allocation4 + $0x10] sm:$0xff] %vm415, %v422
      %455 = vst.msk [vmem:[#allocation4 + $0x18] sm:$0xff] %vm415, %v423
      %456 = vst.msk [vmem:[#allocation4 + $0x20] sm:$0xff] %vm415, %v424
      %457 = vst.msk [vmem:[#allocation4 + $0x28] sm:$0xff] %vm415, %v425
      %458 = vst.msk [vmem:[#allocation4 + $0x30] sm:$0xff] %vm415, %v426
      %459 = vst.msk [vmem:[#allocation4 + $0x38] sm:$0xff] %vm415, %v427
      %460 = vst.msk [vmem:[#allocation4 + $0x40] sm:$0xff] %vm415, %v428
      %461 = vst.msk [vmem:[#allocation4 + $0x48] sm:$0xff] %vm415, %v429
      %462 = vst.msk [vmem:[#allocation4 + $0x50] sm:$0xff] %vm415, %v430
      %463 = vst.msk [vmem:[#allocation4 + $0x58] sm:$0xff] %vm415, %v431
      %464 = vst.msk [vmem:[#allocation4 + $0x60] sm:$0xff] %vm415, %v432
      %465 = vst.msk [vmem:[#allocation4 + $0x68] sm:$0xff] %vm415, %v433
      %466 = vst.msk [vmem:[#allocation4 + $0x70] sm:$0xff] %vm415, %v434
      %467 = vst.msk [vmem:[#allocation4 + $0x78] sm:$0xff] %vm415, %v435
      %468 = vst.msk [vmem:[#allocation4 + $0x80] sm:$0xff] %vm415, %v436
      %469 = vst.msk [vmem:[#allocation4 + $0x88] sm:$0xff] %vm415, %v437
      %470 = vst.msk [vmem:[#allocation4 + $0x90] sm:$0xff] %vm415, %v438
      %471 = vst.msk [vmem:[#allocation4 + $0x98] sm:$0xff] %vm415, %v439
      %472 = vst.msk [vmem:[#allocation4 + $0xa0] sm:$0xff] %vm415, %v440
      %473 = vst.msk [vmem:[#allocation4 + $0xa8] sm:$0xff] %vm415, %v441
      %474 = vst.msk [vmem:[#allocation4 + $0xb0] sm:$0xff] %vm415, %v442
      %475 = vst.msk [vmem:[#allocation4 + $0xb8] sm:$0xff] %vm415, %v443
      %476 = vst.msk [vmem:[#allocation4 + $0xc0] sm:$0xff] %vm415, %v444
      %477 = vst.msk [vmem:[#allocation4 + $0xc8] sm:$0xff] %vm415, %v445
      %478 = vst.msk [vmem:[#allocation4 + $0xd0] sm:$0xff] %vm415, %v446
      %479 = vst.msk [vmem:[#allocation4 + $0xd8] sm:$0xff] %vm415, %v447
      %480 = vst.msk [vmem:[#allocation4 + $0xe0] sm:$0xff] %vm415, %v448
      %481 = vst.msk [vmem:[#allocation4 + $0xe8] sm:$0xff] %vm415, %v449
      %482 = vst.msk [vmem:[#allocation4 + $0xf0] sm:$0xff] %vm415, %v450
      %483 = vst.msk [vmem:[#allocation4 + $0xf8] sm:$0xff] %vm415, %v451
      %v484 = vld [vmem:[#allocation4] ss:$2 sm:$0xff]
      %s485 = scalar_lea.vmem [#allocation4], 16
      %v486 = vld [vmem:[%s485] ss:$2 sm:$0xff]
      %s487 = scalar_lea.vmem [#allocation4], 32
      %v488 = vld [vmem:[%s487] ss:$2 sm:$0xff]
      %s489 = scalar_lea.vmem [#allocation4], 48
      %v490 = vld [vmem:[%s489] ss:$2 sm:$0xff]
      %s491 = scalar_lea.vmem [#allocation4], 64
      %v492 = vld [vmem:[%s491] ss:$2 sm:$0xff]
      %s493 = scalar_lea.vmem [#allocation4], 80
      %v494 = vld [vmem:[%s493] ss:$2 sm:$0xff]
      %s495 = scalar_lea.vmem [#allocation4], 96
      %v496 = vld [vmem:[%s495] ss:$2 sm:$0xff]
      %s497 = scalar_lea.vmem [#allocation4], 112
      %v498 = vld [vmem:[%s497] ss:$2 sm:$0xff]
      %s499 = scalar_lea.vmem [#allocation4], 128
      %v500 = vld [vmem:[%s499] ss:$2 sm:$0xff]
      %s501 = scalar_lea.vmem [#allocation4], 144
      %v502 = vld [vmem:[%s501] ss:$2 sm:$0xff]
      %s503 = scalar_lea.vmem [#allocation4], 160
      %v504 = vld [vmem:[%s503] ss:$2 sm:$0xff]
      %s505 = scalar_lea.vmem [#allocation4], 176
      %v506 = vld [vmem:[%s505] ss:$2 sm:$0xff]
      %s507 = scalar_lea.vmem [#allocation4], 192
      %v508 = vld [vmem:[%s507] ss:$2 sm:$0xff]
      %s509 = scalar_lea.vmem [#allocation4], 208
      %v510 = vld [vmem:[%s509] ss:$2 sm:$0xff]
      %s511 = scalar_lea.vmem [#allocation4], 224
      %v512 = vld [vmem:[%s511] ss:$2 sm:$0xff]
      %s513 = scalar_lea.vmem [#allocation4], 240
      %v514 = vld [vmem:[%s513] ss:$2 sm:$0xff]
      %s515 = scalar_lea.vmem [#allocation4], 1
      %v516 = vld [vmem:[%s515] ss:$2 sm:$0xff]
      %s517 = scalar_lea.vmem [#allocation4], 17
      %v518 = vld [vmem:[%s517] ss:$2 sm:$0xff]
      %s519 = scalar_lea.vmem [#allocation4], 33
      %v520 = vld [vmem:[%s519] ss:$2 sm:$0xff]
      %s521 = scalar_lea.vmem [#allocation4], 49
      %v522 = vld [vmem:[%s521] ss:$2 sm:$0xff]
      %s523 = scalar_lea.vmem [#allocation4], 65
      %v524 = vld [vmem:[%s523] ss:$2 sm:$0xff]
      %s525 = scalar_lea.vmem [#allocation4], 81
      %v526 = vld [vmem:[%s525] ss:$2 sm:$0xff]
      %s527 = scalar_lea.vmem [#allocation4], 97
      %v528 = vld [vmem:[%s527] ss:$2 sm:$0xff]
      %s529 = scalar_lea.vmem [#allocation4], 113
      %v530 = vld [vmem:[%s529] ss:$2 sm:$0xff]
      %s531 = scalar_lea.vmem [#allocation4], 129
      %v532 = vld [vmem:[%s531] ss:$2 sm:$0xff]
      %s533 = scalar_lea.vmem [#allocation4], 145
      %v534 = vld [vmem:[%s533] ss:$2 sm:$0xff]
      %s535 = scalar_lea.vmem [#allocation4], 161
      %v536 = vld [vmem:[%s535] ss:$2 sm:$0xff]
      %s537 = scalar_lea.vmem [#allocation4], 177
      %v538 = vld [vmem:[%s537] ss:$2 sm:$0xff]
      %s539 = scalar_lea.vmem [#allocation4], 193
      %v540 = vld [vmem:[%s539] ss:$2 sm:$0xff]
      %s541 = scalar_lea.vmem [#allocation4], 209
      %v542 = vld [vmem:[%s541] ss:$2 sm:$0xff]
      %s543 = scalar_lea.vmem [#allocation4], 225
      %v544 = vld [vmem:[%s543] ss:$2 sm:$0xff]
      %s545 = scalar_lea.vmem [#allocation4], 241
      %v546 = vld [vmem:[%s545] ss:$2 sm:$0xff]
      %v547 = vadd.f32 %v484, %v516
      %v548 = vadd.f32 %v486, %v518
      %v549 = vadd.f32 %v488, %v520
      %v550 = vadd.f32 %v490, %v522
      %v551 = vadd.f32 %v492, %v524
      %v552 = vadd.f32 %v494, %v526
      %v553 = vadd.f32 %v496, %v528
      %v554 = vadd.f32 %v498, %v530
      %v555 = vadd.f32 %v500, %v532
      %v556 = vadd.f32 %v502, %v534
      %v557 = vadd.f32 %v504, %v536
      %v558 = vadd.f32 %v506, %v538
      %v559 = vadd.f32 %v508, %v540
      %v560 = vadd.f32 %v510, %v542
      %v561 = vadd.f32 %v512, %v544
      %v562 = vadd.f32 %v514, %v546
      %563 = vst.msk [vmem:[#allocation5] sm:$0xff] %vm415, %v547
      %564 = vst.msk [vmem:[#allocation5 + $0x8] sm:$0xff] %vm415, %v548
      %565 = vst.msk [vmem:[#allocation5 + $0x10] sm:$0xff] %vm415, %v549
      %566 = vst.msk [vmem:[#allocation5 + $0x18] sm:$0xff] %vm415, %v550
      %567 = vst.msk [vmem:[#allocation5 + $0x20] sm:$0xff] %vm415, %v551
      %568 = vst.msk [vmem:[#allocation5 + $0x28] sm:$0xff] %vm415, %v552
      %569 = vst.msk [vmem:[#allocation5 + $0x30] sm:$0xff] %vm415, %v553
      %570 = vst.msk [vmem:[#allocation5 + $0x38] sm:$0xff] %vm415, %v554
      %571 = vst.msk [vmem:[#allocation5 + $0x40] sm:$0xff] %vm415, %v555
      %572 = vst.msk [vmem:[#allocation5 + $0x48] sm:$0xff] %vm415, %v556
      %573 = vst.msk [vmem:[#allocation5 + $0x50] sm:$0xff] %vm415, %v557
      %574 = vst.msk [vmem:[#allocation5 + $0x58] sm:$0xff] %vm415, %v558
      %575 = vst.msk [vmem:[#allocation5 + $0x60] sm:$0xff] %vm415, %v559
      %576 = vst.msk [vmem:[#allocation5 + $0x68] sm:$0xff] %vm415, %v560
      %577 = vst.msk [vmem:[#allocation5 + $0x70] sm:$0xff] %vm415, %v561
      %578 = vst.msk [vmem:[#allocation5 + $0x78] sm:$0xff] %vm415, %v562
      %v579 = vld [vmem:[#allocation5] sm:$0xff]
      %v580 = vld [vmem:[#allocation5 + $0x10] sm:$0xff]
      %v581 = vld [vmem:[#allocation5 + $0x20] sm:$0xff]
      %v582 = vld [vmem:[#allocation5 + $0x30] sm:$0xff]
      %v583 = vld [vmem:[#allocation5 + $0x40] sm:$0xff]
      %v584 = vld [vmem:[#allocation5 + $0x50] sm:$0xff]
      %v585 = vld [vmem:[#allocation5 + $0x60] sm:$0xff]
      %v586 = vld [vmem:[#allocation5 + $0x70] sm:$0xff]
      %s587 = scalar_lea.vmem [#allocation5], 8
      %v588 = vld [vmem:[%s587] sm:$0xff]
      %v589 = vld [vmem:[%s587 + $0x10] sm:$0xff]
      %v590 = vld [vmem:[%s587 + $0x20] sm:$0xff]
      %v591 = vld [vmem:[%s587 + $0x30] sm:$0xff]
      %v592 = vld [vmem:[%s587 + $0x40] sm:$0xff]
      %v593 = vld [vmem:[%s587 + $0x50] sm:$0xff]
      %v594 = vld [vmem:[%s587 + $0x60] sm:$0xff]
      %v595 = vld [vmem:[%s587 + $0x70] sm:$0xff]
      %v596 = vadd.f32 %v579, %v588
      %v597 = vadd.f32 %v580, %v589
      %v598 = vadd.f32 %v581, %v590
      %v599 = vadd.f32 %v582, %v591
      %v600 = vadd.f32 %v583, %v592
      %v601 = vadd.f32 %v584, %v593
      %v602 = vadd.f32 %v585, %v594
      %v603 = vadd.f32 %v586, %v595
      %v604 = vmul.f32 %v596, 0.25
      %v605 = vmul.f32 %v597, 0.25
      %v606 = vmul.f32 %v598, 0.25
      %v607 = vmul.f32 %v599, 0.25
      %v608 = vmul.f32 %v600, 0.25
      %v609 = vmul.f32 %v601, 0.25
      %v610 = vmul.f32 %v602, 0.25
      %v611 = vmul.f32 %v603, 0.25
      %v612 = vpack.c.bf16 %v605, %v604
      %v613 = vpack.c.bf16 %v607, %v606
      %v614 = vpack.c.bf16 %v609, %v608
      %v615 = vpack.c.bf16 %v611, %v610
      %v616 = vld [vmem:[%s7] sm:$0x3]
      %v617 = vld [vmem:[%s8] sm:$0x1]
      %v618 = vld [vmem:[%s9] sm:$0x1]
      %v619 = vsel %vm415, %v420, 0.0
      %v620 = vsel %vm415, %v421, 0.0
      %v621 = vadd.f32 %v619, %v620
      %v622 = vsel %vm415, %v422, 0.0
      %v623 = vadd.f32 %v621, %v622
      %v624 = vsel %vm415, %v423, 0.0
      %v625 = vadd.f32 %v623, %v624
      %v626 = vsel %vm415, %v424, 0.0
      %v627 = vadd.f32 %v625, %v626
      %v628 = vsel %vm415, %v425, 0.0
      %v629 = vadd.f32 %v627, %v628
      %v630 = vsel %vm415, %v426, 0.0
      %v631 = vadd.f32 %v629, %v630
      %v632 = vsel %vm415, %v427, 0.0
      %v633 = vadd.f32 %v631, %v632
      %v634 = vsel %vm415, %v428, 0.0
      %v635 = vadd.f32 %v633, %v634
      %v636 = vsel %vm415, %v429, 0.0
      %v637 = vadd.f32 %v635, %v636
      %v638 = vsel %vm415, %v430, 0.0
      %v639 = vadd.f32 %v637, %v638
      %v640 = vsel %vm415, %v431, 0.0
      %v641 = vadd.f32 %v639, %v640
      %v642 = vsel %vm415, %v432, 0.0
      %v643 = vadd.f32 %v641, %v642
      %v644 = vsel %vm415, %v433, 0.0
      %v645 = vadd.f32 %v643, %v644
      %v646 = vsel %vm415, %v434, 0.0
      %v647 = vadd.f32 %v645, %v646
      %v648 = vsel %vm415, %v435, 0.0
      %v649 = vadd.f32 %v647, %v648
      %v650 = vsel %vm415, %v436, 0.0
      %v651 = vadd.f32 %v649, %v650
      %v652 = vsel %vm415, %v437, 0.0
      %v653 = vadd.f32 %v651, %v652
      %v654 = vsel %vm415, %v438, 0.0
      %v655 = vadd.f32 %v653, %v654
      %v656 = vsel %vm415, %v439, 0.0
      %v657 = vadd.f32 %v655, %v656
      %v658 = vsel %vm415, %v440, 0.0
      %v659 = vadd.f32 %v657, %v658
      %v660 = vsel %vm415, %v441, 0.0
      %v661 = vadd.f32 %v659, %v660
      %v662 = vsel %vm415, %v442, 0.0
      %v663 = vadd.f32 %v661, %v662
      %v664 = vsel %vm415, %v443, 0.0
      %v665 = vadd.f32 %v663, %v664
      %v666 = vsel %vm415, %v444, 0.0
      %v667 = vadd.f32 %v665, %v666
      %v668 = vsel %vm415, %v445, 0.0
      %v669 = vadd.f32 %v667, %v668
      %v670 = vsel %vm415, %v446, 0.0
      %v671 = vadd.f32 %v669, %v670
      %v672 = vsel %vm415, %v447, 0.0
      %v673 = vadd.f32 %v671, %v672
      %v674 = vsel %vm415, %v448, 0.0
      %v675 = vadd.f32 %v673, %v674
      %v676 = vsel %vm415, %v449, 0.0
      %v677 = vadd.f32 %v675, %v676
      %v678 = vsel %vm415, %v450, 0.0
      %v679 = vadd.f32 %v677, %v678
      %v680 = vsel %vm415, %v451, 0.0
      %v681 = vadd.f32 %v679, %v680
      %v682 = vrot.slane %v681, 4
      %v683 = vadd.f32 %v681, %v682
      %v684 = vrot.slane %v683, 2
      %v685 = vadd.f32 %v683, %v684
      %v686 = vrot.slane %v685, 1
      %v687 = vadd.f32 %v685, %v686
      %v688 = vmul.f32 %v420, %v420
      %v689 = vmul.f32 %v421, %v421
      %v690 = vmul.f32 %v422, %v422
      %v691 = vmul.f32 %v423, %v423
      %v692 = vmul.f32 %v424, %v424
      %v693 = vmul.f32 %v425, %v425
      %v694 = vmul.f32 %v426, %v426
      %v695 = vmul.f32 %v427, %v427
      %v696 = vmul.f32 %v428, %v428
      %v697 = vmul.f32 %v429, %v429
      %v698 = vmul.f32 %v430, %v430
      %v699 = vmul.f32 %v431, %v431
      %v700 = vmul.f32 %v432, %v432
      %v701 = vmul.f32 %v433, %v433
      %v702 = vmul.f32 %v434, %v434
      %v703 = vmul.f32 %v435, %v435
      %v704 = vmul.f32 %v436, %v436
      %v705 = vmul.f32 %v437, %v437
      %v706 = vmul.f32 %v438, %v438
      %v707 = vmul.f32 %v439, %v439
      %v708 = vmul.f32 %v440, %v440
      %v709 = vmul.f32 %v441, %v441
      %v710 = vmul.f32 %v442, %v442
      %v711 = vmul.f32 %v443, %v443
      %v712 = vmul.f32 %v444, %v444
      %v713 = vmul.f32 %v445, %v445
      %v714 = vmul.f32 %v446, %v446
      %v715 = vmul.f32 %v447, %v447
      %v716 = vmul.f32 %v448, %v448
      %v717 = vmul.f32 %v449, %v449
      %v718 = vmul.f32 %v450, %v450
      %v719 = vmul.f32 %v451, %v451
      %v720 = vsel %vm415, %v688, 0.0
      %v721 = vsel %vm415, %v689, 0.0
      %v722 = vadd.f32 %v720, %v721
      %v723 = vsel %vm415, %v690, 0.0
      %v724 = vadd.f32 %v722, %v723
      %v725 = vsel %vm415, %v691, 0.0
      %v726 = vadd.f32 %v724, %v725
      %v727 = vsel %vm415, %v692, 0.0
      %v728 = vadd.f32 %v726, %v727
      %v729 = vsel %vm415, %v693, 0.0
      %v730 = vadd.f32 %v728, %v729
      %v731 = vsel %vm415, %v694, 0.0
      %v732 = vadd.f32 %v730, %v731
      %v733 = vsel %vm415, %v695, 0.0
      %v734 = vadd.f32 %v732, %v733
      %v735 = vsel %vm415, %v696, 0.0
      %v736 = vadd.f32 %v734, %v735
      %v737 = vsel %vm415, %v697, 0.0
      %v738 = vadd.f32 %v736, %v737
      %v739 = vsel %vm415, %v698, 0.0
      %v740 = vadd.f32 %v738, %v739
      %v741 = vsel %vm415, %v699, 0.0
      %v742 = vadd.f32 %v740, %v741
      %v743 = vsel %vm415, %v700, 0.0
      %v744 = vadd.f32 %v742, %v743
      %v745 = vsel %vm415, %v701, 0.0
      %v746 = vadd.f32 %v744, %v745
      %v747 = vsel %vm415, %v702, 0.0
      %v748 = vadd.f32 %v746, %v747
      %v749 = vsel %vm415, %v703, 0.0
      %v750 = vadd.f32 %v748, %v749
      %v751 = vsel %vm415, %v704, 0.0
      %v752 = vadd.f32 %v750, %v751
      %v753 = vsel %vm415, %v705, 0.0
      %v754 = vadd.f32 %v752, %v753
      %v755 = vsel %vm415, %v706, 0.0
      %v756 = vadd.f32 %v754, %v755
      %v757 = vsel %vm415, %v707, 0.0
      %v758 = vadd.f32 %v756, %v757
      %v759 = vsel %vm415, %v708, 0.0
      %v760 = vadd.f32 %v758, %v759
      %v761 = vsel %vm415, %v709, 0.0
      %v762 = vadd.f32 %v760, %v761
      %v763 = vsel %vm415, %v710, 0.0
      %v764 = vadd.f32 %v762, %v763
      %v765 = vsel %vm415, %v711, 0.0
      %v766 = vadd.f32 %v764, %v765
      %v767 = vsel %vm415, %v712, 0.0
      %v768 = vadd.f32 %v766, %v767
      %v769 = vsel %vm415, %v713, 0.0
      %v770 = vadd.f32 %v768, %v769
      %v771 = vsel %vm415, %v714, 0.0
      %v772 = vadd.f32 %v770, %v771
      %v773 = vsel %vm415, %v715, 0.0
      %v774 = vadd.f32 %v772, %v773
      %v775 = vsel %vm415, %v716, 0.0
      %v776 = vadd.f32 %v774, %v775
      %v777 = vsel %vm415, %v717, 0.0
      %v778 = vadd.f32 %v776, %v777
      %v779 = vsel %vm415, %v718, 0.0
      %v780 = vadd.f32 %v778, %v779
      %v781 = vsel %vm415, %v719, 0.0
      %v782 = vadd.f32 %v780, %v781
      %v783 = vrot.slane %v782, 4
      %v784 = vadd.f32 %v782, %v783
      %v785 = vrot.slane %v784, 2
      %v786 = vadd.f32 %v784, %v785
      %v787 = vrot.slane %v786, 1
      %v788 = vadd.f32 %v786, %v787
      %v789 = vmul.f32 %v687, 0.00390625
      %v790 = vmul.f32 %v788, 0.00390625
      %v791 = vmul.f32 %v789, %v789
      %v792 = vsub.f32 %v790, %v791
      %v793 = vmax.f32 %v792, 0.0
      %v794 = vsub.f32 %v420, %v789
      %v795 = vsub.f32 %v421, %v789
      %v796 = vsub.f32 %v422, %v789
      %v797 = vsub.f32 %v423, %v789
      %v798 = vsub.f32 %v424, %v789
      %v799 = vsub.f32 %v425, %v789
      %v800 = vsub.f32 %v426, %v789
      %v801 = vsub.f32 %v427, %v789
      %v802 = vsub.f32 %v428, %v789
      %v803 = vsub.f32 %v429, %v789
      %v804 = vsub.f32 %v430, %v789
      %v805 = vsub.f32 %v431, %v789
      %v806 = vsub.f32 %v432, %v789
      %v807 = vsub.f32 %v433, %v789
      %v808 = vsub.f32 %v434, %v789
      %v809 = vsub.f32 %v435, %v789
      %v810 = vsub.f32 %v436, %v789
      %v811 = vsub.f32 %v437, %v789
      %v812 = vsub.f32 %v438, %v789
      %v813 = vsub.f32 %v439, %v789
      %v814 = vsub.f32 %v440, %v789
      %v815 = vsub.f32 %v441, %v789
      %v816 = vsub.f32 %v442, %v789
      %v817 = vsub.f32 %v443, %v789
      %v818 = vsub.f32 %v444, %v789
      %v819 = vsub.f32 %v445, %v789
      %v820 = vsub.f32 %v446, %v789
      %v821 = vsub.f32 %v447, %v789
      %v822 = vsub.f32 %v448, %v789
      %v823 = vsub.f32 %v449, %v789
      %v824 = vsub.f32 %v450, %v789
      %v825 = vsub.f32 %v451, %v789
      %v826 = vadd.f32 %v793, 1e-05
      %v827 = vrsqrt.pop %v826
      %v828 = vmul.f32 %v794, %v827
      %v829 = vmul.f32 %v795, %v827
      %v830 = vmul.f32 %v796, %v827
      %v831 = vmul.f32 %v797, %v827
      %v832 = vmul.f32 %v798, %v827
      %v833 = vmul.f32 %v799, %v827
      %v834 = vmul.f32 %v800, %v827
      %v835 = vmul.f32 %v801, %v827
      %v836 = vmul.f32 %v802, %v827
      %v837 = vmul.f32 %v803, %v827
      %v838 = vmul.f32 %v804, %v827
      %v839 = vmul.f32 %v805, %v827
      %v840 = vmul.f32 %v806, %v827
      %v841 = vmul.f32 %v807, %v827
      %v842 = vmul.f32 %v808, %v827
      %v843 = vmul.f32 %v809, %v827
      %v844 = vmul.f32 %v810, %v827
      %v845 = vmul.f32 %v811, %v827
      %v846 = vmul.f32 %v812, %v827
      %v847 = vmul.f32 %v813, %v827
      %v848 = vmul.f32 %v814, %v827
      %v849 = vmul.f32 %v815, %v827
      %v850 = vmul.f32 %v816, %v827
      %v851 = vmul.f32 %v817, %v827
      %v852 = vmul.f32 %v818, %v827
      %v853 = vmul.f32 %v819, %v827
      %v854 = vmul.f32 %v820, %v827
      %v855 = vmul.f32 %v821, %v827
      %v856 = vmul.f32 %v822, %v827
      %v857 = vmul.f32 %v823, %v827
      %v858 = vmul.f32 %v824, %v827
      %v859 = vmul.f32 %v825, %v827
      %v861 = vlaneseq
      %v862 = vshrl.u32 %v861, 7
      %v863 = vsub.s32 0, %v862
      %v864 = vrot.slane %v617, %v863
      %v866 = vmul.f32 %v828, %v864
      %v867 = vmul.f32 %v829, %v864
      %v868 = vmul.f32 %v830, %v864
      %v869 = vmul.f32 %v831, %v864
      %v870 = vmul.f32 %v832, %v864
      %v871 = vmul.f32 %v833, %v864
      %v872 = vmul.f32 %v834, %v864
      %v873 = vmul.f32 %v835, %v864
      %v874 = vmul.f32 %v836, %v864
      %v875 = vmul.f32 %v837, %v864
      %v876 = vmul.f32 %v838, %v864
      %v877 = vmul.f32 %v839, %v864
      %v878 = vmul.f32 %v840, %v864
      %v879 = vmul.f32 %v841, %v864
      %v880 = vmul.f32 %v842, %v864
      %v881 = vmul.f32 %v843, %v864
      %v882 = vmul.f32 %v844, %v864
      %v883 = vmul.f32 %v845, %v864
      %v884 = vmul.f32 %v846, %v864
      %v885 = vmul.f32 %v847, %v864
      %v886 = vmul.f32 %v848, %v864
      %v887 = vmul.f32 %v849, %v864
      %v888 = vmul.f32 %v850, %v864
      %v889 = vmul.f32 %v851, %v864
      %v890 = vmul.f32 %v852, %v864
      %v891 = vmul.f32 %v853, %v864
      %v892 = vmul.f32 %v854, %v864
      %v893 = vmul.f32 %v855, %v864
      %v894 = vmul.f32 %v856, %v864
      %v895 = vmul.f32 %v857, %v864
      %v896 = vmul.f32 %v858, %v864
      %v897 = vmul.f32 %v859, %v864
      %v899 = vlaneseq
      %v900 = vshrl.u32 %v899, 7
      %v901 = vsub.s32 0, %v900
      %v902 = vrot.slane %v618, %v901
      %v904 = vadd.f32 %v866, %v902
      %v905 = vadd.f32 %v867, %v902
      %v906 = vadd.f32 %v868, %v902
      %v907 = vadd.f32 %v869, %v902
      %v908 = vadd.f32 %v870, %v902
      %v909 = vadd.f32 %v871, %v902
      %v910 = vadd.f32 %v872, %v902
      %v911 = vadd.f32 %v873, %v902
      %v912 = vadd.f32 %v874, %v902
      %v913 = vadd.f32 %v875, %v902
      %v914 = vadd.f32 %v876, %v902
      %v915 = vadd.f32 %v877, %v902
      %v916 = vadd.f32 %v878, %v902
      %v917 = vadd.f32 %v879, %v902
      %v918 = vadd.f32 %v880, %v902
      %v919 = vadd.f32 %v881, %v902
      %v920 = vadd.f32 %v882, %v902
      %v921 = vadd.f32 %v883, %v902
      %v922 = vadd.f32 %v884, %v902
      %v923 = vadd.f32 %v885, %v902
      %v924 = vadd.f32 %v886, %v902
      %v925 = vadd.f32 %v887, %v902
      %v926 = vadd.f32 %v888, %v902
      %v927 = vadd.f32 %v889, %v902
      %v928 = vadd.f32 %v890, %v902
      %v929 = vadd.f32 %v891, %v902
      %v930 = vadd.f32 %v892, %v902
      %v931 = vadd.f32 %v893, %v902
      %v932 = vadd.f32 %v894, %v902
      %v933 = vadd.f32 %v895, %v902
      %v934 = vadd.f32 %v896, %v902
      %v935 = vadd.f32 %v897, %v902
      %vm936 = vcmp.ge.f32.partialorder %v904, 0.0
      %vm937 = vcmp.ge.f32.partialorder %v905, 0.0
      %vm938 = vcmp.ge.f32.partialorder %v906, 0.0
      %vm939 = vcmp.ge.f32.partialorder %v907, 0.0
      %vm940 = vcmp.ge.f32.partialorder %v908, 0.0
      %vm941 = vcmp.ge.f32.partialorder %v909, 0.0
      %vm942 = vcmp.ge.f32.partialorder %v910, 0.0
      %vm943 = vcmp.ge.f32.partialorder %v911, 0.0
      %vm944 = vcmp.ge.f32.partialorder %v912, 0.0
      %vm945 = vcmp.ge.f32.partialorder %v913, 0.0
      %vm946 = vcmp.ge.f32.partialorder %v914, 0.0
      %vm947 = vcmp.ge.f32.partialorder %v915, 0.0
      %vm948 = vcmp.ge.f32.partialorder %v916, 0.0
      %vm949 = vcmp.ge.f32.partialorder %v917, 0.0
      %vm950 = vcmp.ge.f32.partialorder %v918, 0.0
      %vm951 = vcmp.ge.f32.partialorder %v919, 0.0
      %vm952 = vcmp.ge.f32.partialorder %v920, 0.0
      %vm953 = vcmp.ge.f32.partialorder %v921, 0.0
      %vm954 = vcmp.ge.f32.partialorder %v922, 0.0
      %vm955 = vcmp.ge.f32.partialorder %v923, 0.0
      %vm956 = vcmp.ge.f32.partialorder %v924, 0.0
      %vm957 = vcmp.ge.f32.partialorder %v925, 0.0
      %vm958 = vcmp.ge.f32.partialorder %v926, 0.0
      %vm959 = vcmp.ge.f32.partialorder %v927, 0.0
      %vm960 = vcmp.ge.f32.partialorder %v928, 0.0
      %vm961 = vcmp.ge.f32.partialorder %v929, 0.0
      %vm962 = vcmp.ge.f32.partialorder %v930, 0.0
      %vm963 = vcmp.ge.f32.partialorder %v931, 0.0
      %vm964 = vcmp.ge.f32.partialorder %v932, 0.0
      %vm965 = vcmp.ge.f32.partialorder %v933, 0.0
      %vm966 = vcmp.ge.f32.partialorder %v934, 0.0
      %vm967 = vcmp.ge.f32.partialorder %v935, 0.0
      %v968 = vmul.f32 %v904, 0.2
      %v969 = vmul.f32 %v905, 0.2
      %v970 = vmul.f32 %v906, 0.2
      %v971 = vmul.f32 %v907, 0.2
      %v972 = vmul.f32 %v908, 0.2
      %v973 = vmul.f32 %v909, 0.2
      %v974 = vmul.f32 %v910, 0.2
      %v975 = vmul.f32 %v911, 0.2
      %v976 = vmul.f32 %v912, 0.2
      %v977 = vmul.f32 %v913, 0.2
      %v978 = vmul.f32 %v914, 0.2
      %v979 = vmul.f32 %v915, 0.2
      %v980 = vmul.f32 %v916, 0.2
      %v981 = vmul.f32 %v917, 0.2
      %v982 = vmul.f32 %v918, 0.2
      %v983 = vmul.f32 %v919, 0.2
      %v984 = vmul.f32 %v920, 0.2
      %v985 = vmul.f32 %v921, 0.2
      %v986 = vmul.f32 %v922, 0.2
      %v987 = vmul.f32 %v923, 0.2
      %v988 = vmul.f32 %v924, 0.2
      %v989 = vmul.f32 %v925, 0.2
      %v990 = vmul.f32 %v926, 0.2
      %v991 = vmul.f32 %v927, 0.2
      %v992 = vmul.f32 %v928, 0.2
      %v993 = vmul.f32 %v929, 0.2
      %v994 = vmul.f32 %v930, 0.2
      %v995 = vmul.f32 %v931, 0.2
      %v996 = vmul.f32 %v932, 0.2
      %v997 = vmul.f32 %v933, 0.2
      %v998 = vmul.f32 %v934, 0.2
      %v999 = vmul.f32 %v935, 0.2
      %v1000 = vsel %vm936, %v904, %v968
      %v1001 = vsel %vm937, %v905, %v969
      %v1002 = vsel %vm938, %v906, %v970
      %v1003 = vsel %vm939, %v907, %v971
      %v1004 = vsel %vm940, %v908, %v972
      %v1005 = vsel %vm941, %v909, %v973
      %v1006 = vsel %vm942, %v910, %v974
      %v1007 = vsel %vm943, %v911, %v975
      %v1008 = vsel %vm944, %v912, %v976
      %v1009 = vsel %vm945, %v913, %v977
      %v1010 = vsel %vm946, %v914, %v978
      %v1011 = vsel %vm947, %v915, %v979
      %v1012 = vsel %vm948, %v916, %v980
      %v1013 = vsel %vm949, %v917, %v981
      %v1014 = vsel %vm950, %v918, %v982
      %v1015 = vsel %vm951, %v919, %v983
      %v1016 = vsel %vm952, %v920, %v984
      %v1017 = vsel %vm953, %v921, %v985
      %v1018 = vsel %vm954, %v922, %v986
      %v1019 = vsel %vm955, %v923, %v987
      %v1020 = vsel %vm956, %v924, %v988
      %v1021 = vsel %vm957, %v925, %v989
      %v1022 = vsel %vm958, %v926, %v990
      %v1023 = vsel %vm959, %v927, %v991
      %v1024 = vsel %vm960, %v928, %v992
      %v1025 = vsel %vm961, %v929, %v993
      %v1026 = vsel %vm962, %v930, %v994
      %v1027 = vsel %vm963, %v931, %v995
      %v1028 = vsel %vm964, %v932, %v996
      %v1029 = vsel %vm965, %v933, %v997
      %v1030 = vsel %vm966, %v934, %v998
      %v1031 = vsel %vm967, %v935, %v999
      %v1032 = vpack.c.bf16 %v1001, %v1000
      %v1033 = vpack.c.bf16 %v1003, %v1002
      %v1034 = vpack.c.bf16 %v1005, %v1004
      %v1035 = vpack.c.bf16 %v1007, %v1006
      %v1036 = vpack.c.bf16 %v1009, %v1008
      %v1037 = vpack.c.bf16 %v1011, %v1010
      %v1038 = vpack.c.bf16 %v1013, %v1012
      %v1039 = vpack.c.bf16 %v1015, %v1014
      %v1040 = vpack.c.bf16 %v1017, %v1016
      %v1041 = vpack.c.bf16 %v1019, %v1018
      %v1042 = vpack.c.bf16 %v1021, %v1020
      %v1043 = vpack.c.bf16 %v1023, %v1022
      %v1044 = vpack.c.bf16 %v1025, %v1024
      %v1045 = vpack.c.bf16 %v1027, %v1026
      %v1046 = vpack.c.bf16 %v1029, %v1028
      %v1047 = vpack.c.bf16 %v1031, %v1030
      %1048 = vst.msk [vmem:[#allocation2 + $0x10] sm:$0xff] %vm415, %v1032
      %1049 = vst.msk [vmem:[#allocation2 + $0x18] sm:$0xff] %vm415, %v1033
      %1050 = vst.msk [vmem:[#allocation2 + $0x20] sm:$0xff] %vm415, %v1034
      %1051 = vst.msk [vmem:[#allocation2 + $0x28] sm:$0xff] %vm415, %v1035
      %1052 = vst.msk [vmem:[#allocation2 + $0x30] sm:$0xff] %vm415, %v1036
      %1053 = vst.msk [vmem:[#allocation2 + $0x38] sm:$0xff] %vm415, %v1037
      %1054 = vst.msk [vmem:[#allocation2 + $0x40] sm:$0xff] %vm415, %v1038
      %1055 = vst.msk [vmem:[#allocation2 + $0x48] sm:$0xff] %vm415, %v1039
      %1056 = vst.msk [vmem:[#allocation2 + $0x50] sm:$0xff] %vm415, %v1040
      %1057 = vst.msk [vmem:[#allocation2 + $0x58] sm:$0xff] %vm415, %v1041
      %1058 = vst.msk [vmem:[#allocation2 + $0x60] sm:$0xff] %vm415, %v1042
      %1059 = vst.msk [vmem:[#allocation2 + $0x68] sm:$0xff] %vm415, %v1043
      %1060 = vst.msk [vmem:[#allocation2 + $0x70] sm:$0xff] %vm415, %v1044
      %1061 = vst.msk [vmem:[#allocation2 + $0x78] sm:$0xff] %vm415, %v1045
      %1062 = vst.msk [vmem:[#allocation2 + $0x80] sm:$0xff] %vm415, %v1046
      %1063 = vst.msk [vmem:[#allocation2 + $0x88] sm:$0xff] %vm415, %v1047
      %v1064 = vld [vmem:[%s1] sm:$0xf]
      %v1065 = vld [vmem:[%s1 + $0x4] sm:$0xf]
      %v1066 = vld [vmem:[%s1 + $0x8] sm:$0xf]
      %v1067 = vld [vmem:[%s1 + $0xc] sm:$0xf]
      %v1068 = vld [vmem:[%s1 + $0x10] sm:$0xf]
      %v1069 = vld [vmem:[%s1 + $0x14] sm:$0xf]
      %v1070 = vld [vmem:[%s1 + $0x18] sm:$0xf]
      %v1071 = vld [vmem:[%s1 + $0x1c] sm:$0xf]
      %v1072 = vld [vmem:[%s1 + $0x20] sm:$0xf]
      %v1073 = vld [vmem:[%s1 + $0x24] sm:$0xf]
      %v1074 = vld [vmem:[%s1 + $0x28] sm:$0xf]
      %v1075 = vld [vmem:[%s1 + $0x2c] sm:$0xf]
      %v1076 = vld [vmem:[%s1 + $0x30] sm:$0xf]
      %v1077 = vld [vmem:[%s1 + $0x34] sm:$0xf]
      %v1078 = vld [vmem:[%s1 + $0x38] sm:$0xf]
      %v1079 = vld [vmem:[%s1 + $0x3c] sm:$0xf]
      %v1080 = vld [vmem:[%s1 + $0x40] sm:$0xf]
      %v1081 = vld [vmem:[%s1 + $0x44] sm:$0xf]
      %v1082 = vld [vmem:[%s1 + $0x48] sm:$0xf]
      %v1083 = vld [vmem:[%s1 + $0x4c] sm:$0xf]
      %v1084 = vld [vmem:[%s1 + $0x50] sm:$0xf]
      %v1085 = vld [vmem:[%s1 + $0x54] sm:$0xf]
      %v1086 = vld [vmem:[%s1 + $0x58] sm:$0xf]
      %v1087 = vld [vmem:[%s1 + $0x5c] sm:$0xf]
      %v1088 = vld [vmem:[%s1 + $0x60] sm:$0xf]
      %v1089 = vld [vmem:[%s1 + $0x64] sm:$0xf]
      %v1090 = vld [vmem:[%s1 + $0x68] sm:$0xf]
      %v1091 = vld [vmem:[%s1 + $0x6c] sm:$0xf]
      %v1092 = vld [vmem:[%s1 + $0x70] sm:$0xf]
      %v1093 = vld [vmem:[%s1 + $0x74] sm:$0xf]
      %v1094 = vld [vmem:[%s1 + $0x78] sm:$0xf]
      %v1095 = vld [vmem:[%s1 + $0x7c] sm:$0xf]
      %s1096 = scalar_lea.vmem %s1, 128
      %v1097 = vld [vmem:[%s1096] sm:$0xf]
      %v1098 = vld [vmem:[%s1096 + $0x4] sm:$0xf]
      %v1099 = vld [vmem:[%s1096 + $0x8] sm:$0xf]
      %v1100 = vld [vmem:[%s1096 + $0xc] sm:$0xf]
      %v1101 = vld [vmem:[%s1096 + $0x10] sm:$0xf]
      %v1102 = vld [vmem:[%s1096 + $0x14] sm:$0xf]
      %v1103 = vld [vmem:[%s1096 + $0x18] sm:$0xf]
      %v1104 = vld [vmem:[%s1096 + $0x1c] sm:$0xf]
      %v1105 = vld [vmem:[%s1096 + $0x20] sm:$0xf]
      %v1106 = vld [vmem:[%s1096 + $0x24] sm:$0xf]
      %v1107 = vld [vmem:[%s1096 + $0x28] sm:$0xf]
      %v1108 = vld [vmem:[%s1096 + $0x2c] sm:$0xf]
      %v1109 = vld [vmem:[%s1096 + $0x30] sm:$0xf]
      %v1110 = vld [vmem:[%s1096 + $0x34] sm:$0xf]
      %v1111 = vld [vmem:[%s1096 + $0x38] sm:$0xf]
      %v1112 = vld [vmem:[%s1096 + $0x3c] sm:$0xf]
      %v1113 = vld [vmem:[%s1096 + $0x40] sm:$0xf]
      %v1114 = vld [vmem:[%s1096 + $0x44] sm:$0xf]
      %v1115 = vld [vmem:[%s1096 + $0x48] sm:$0xf]
      %v1116 = vld [vmem:[%s1096 + $0x4c] sm:$0xf]
      %v1117 = vld [vmem:[%s1096 + $0x50] sm:$0xf]
      %v1118 = vld [vmem:[%s1096 + $0x54] sm:$0xf]
      %v1119 = vld [vmem:[%s1096 + $0x58] sm:$0xf]
      %v1120 = vld [vmem:[%s1096 + $0x5c] sm:$0xf]
      %v1121 = vld [vmem:[%s1096 + $0x60] sm:$0xf]
      %v1122 = vld [vmem:[%s1096 + $0x64] sm:$0xf]
      %v1123 = vld [vmem:[%s1096 + $0x68] sm:$0xf]
      %v1124 = vld [vmem:[%s1096 + $0x6c] sm:$0xf]
      %v1125 = vld [vmem:[%s1096 + $0x70] sm:$0xf]
      %v1126 = vld [vmem:[%s1096 + $0x74] sm:$0xf]
      %v1127 = vld [vmem:[%s1096 + $0x78] sm:$0xf]
      %v1128 = vld [vmem:[%s1096 + $0x7c] sm:$0xf]
      %v1129 = vld [vmem:[#allocation2] sm:$0x80]
      %v1130 = vld [vmem:[#allocation2 + $0x8] sm:$0xff]
      %v1131 = vld [vmem:[#allocation2 + $0x10] sm:$0xff]
      %v1132 = vld [vmem:[#allocation2 + $0x18] sm:$0xff]
      %v1133 = vld [vmem:[#allocation2 + $0x20] sm:$0xff]
      %v1134 = vld [vmem:[#allocation2 + $0x28] sm:$0xff]
      %v1135 = vld [vmem:[#allocation2 + $0x30] sm:$0xff]
      %v1136 = vld [vmem:[#allocation2 + $0x38] sm:$0xff]
      %v1137 = vld [vmem:[#allocation2 + $0x40] sm:$0xff]
      %v1138 = vld [vmem:[#allocation2 + $0x48] sm:$0xff]
      %v1139 = vld [vmem:[#allocation2 + $0x50] sm:$0xff]
      %v1140 = vld [vmem:[#allocation2 + $0x58] sm:$0xff]
      %v1141 = vld [vmem:[#allocation2 + $0x60] sm:$0xff]
      %v1142 = vld [vmem:[#allocation2 + $0x68] sm:$0xff]
      %v1143 = vld [vmem:[#allocation2 + $0x70] sm:$0xff]
      %v1144 = vld [vmem:[#allocation2 + $0x78] sm:$0xff]
      %v1145 = vld [vmem:[#allocation2 + $0x80] sm:$0xff]
      %1147 = vset.pattern.permute.xlu0 0
      %1148 = vperm.xlu0 %1147, %v1064
      %v1149 = vpop.permute.xlu0 %1148
      %v1152 = vunpack.c.l.s4 839922192
      %v1153 = vunpack.c.0.s8 %v1152
      %v1154 = vlaneseq
      %v1155 = vshrl.u32 %v1154, 7
      %v1156 = vsub.s32 %v1153, %v1155
      %v1157 = vrot.slane %v1149, %v1156
      %1159 = vset.pattern.permute.xlu0 0
      %1160 = vperm.xlu0 %1159, %v1065
      %v1161 = vpop.permute.xlu0 %1160
      %v1164 = vunpack.c.l.s4 839922192
      %v1165 = vunpack.c.0.s8 %v1164
      %v1166 = vlaneseq
      %v1167 = vshrl.u32 %v1166, 7
      %v1168 = vsub.s32 %v1165, %v1167
      %v1169 = vrot.slane %v1161, %v1168
      %1171 = vset.pattern.permute.xlu0 0
      %1172 = vperm.xlu0 %1171, %v1066
      %v1173 = vpop.permute.xlu0 %1172
      %v1176 = vunpack.c.l.s4 839922192
      %v1177 = vunpack.c.0.s8 %v1176
      %v1178 = vlaneseq
      %v1179 = vshrl.u32 %v1178, 7
      %v1180 = vsub.s32 %v1177, %v1179
      %v1181 = vrot.slane %v1173, %v1180
      %1183 = vset.pattern.permute.xlu0 0
      %1184 = vperm.xlu0 %1183, %v1067
      %v1185 = vpop.permute.xlu0 %1184
      %v1188 = vunpack.c.l.s4 839922192
      %v1189 = vunpack.c.0.s8 %v1188
      %v1190 = vlaneseq
      %v1191 = vshrl.u32 %v1190, 7
      %v1192 = vsub.s32 %v1189, %v1191
      %v1193 = vrot.slane %v1185, %v1192
      %1195 = vset.pattern.permute.xlu0 0
      %1196 = vperm.xlu0 %1195, %v1068
      %v1197 = vpop.permute.xlu0 %1196
      %v1200 = vunpack.c.l.s4 839922192
      %v1201 = vunpack.c.0.s8 %v1200
      %v1202 = vlaneseq
      %v1203 = vshrl.u32 %v1202, 7
      %v1204 = vsub.s32 %v1201, %v1203
      %v1205 = vrot.slane %v1197, %v1204
      %1207 = vset.pattern.permute.xlu0 0
      %1208 = vperm.xlu0 %1207, %v1069
      %v1209 = vpop.permute.xlu0 %1208
      %v1212 = vunpack.c.l.s4 839922192
      %v1213 = vunpack.c.0.s8 %v1212
      %v1214 = vlaneseq
      %v1215 = vshrl.u32 %v1214, 7
      %v1216 = vsub.s32 %v1213, %v1215
      %v1217 = vrot.slane %v1209, %v1216
      %1219 = vset.pattern.permute.xlu0 0
      %1220 = vperm.xlu0 %1219, %v1070
      %v1221 = vpop.permute.xlu0 %1220
      %v1224 = vunpack.c.l.s4 839922192
      %v1225 = vunpack.c.0.s8 %v1224
      %v1226 = vlaneseq
      %v1227 = vshrl.u32 %v1226, 7
      %v1228 = vsub.s32 %v1225, %v1227
      %v1229 = vrot.slane %v1221, %v1228
      %1231 = vset.pattern.permute.xlu0 0
      %1232 = vperm.xlu0 %1231, %v1071
      %v1233 = vpop.permute.xlu0 %1232
      %v1236 = vunpack.c.l.s4 839922192
      %v1237 = vunpack.c.0.s8 %v1236
      %v1238 = vlaneseq
      %v1239 = vshrl.u32 %v1238, 7
      %v1240 = vsub.s32 %v1237, %v1239
      %v1241 = vrot.slane %v1233, %v1240
      %1243 = vset.pattern.permute.xlu0 0
      %1244 = vperm.xlu0 %1243, %v1072
      %v1245 = vpop.permute.xlu0 %1244
      %v1248 = vunpack.c.l.s4 839922192
      %v1249 = vunpack.c.0.s8 %v1248
      %v1250 = vlaneseq
      %v1251 = vshrl.u32 %v1250, 7
      %v1252 = vsub.s32 %v1249, %v1251
      %v1253 = vrot.slane %v1245, %v1252
      %1255 = vset.pattern.permute.xlu0 0
      %1256 = vperm.xlu0 %1255, %v1073
      %v1257 = vpop.permute.xlu0 %1256
      %v1260 = vunpack.c.l.s4 839922192
      %v1261 = vunpack.c.0.s8 %v1260
      %v1262 = vlaneseq
      %v1263 = vshrl.u32 %v1262, 7
      %v1264 = vsub.s32 %v1261, %v1263
      %v1265 = vrot.slane %v1257, %v1264
      %1267 = vset.pattern.permute.xlu0 0
      %1268 = vperm.xlu0 %1267, %v1074
      %v1269 = vpop.permute.xlu0 %1268
      %v1272 = vunpack.c.l.s4 839922192
      %v1273 = vunpack.c.0.s8 %v1272
      %v1274 = vlaneseq
      %v1275 = vshrl.u32 %v1274, 7
      %v1276 = vsub.s32 %v1273, %v1275
      %v1277 = vrot.slane %v1269, %v1276
      %1279 = vset.pattern.permute.xlu0 0
      %1280 = vperm.xlu0 %1279, %v1075
      %v1281 = vpop.permute.xlu0 %1280
      %v1284 = vunpack.c.l.s4 839922192
      %v1285 = vunpack.c.0.s8 %v1284
      %v1286 = vlaneseq
      %v1287 = vshrl.u32 %v1286, 7
      %v1288 = vsub.s32 %v1285, %v1287
      %v1289 = vrot.slane %v1281, %v1288
      %1291 = vset.pattern.permute.xlu0 0
      %1292 = vperm.xlu0 %1291, %v1076
      %v1293 = vpop.permute.xlu0 %1292
      %v1296 = vunpack.c.l.s4 839922192
      %v1297 = vunpack.c.0.s8 %v1296
      %v1298 = vlaneseq
      %v1299 = vshrl.u32 %v1298, 7
      %v1300 = vsub.s32 %v1297, %v1299
      %v1301 = vrot.slane %v1293, %v1300
      %1303 = vset.pattern.permute.xlu0 0
      %1304 = vperm.xlu0 %1303, %v1077
      %v1305 = vpop.permute.xlu0 %1304
      %v1308 = vunpack.c.l.s4 839922192
      %v1309 = vunpack.c.0.s8 %v1308
      %v1310 = vlaneseq
      %v1311 = vshrl.u32 %v1310, 7
      %v1312 = vsub.s32 %v1309, %v1311
      %v1313 = vrot.slane %v1305, %v1312
      %1315 = vset.pattern.permute.xlu0 0
      %1316 = vperm.xlu0 %1315, %v1078
      %v1317 = vpop.permute.xlu0 %1316
      %v1320 = vunpack.c.l.s4 839922192
      %v1321 = vunpack.c.0.s8 %v1320
      %v1322 = vlaneseq
      %v1323 = vshrl.u32 %v1322, 7
      %v1324 = vsub.s32 %v1321, %v1323
      %v1325 = vrot.slane %v1317, %v1324
      %1327 = vset.pattern.permute.xlu0 0
      %1328 = vperm.xlu0 %1327, %v1079
      %v1329 = vpop.permute.xlu0 %1328
      %v1332 = vunpack.c.l.s4 839922192
      %v1333 = vunpack.c.0.s8 %v1332
      %v1334 = vlaneseq
      %v1335 = vshrl.u32 %v1334, 7
      %v1336 = vsub.s32 %v1333, %v1335
      %v1337 = vrot.slane %v1329, %v1336
      %1339 = vset.pattern.permute.xlu0 0
      %1340 = vperm.xlu0 %1339, %v1080
      %v1341 = vpop.permute.xlu0 %1340
      %v1344 = vunpack.c.l.s4 839922192
      %v1345 = vunpack.c.0.s8 %v1344
      %v1346 = vlaneseq
      %v1347 = vshrl.u32 %v1346, 7
      %v1348 = vsub.s32 %v1345, %v1347
      %v1349 = vrot.slane %v1341, %v1348
      %1351 = vset.pattern.permute.xlu0 0
      %1352 = vperm.xlu0 %1351, %v1081
      %v1353 = vpop.permute.xlu0 %1352
      %v1356 = vunpack.c.l.s4 839922192
      %v1357 = vunpack.c.0.s8 %v1356
      %v1358 = vlaneseq
      %v1359 = vshrl.u32 %v1358, 7
      %v1360 = vsub.s32 %v1357, %v1359
      %v1361 = vrot.slane %v1353, %v1360
      %1363 = vset.pattern.permute.xlu0 0
      %1364 = vperm.xlu0 %1363, %v1082
      %v1365 = vpop.permute.xlu0 %1364
      %v1368 = vunpack.c.l.s4 839922192
      %v1369 = vunpack.c.0.s8 %v1368
      %v1370 = vlaneseq
      %v1371 = vshrl.u32 %v1370, 7
      %v1372 = vsub.s32 %v1369, %v1371
      %v1373 = vrot.slane %v1365, %v1372
      %1375 = vset.pattern.permute.xlu0 0
      %1376 = vperm.xlu0 %1375, %v1083
      %v1377 = vpop.permute.xlu0 %1376
      %v1380 = vunpack.c.l.s4 839922192
      %v1381 = vunpack.c.0.s8 %v1380
      %v1382 = vlaneseq
      %v1383 = vshrl.u32 %v1382, 7
      %v1384 = vsub.s32 %v1381, %v1383
      %v1385 = vrot.slane %v1377, %v1384
      %1387 = vset.pattern.permute.xlu0 0
      %1388 = vperm.xlu0 %1387, %v1084
      %v1389 = vpop.permute.xlu0 %1388
      %v1392 = vunpack.c.l.s4 839922192
      %v1393 = vunpack.c.0.s8 %v1392
      %v1394 = vlaneseq
      %v1395 = vshrl.u32 %v1394, 7
      %v1396 = vsub.s32 %v1393, %v1395
      %v1397 = vrot.slane %v1389, %v1396
      %1399 = vset.pattern.permute.xlu0 0
      %1400 = vperm.xlu0 %1399, %v1085
      %v1401 = vpop.permute.xlu0 %1400
      %v1404 = vunpack.c.l.s4 839922192
      %v1405 = vunpack.c.0.s8 %v1404
      %v1406 = vlaneseq
      %v1407 = vshrl.u32 %v1406, 7
      %v1408 = vsub.s32 %v1405, %v1407
      %v1409 = vrot.slane %v1401, %v1408
      %1411 = vset.pattern.permute.xlu0 0
      %1412 = vperm.xlu0 %1411, %v1086
      %v1413 = vpop.permute.xlu0 %1412
      %v1416 = vunpack.c.l.s4 839922192
      %v1417 = vunpack.c.0.s8 %v1416
      %v1418 = vlaneseq
      %v1419 = vshrl.u32 %v1418, 7
      %v1420 = vsub.s32 %v1417, %v1419
      %v1421 = vrot.slane %v1413, %v1420
      %1423 = vset.pattern.permute.xlu0 0
      %1424 = vperm.xlu0 %1423, %v1087
      %v1425 = vpop.permute.xlu0 %1424
      %v1428 = vunpack.c.l.s4 839922192
      %v1429 = vunpack.c.0.s8 %v1428
      %v1430 = vlaneseq
      %v1431 = vshrl.u32 %v1430, 7
      %v1432 = vsub.s32 %v1429, %v1431
      %v1433 = vrot.slane %v1425, %v1432
      %1435 = vset.pattern.permute.xlu0 0
      %1436 = vperm.xlu0 %1435, %v1088
      %v1437 = vpop.permute.xlu0 %1436
      %v1440 = vunpack.c.l.s4 839922192
      %v1441 = vunpack.c.0.s8 %v1440
      %v1442 = vlaneseq
      %v1443 = vshrl.u32 %v1442, 7
      %v1444 = vsub.s32 %v1441, %v1443
      %v1445 = vrot.slane %v1437, %v1444
      %1447 = vset.pattern.permute.xlu0 0
      %1448 = vperm.xlu0 %1447, %v1089
      %v1449 = vpop.permute.xlu0 %1448
      %v1452 = vunpack.c.l.s4 839922192
      %v1453 = vunpack.c.0.s8 %v1452
      %v1454 = vlaneseq
      %v1455 = vshrl.u32 %v1454, 7
      %v1456 = vsub.s32 %v1453, %v1455
      %v1457 = vrot.slane %v1449, %v1456
      %1459 = vset.pattern.permute.xlu0 0
      %1460 = vperm.xlu0 %1459, %v1090
      %v1461 = vpop.permute.xlu0 %1460
      %v1464 = vunpack.c.l.s4 839922192
      %v1465 = vunpack.c.0.s8 %v1464
      %v1466 = vlaneseq
      %v1467 = vshrl.u32 %v1466, 7
      %v1468 = vsub.s32 %v1465, %v1467
      %v1469 = vrot.slane %v1461, %v1468
      %1471 = vset.pattern.permute.xlu0 0
      %1472 = vperm.xlu0 %1471, %v1091
      %v1473 = vpop.permute.xlu0 %1472
      %v1476 = vunpack.c.l.s4 839922192
      %v1477 = vunpack.c.0.s8 %v1476
      %v1478 = vlaneseq
      %v1479 = vshrl.u32 %v1478, 7
      %v1480 = vsub.s32 %v1477, %v1479
      %v1481 = vrot.slane %v1473, %v1480
      %1483 = vset.pattern.permute.xlu0 0
      %1484 = vperm.xlu0 %1483, %v1092
      %v1485 = vpop.permute.xlu0 %1484
      %v1488 = vunpack.c.l.s4 839922192
      %v1489 = vunpack.c.0.s8 %v1488
      %v1490 = vlaneseq
      %v1491 = vshrl.u32 %v1490, 7
      %v1492 = vsub.s32 %v1489, %v1491
      %v1493 = vrot.slane %v1485, %v1492
      %1495 = vset.pattern.permute.xlu0 0
      %1496 = vperm.xlu0 %1495, %v1093
      %v1497 = vpop.permute.xlu0 %1496
      %v1500 = vunpack.c.l.s4 839922192
      %v1501 = vunpack.c.0.s8 %v1500
      %v1502 = vlaneseq
      %v1503 = vshrl.u32 %v1502, 7
      %v1504 = vsub.s32 %v1501, %v1503
      %v1505 = vrot.slane %v1497, %v1504
      %1507 = vset.pattern.permute.xlu0 0
      %1508 = vperm.xlu0 %1507, %v1094
      %v1509 = vpop.permute.xlu0 %1508
      %v1512 = vunpack.c.l.s4 839922192
      %v1513 = vunpack.c.0.s8 %v1512
      %v1514 = vlaneseq
      %v1515 = vshrl.u32 %v1514, 7
      %v1516 = vsub.s32 %v1513, %v1515
      %v1517 = vrot.slane %v1509, %v1516
      %1519 = vset.pattern.permute.xlu0 0
      %1520 = vperm.xlu0 %1519, %v1095
      %v1521 = vpop.permute.xlu0 %1520
      %v1524 = vunpack.c.l.s4 839922192
      %v1525 = vunpack.c.0.s8 %v1524
      %v1526 = vlaneseq
      %v1527 = vshrl.u32 %v1526, 7
      %v1528 = vsub.s32 %v1525, %v1527
      %v1529 = vrot.slane %v1521, %v1528
      %v1562 = vunpack.c.l.b16 %v1157
      %v1563 = vunpack.c.l.b16 %v1169
      %v1564 = vunpack.c.l.b16 %v1181
      %v1565 = vunpack.c.l.b16 %v1193
      %v1566 = vunpack.c.l.b16 %v1205
      %v1567 = vunpack.c.l.b16 %v1217
      %v1568 = vunpack.c.l.b16 %v1229
      %v1569 = vunpack.c.l.b16 %v1241
      %v1570 = vunpack.c.l.b16 %v1253
      %v1571 = vunpack.c.l.b16 %v1265
      %v1572 = vunpack.c.l.b16 %v1277
      %v1573 = vunpack.c.l.b16 %v1289
      %v1574 = vunpack.c.l.b16 %v1301
      %v1575 = vunpack.c.l.b16 %v1313
      %v1576 = vunpack.c.l.b16 %v1325
      %v1577 = vunpack.c.l.b16 %v1337
      %v1578 = vunpack.c.l.b16 %v1349
      %v1579 = vunpack.c.l.b16 %v1361
      %v1580 = vunpack.c.l.b16 %v1373
      %v1581 = vunpack.c.l.b16 %v1385
      %v1582 = vunpack.c.l.b16 %v1397
      %v1583 = vunpack.c.l.b16 %v1409
      %v1584 = vunpack.c.l.b16 %v1421
      %v1585 = vunpack.c.l.b16 %v1433
      %v1586 = vunpack.c.l.b16 %v1445
      %v1587 = vunpack.c.l.b16 %v1457
      %v1588 = vunpack.c.l.b16 %v1469
      %v1589 = vunpack.c.l.b16 %v1481
      %v1590 = vunpack.c.l.b16 %v1493
      %v1591 = vunpack.c.l.b16 %v1505
      %v1592 = vunpack.c.l.b16 %v1517
      %v1593 = vunpack.c.l.b16 %v1529
      %v1594 = vpack.c.b16 %v1563, %v1562
      %v1595 = vpack.c.b16 %v1565, %v1564
      %v1596 = vpack.c.b16 %v1567, %v1566
      %v1597 = vpack.c.b16 %v1569, %v1568
      %v1598 = vpack.c.b16 %v1571, %v1570
      %v1599 = vpack.c.b16 %v1573, %v1572
      %v1600 = vpack.c.b16 %v1575, %v1574
      %v1601 = vpack.c.b16 %v1577, %v1576
      %v1602 = vpack.c.b16 %v1579, %v1578
      %v1603 = vpack.c.b16 %v1581, %v1580
      %v1604 = vpack.c.b16 %v1583, %v1582
      %v1605 = vpack.c.b16 %v1585, %v1584
      %v1606 = vpack.c.b16 %v1587, %v1586
      %v1607 = vpack.c.b16 %v1589, %v1588
      %v1608 = vpack.c.b16 %v1591, %v1590
      %v1609 = vpack.c.b16 %v1593, %v1592
      %vm1610 = vsmask.f32 7424
      %v1612 = vshll.u32 %v1594, 16
      %v1614 = vrot.slane %v1612, 1
      %v1615 = vshrl.u32 %v1594, 16
      %v1617 = vor.u32 %v1615, %v1614
      %v1619 = vshll.u32 %v1595, 16
      %v1621 = vrot.slane %v1619, 1
      %v1622 = vsel %vm1610, %v1617, %v1621
      %v1623 = vshrl.u32 %v1595, 16
      %v1625 = vor.u32 %v1623, %v1621
      %v1627 = vshll.u32 %v1596, 16
      %v1629 = vrot.slane %v1627, 1
      %v1630 = vsel %vm1610, %v1625, %v1629
      %v1631 = vshrl.u32 %v1596, 16
      %v1633 = vor.u32 %v1631, %v1629
      %v1635 = vshll.u32 %v1597, 16
      %v1637 = vrot.slane %v1635, 1
      %v1638 = vsel %vm1610, %v1633, %v1637
      %v1639 = vshrl.u32 %v1597, 16
      %v1641 = vor.u32 %v1639, %v1637
      %v1643 = vshll.u32 %v1598, 16
      %v1645 = vrot.slane %v1643, 1
      %v1646 = vsel %vm1610, %v1641, %v1645
      %v1647 = vshrl.u32 %v1598, 16
      %v1649 = vor.u32 %v1647, %v1645
      %v1651 = vshll.u32 %v1599, 16
      %v1653 = vrot.slane %v1651, 1
      %v1654 = vsel %vm1610, %v1649, %v1653
      %v1655 = vshrl.u32 %v1599, 16
      %v1657 = vor.u32 %v1655, %v1653
      %v1659 = vshll.u32 %v1600, 16
      %v1661 = vrot.slane %v1659, 1
      %v1662 = vsel %vm1610, %v1657, %v1661
      %v1663 = vshrl.u32 %v1600, 16
      %v1665 = vor.u32 %v1663, %v1661
      %v1667 = vshll.u32 %v1601, 16
      %v1669 = vrot.slane %v1667, 1
      %v1670 = vsel %vm1610, %v1665, %v1669
      %v1671 = vshrl.u32 %v1601, 16
      %v1673 = vor.u32 %v1671, %v1669
      %v1675 = vshll.u32 %v1602, 16
      %v1677 = vrot.slane %v1675, 1
      %v1678 = vsel %vm1610, %v1673, %v1677
      %v1679 = vshrl.u32 %v1602, 16
      %v1681 = vor.u32 %v1679, %v1677
      %v1683 = vshll.u32 %v1603, 16
      %v1685 = vrot.slane %v1683, 1
      %v1686 = vsel %vm1610, %v1681, %v1685
      %v1687 = vshrl.u32 %v1603, 16
      %v1689 = vor.u32 %v1687, %v1685
      %v1691 = vshll.u32 %v1604, 16
      %v1693 = vrot.slane %v1691, 1
      %v1694 = vsel %vm1610, %v1689, %v1693
      %v1695 = vshrl.u32 %v1604, 16
      %v1697 = vor.u32 %v1695, %v1693
      %v1699 = vshll.u32 %v1605, 16
      %v1701 = vrot.slane %v1699, 1
      %v1702 = vsel %vm1610, %v1697, %v1701
      %v1703 = vshrl.u32 %v1605, 16
      %v1705 = vor.u32 %v1703, %v1701
      %v1707 = vshll.u32 %v1606, 16
      %v1709 = vrot.slane %v1707, 1
      %v1710 = vsel %vm1610, %v1705, %v1709
      %v1711 = vshrl.u32 %v1606, 16
      %v1713 = vor.u32 %v1711, %v1709
      %v1715 = vshll.u32 %v1607, 16
      %v1717 = vrot.slane %v1715, 1
      %v1718 = vsel %vm1610, %v1713, %v1717
      %v1719 = vshrl.u32 %v1607, 16
      %v1721 = vor.u32 %v1719, %v1717
      %v1723 = vshll.u32 %v1608, 16
      %v1725 = vrot.slane %v1723, 1
      %v1726 = vsel %vm1610, %v1721, %v1725
      %v1727 = vshrl.u32 %v1608, 16
      %v1729 = vor.u32 %v1727, %v1725
      %v1731 = vshll.u32 %v1609, 16
      %v1733 = vrot.slane %v1731, 1
      %v1734 = vsel %vm1610, %v1729, %v1733
      %v1735 = vshrl.u32 %v1609, 16
      %v1737 = vor.u32 %v1735, %v1733
      %v1755 = vmul.bf16 %v1129, %v1614
      %v1756 = vmul.bf16 %v1130, %v1622
      %v1757 = vmul.bf16 %v1131, %v1630
      %v1758 = vmul.bf16 %v1132, %v1638
      %v1759 = vmul.bf16 %v1133, %v1646
      %v1760 = vmul.bf16 %v1134, %v1654
      %v1761 = vmul.bf16 %v1135, %v1662
      %v1762 = vmul.bf16 %v1136, %v1670
      %v1763 = vmul.bf16 %v1137, %v1678
      %v1764 = vmul.bf16 %v1138, %v1686
      %v1765 = vmul.bf16 %v1139, %v1694
      %v1766 = vmul.bf16 %v1140, %v1702
      %v1767 = vmul.bf16 %v1141, %v1710
      %v1768 = vmul.bf16 %v1142, %v1718
      %v1769 = vmul.bf16 %v1143, %v1726
      %v1770 = vmul.bf16 %v1144, %v1734
      %v1771 = vmul.bf16 %v1145, %v1737
      %vm1772 = vsmask.f32 256
      %v1774 = vshrl.u32 %v1755, 16
      %v1776 = vrot.slane %v1774, 7
      %v1778 = vshrl.u32 %v1756, 16
      %v1780 = vrot.slane %v1778, 7
      %v1781 = vshll.u32 %v1756, 16
      %v1783 = vor.u32 %v1780, %v1781
      %v1784 = vsel %vm1772, %v1776, %v1783
      %v1786 = vshrl.u32 %v1757, 16
      %v1788 = vrot.slane %v1786, 7
      %v1789 = vshll.u32 %v1757, 16
      %v1791 = vor.u32 %v1788, %v1789
      %v1792 = vsel %vm1772, %v1780, %v1791
      %v1794 = vshrl.u32 %v1758, 16
      %v1796 = vrot.slane %v1794, 7
      %v1797 = vshll.u32 %v1758, 16
      %v1799 = vor.u32 %v1796, %v1797
      %v1800 = vsel %vm1772, %v1788, %v1799
      %v1802 = vshrl.u32 %v1759, 16
      %v1804 = vrot.slane %v1802, 7
      %v1805 = vshll.u32 %v1759, 16
      %v1807 = vor.u32 %v1804, %v1805
      %v1808 = vsel %vm1772, %v1796, %v1807
      %v1810 = vshrl.u32 %v1760, 16
      %v1812 = vrot.slane %v1810, 7
      %v1813 = vshll.u32 %v1760, 16
      %v1815 = vor.u32 %v1812, %v1813
      %v1816 = vsel %vm1772, %v1804, %v1815
      %v1818 = vshrl.u32 %v1761, 16
      %v1820 = vrot.slane %v1818, 7
      %v1821 = vshll.u32 %v1761, 16
      %v1823 = vor.u32 %v1820, %v1821
      %v1824 = vsel %vm1772, %v1812, %v1823
      %v1826 = vshrl.u32 %v1762, 16
      %v1828 = vrot.slane %v1826, 7
      %v1829 = vshll.u32 %v1762, 16
      %v1831 = vor.u32 %v1828, %v1829
      %v1832 = vsel %vm1772, %v1820, %v1831
      %v1834 = vshrl.u32 %v1763, 16
      %v1836 = vrot.slane %v1834, 7
      %v1837 = vshll.u32 %v1763, 16
      %v1839 = vor.u32 %v1836, %v1837
      %v1840 = vsel %vm1772, %v1828, %v1839
      %v1842 = vshrl.u32 %v1764, 16
      %v1844 = vrot.slane %v1842, 7
      %v1845 = vshll.u32 %v1764, 16
      %v1847 = vor.u32 %v1844, %v1845
      %v1848 = vsel %vm1772, %v1836, %v1847
      %v1850 = vshrl.u32 %v1765, 16
      %v1852 = vrot.slane %v1850, 7
      %v1853 = vshll.u32 %v1765, 16
      %v1855 = vor.u32 %v1852, %v1853
      %v1856 = vsel %vm1772, %v1844, %v1855
      %v1858 = vshrl.u32 %v1766, 16
      %v1860 = vrot.slane %v1858, 7
      %v1861 = vshll.u32 %v1766, 16
      %v1863 = vor.u32 %v1860, %v1861
      %v1864 = vsel %vm1772, %v1852, %v1863
      %v1866 = vshrl.u32 %v1767, 16
      %v1868 = vrot.slane %v1866, 7
      %v1869 = vshll.u32 %v1767, 16
      %v1871 = vor.u32 %v1868, %v1869
      %v1872 = vsel %vm1772, %v1860, %v1871
      %v1874 = vshrl.u32 %v1768, 16
      %v1876 = vrot.slane %v1874, 7
      %v1877 = vshll.u32 %v1768, 16
      %v1879 = vor.u32 %v1876, %v1877
      %v1880 = vsel %vm1772, %v1868, %v1879
      %v1882 = vshrl.u32 %v1769, 16
      %v1884 = vrot.slane %v1882, 7
      %v1885 = vshll.u32 %v1769, 16
      %v1887 = vor.u32 %v1884, %v1885
      %v1888 = vsel %vm1772, %v1876, %v1887
      %v1890 = vshrl.u32 %v1770, 16
      %v1892 = vrot.slane %v1890, 7
      %v1893 = vshll.u32 %v1770, 16
      %v1895 = vor.u32 %v1892, %v1893
      %v1896 = vsel %vm1772, %v1884, %v1895
      %v1898 = vshrl.u32 %v1771, 16
      %v1900 = vrot.slane %v1898, 7
      %v1901 = vshll.u32 %v1771, 16
      %v1903 = vor.u32 %v1900, %v1901
      %v1904 = vsel %vm1772, %v1892, %v1903
      %1921 = vst.msk [vmem:[#allocation3] sm:$0xff] %vm415, %v1784
      %1922 = vst.msk [vmem:[#allocation3 + $0x8] sm:$0xff] %vm415, %v1792
      %1923 = vst.msk [vmem:[#allocation3 + $0x10] sm:$0xff] %vm415, %v1800
      %1924 = vst.msk [vmem:[#allocation3 + $0x18] sm:$0xff] %vm415, %v1808
      %1925 = vst.msk [vmem:[#allocation3 + $0x20] sm:$0xff] %vm415, %v1816
      %1926 = vst.msk [vmem:[#allocation3 + $0x28] sm:$0xff] %vm415, %v1824
      %1927 = vst.msk [vmem:[#allocation3 + $0x30] sm:$0xff] %vm415, %v1832
      %1928 = vst.msk [vmem:[#allocation3 + $0x38] sm:$0xff] %vm415, %v1840
      %1929 = vst.msk [vmem:[#allocation3 + $0x40] sm:$0xff] %vm415, %v1848
      %1930 = vst.msk [vmem:[#allocation3 + $0x48] sm:$0xff] %vm415, %v1856
      %1931 = vst.msk [vmem:[#allocation3 + $0x50] sm:$0xff] %vm415, %v1864
      %1932 = vst.msk [vmem:[#allocation3 + $0x58] sm:$0xff] %vm415, %v1872
      %1933 = vst.msk [vmem:[#allocation3 + $0x60] sm:$0xff] %vm415, %v1880
      %1934 = vst.msk [vmem:[#allocation3 + $0x68] sm:$0xff] %vm415, %v1888
      %1935 = vst.msk [vmem:[#allocation3 + $0x70] sm:$0xff] %vm415, %v1896
      %1936 = vst.msk [vmem:[#allocation3 + $0x78] sm:$0xff] %vm415, %v1904
      %v1937 = vld [vmem:[#allocation2 + $0x8] sm:$0xff]
      %v1938 = vld [vmem:[#allocation2 + $0x10] sm:$0xff]
      %v1939 = vld [vmem:[#allocation2 + $0x18] sm:$0xff]
      %v1940 = vld [vmem:[#allocation2 + $0x20] sm:$0xff]
      %v1941 = vld [vmem:[#allocation2 + $0x28] sm:$0xff]
      %v1942 = vld [vmem:[#allocation2 + $0x30] sm:$0xff]
      %v1943 = vld [vmem:[#allocation2 + $0x38] sm:$0xff]
      %v1944 = vld [vmem:[#allocation2 + $0x40] sm:$0xff]
      %v1945 = vld [vmem:[#allocation2 + $0x48] sm:$0xff]
      %v1946 = vld [vmem:[#allocation2 + $0x50] sm:$0xff]
      %v1947 = vld [vmem:[#allocation2 + $0x58] sm:$0xff]
      %v1948 = vld [vmem:[#allocation2 + $0x60] sm:$0xff]
      %v1949 = vld [vmem:[#allocation2 + $0x68] sm:$0xff]
      %v1950 = vld [vmem:[#allocation2 + $0x70] sm:$0xff]
      %v1951 = vld [vmem:[#allocation2 + $0x78] sm:$0xff]
      %v1952 = vld [vmem:[#allocation2 + $0x80] sm:$0xff]
      %1969 = vrot.lane.b32.xlu0 %v1937, 4
      %v1970 = vpop.permute.xlu0 %1969
      %1971 = vrot.lane.b32.xlu0 %v1938, 4
      %v1972 = vpop.permute.xlu0 %1971
      %1973 = vrot.lane.b32.xlu0 %v1939, 4
      %v1974 = vpop.permute.xlu0 %1973
      %1975 = vrot.lane.b32.xlu0 %v1940, 4
      %v1976 = vpop.permute.xlu0 %1975
      %1977 = vrot.lane.b32.xlu0 %v1941, 4
      %v1978 = vpop.permute.xlu0 %1977
      %1979 = vrot.lane.b32.xlu0 %v1942, 4
      %v1980 = vpop.permute.xlu0 %1979
      %1981 = vrot.lane.b32.xlu0 %v1943, 4
      %v1982 = vpop.permute.xlu0 %1981
      %1983 = vrot.lane.b32.xlu0 %v1944, 4
      %v1984 = vpop.permute.xlu0 %1983
      %1985 = vrot.lane.b32.xlu0 %v1945, 4
      %v1986 = vpop.permute.xlu0 %1985
      %1987 = vrot.lane.b32.xlu0 %v1946, 4
      %v1988 = vpop.permute.xlu0 %1987
      %1989 = vrot.lane.b32.xlu0 %v1947, 4
      %v1990 = vpop.permute.xlu0 %1989
      %1991 = vrot.lane.b32.xlu0 %v1948, 4
      %v1992 = vpop.permute.xlu0 %1991
      %1993 = vrot.lane.b32.xlu0 %v1949, 4
      %v1994 = vpop.permute.xlu0 %1993
      %1995 = vrot.lane.b32.xlu0 %v1950, 4
      %v1996 = vpop.permute.xlu0 %1995
      %1997 = vrot.lane.b32.xlu0 %v1951, 4
      %v1998 = vpop.permute.xlu0 %1997
      %1999 = vrot.lane.b32.xlu0 %v1952, 4
      %v2000 = vpop.permute.xlu0 %1999
      %vm2017 = vcmask 64544
      %2018 = vst.msk [vmem:[#allocation3] sm:$0xff] %vm2017, %v1970
      %2019 = vst.msk [vmem:[#allocation3 + $0x8] sm:$0xff] %vm2017, %v1972
      %2020 = vst.msk [vmem:[#allocation3 + $0x10] sm:$0xff] %vm2017, %v1974
      %2021 = vst.msk [vmem:[#allocation3 + $0x18] sm:$0xff] %vm2017, %v1976
      %2022 = vst.msk [vmem:[#allocation3 + $0x20] sm:$0xff] %vm2017, %v1978
      %2023 = vst.msk [vmem:[#allocation3 + $0x28] sm:$0xff] %vm2017, %v1980
      %2024 = vst.msk [vmem:[#allocation3 + $0x30] sm:$0xff] %vm2017, %v1982
      %2025 = vst.msk [vmem:[#allocation3 + $0x38] sm:$0xff] %vm2017, %v1984
      %2026 = vst.msk [vmem:[#allocation3 + $0x40] sm:$0xff] %vm2017, %v1986
      %2027 = vst.msk [vmem:[#allocation3 + $0x48] sm:$0xff] %vm2017, %v1988
      %2028 = vst.msk [vmem:[#allocation3 + $0x50] sm:$0xff] %vm2017, %v1990
      %2029 = vst.msk [vmem:[#allocation3 + $0x58] sm:$0xff] %vm2017, %v1992
      %2030 = vst.msk [vmem:[#allocation3 + $0x60] sm:$0xff] %vm2017, %v1994
      %2031 = vst.msk [vmem:[#allocation3 + $0x68] sm:$0xff] %vm2017, %v1996
      %2032 = vst.msk [vmem:[#allocation3 + $0x70] sm:$0xff] %vm2017, %v1998
      %2033 = vst.msk [vmem:[#allocation3 + $0x78] sm:$0xff] %vm2017, %v2000
      %v2034 = vld [vmem:[#allocation2 + $0x8] sm:$0xff]
      %v2035 = vld [vmem:[#allocation2 + $0x10] sm:$0xff]
      %v2036 = vld [vmem:[#allocation2 + $0x18] sm:$0xff]
      %v2037 = vld [vmem:[#allocation2 + $0x20] sm:$0xff]
      %v2038 = vld [vmem:[#allocation2 + $0x28] sm:$0xff]
      %v2039 = vld [vmem:[#allocation2 + $0x30] sm:$0xff]
      %v2040 = vld [vmem:[#allocation2 + $0x38] sm:$0xff]
      %v2041 = vld [vmem:[#allocation2 + $0x40] sm:$0xff]
      %v2042 = vld [vmem:[#allocation2 + $0x48] sm:$0xff]
      %v2043 = vld [vmem:[#allocation2 + $0x50] sm:$0xff]
      %v2044 = vld [vmem:[#allocation2 + $0x58] sm:$0xff]
      %v2045 = vld [vmem:[#allocation2 + $0x60] sm:$0xff]
      %v2046 = vld [vmem:[#allocation2 + $0x68] sm:$0xff]
      %v2047 = vld [vmem:[#allocation2 + $0x70] sm:$0xff]
      %v2048 = vld [vmem:[#allocation2 + $0x78] sm:$0xff]
      %v2049 = vld [vmem:[#allocation2 + $0x80] sm:$0xff]
      %v2050 = vld [vmem:[#allocation2 + $0x88] sm:$0x1]
      %2052 = vset.pattern.permute.xlu0 0
      %2053 = vperm.xlu0 %2052, %v1097
      %v2054 = vpop.permute.xlu0 %2053
      %v2057 = vunpack.c.l.s4 839922192
      %v2058 = vunpack.c.0.s8 %v2057
      %v2059 = vlaneseq
      %v2060 = vshrl.u32 %v2059, 7
      %v2061 = vsub.s32 %v2058, %v2060
      %v2062 = vrot.slane %v2054, %v2061
      %2064 = vset.pattern.permute.xlu0 0
      %2065 = vperm.xlu0 %2064, %v1098
      %v2066 = vpop.permute.xlu0 %2065
      %v2069 = vunpack.c.l.s4 839922192
      %v2070 = vunpack.c.0.s8 %v2069
      %v2071 = vlaneseq
      %v2072 = vshrl.u32 %v2071, 7
      %v2073 = vsub.s32 %v2070, %v2072
      %v2074 = vrot.slane %v2066, %v2073
      %2076 = vset.pattern.permute.xlu0 0
      %2077 = vperm.xlu0 %2076, %v1099
      %v2078 = vpop.permute.xlu0 %2077
      %v2081 = vunpack.c.l.s4 839922192
      %v2082 = vunpack.c.0.s8 %v2081
      %v2083 = vlaneseq
      %v2084 = vshrl.u32 %v2083, 7
      %v2085 = vsub.s32 %v2082, %v2084
      %v2086 = vrot.slane %v2078, %v2085
      %2088 = vset.pattern.permute.xlu0 0
      %2089 = vperm.xlu0 %2088, %v1100
      %v2090 = vpop.permute.xlu0 %2089
      %v2093 = vunpack.c.l.s4 839922192
      %v2094 = vunpack.c.0.s8 %v2093
      %v2095 = vlaneseq
      %v2096 = vshrl.u32 %v2095, 7
      %v2097 = vsub.s32 %v2094, %v2096
      %v2098 = vrot.slane %v2090, %v2097
      %2100 = vset.pattern.permute.xlu0 0
      %2101 = vperm.xlu0 %2100, %v1101
      %v2102 = vpop.permute.xlu0 %2101
      %v2105 = vunpack.c.l.s4 839922192
      %v2106 = vunpack.c.0.s8 %v2105
      %v2107 = vlaneseq
      %v2108 = vshrl.u32 %v2107, 7
      %v2109 = vsub.s32 %v2106, %v2108
      %v2110 = vrot.slane %v2102, %v2109
      %2112 = vset.pattern.permute.xlu0 0
      %2113 = vperm.xlu0 %2112, %v1102
      %v2114 = vpop.permute.xlu0 %2113
      %v2117 = vunpack.c.l.s4 839922192
      %v2118 = vunpack.c.0.s8 %v2117
      %v2119 = vlaneseq
      %v2120 = vshrl.u32 %v2119, 7
      %v2121 = vsub.s32 %v2118, %v2120
      %v2122 = vrot.slane %v2114, %v2121
      %2124 = vset.pattern.permute.xlu0 0
      %2125 = vperm.xlu0 %2124, %v1103
      %v2126 = vpop.permute.xlu0 %2125
      %v2129 = vunpack.c.l.s4 839922192
      %v2130 = vunpack.c.0.s8 %v2129
      %v2131 = vlaneseq
      %v2132 = vshrl.u32 %v2131, 7
      %v2133 = vsub.s32 %v2130, %v2132
      %v2134 = vrot.slane %v2126, %v2133
      %2136 = vset.pattern.permute.xlu0 0
      %2137 = vperm.xlu0 %2136, %v1104
      %v2138 = vpop.permute.xlu0 %2137
      %v2141 = vunpack.c.l.s4 839922192
      %v2142 = vunpack.c.0.s8 %v2141
      %v2143 = vlaneseq
      %v2144 = vshrl.u32 %v2143, 7
      %v2145 = vsub.s32 %v2142, %v2144
      %v2146 = vrot.slane %v2138, %v2145
      %2148 = vset.pattern.permute.xlu0 0
      %2149 = vperm.xlu0 %2148, %v1105
      %v2150 = vpop.permute.xlu0 %2149
      %v2153 = vunpack.c.l.s4 839922192
      %v2154 = vunpack.c.0.s8 %v2153
      %v2155 = vlaneseq
      %v2156 = vshrl.u32 %v2155, 7
      %v2157 = vsub.s32 %v2154, %v2156
      %v2158 = vrot.slane %v2150, %v2157
      %2160 = vset.pattern.permute.xlu0 0
      %2161 = vperm.xlu0 %2160, %v1106
      %v2162 = vpop.permute.xlu0 %2161
      %v2165 = vunpack.c.l.s4 839922192
      %v2166 = vunpack.c.0.s8 %v2165
      %v2167 = vlaneseq
      %v2168 = vshrl.u32 %v2167, 7
      %v2169 = vsub.s32 %v2166, %v2168
      %v2170 = vrot.slane %v2162, %v2169
      %2172 = vset.pattern.permute.xlu0 0
      %2173 = vperm.xlu0 %2172, %v1107
      %v2174 = vpop.permute.xlu0 %2173
      %v2177 = vunpack.c.l.s4 839922192
      %v2178 = vunpack.c.0.s8 %v2177
      %v2179 = vlaneseq
      %v2180 = vshrl.u32 %v2179, 7
      %v2181 = vsub.s32 %v2178, %v2180
      %v2182 = vrot.slane %v2174, %v2181
      %2184 = vset.pattern.permute.xlu0 0
      %2185 = vperm.xlu0 %2184, %v1108
      %v2186 = vpop.permute.xlu0 %2185
      %v2189 = vunpack.c.l.s4 839922192
      %v2190 = vunpack.c.0.s8 %v2189
      %v2191 = vlaneseq
      %v2192 = vshrl.u32 %v2191, 7
      %v2193 = vsub.s32 %v2190, %v2192
      %v2194 = vrot.slane %v2186, %v2193
      %2196 = vset.pattern.permute.xlu0 0
      %2197 = vperm.xlu0 %2196, %v1109
      %v2198 = vpop.permute.xlu0 %2197
      %v2201 = vunpack.c.l.s4 839922192
      %v2202 = vunpack.c.0.s8 %v2201
      %v2203 = vlaneseq
      %v2204 = vshrl.u32 %v2203, 7
      %v2205 = vsub.s32 %v2202, %v2204
      %v2206 = vrot.slane %v2198, %v2205
      %2208 = vset.pattern.permute.xlu0 0
      %2209 = vperm.xlu0 %2208, %v1110
      %v2210 = vpop.permute.xlu0 %2209
      %v2213 = vunpack.c.l.s4 839922192
      %v2214 = vunpack.c.0.s8 %v2213
      %v2215 = vlaneseq
      %v2216 = vshrl.u32 %v2215, 7
      %v2217 = vsub.s32 %v2214, %v2216
      %v2218 = vrot.slane %v2210, %v2217
      %2220 = vset.pattern.permute.xlu0 0
      %2221 = vperm.xlu0 %2220, %v1111
      %v2222 = vpop.permute.xlu0 %2221
      %v2225 = vunpack.c.l.s4 839922192
      %v2226 = vunpack.c.0.s8 %v2225
      %v2227 = vlaneseq
      %v2228 = vshrl.u32 %v2227, 7
      %v2229 = vsub.s32 %v2226, %v2228
      %v2230 = vrot.slane %v2222, %v2229
      %2232 = vset.pattern.permute.xlu0 0
      %2233 = vperm.xlu0 %2232, %v1112
      %v2234 = vpop.permute.xlu0 %2233
      %v2237 = vunpack.c.l.s4 839922192
      %v2238 = vunpack.c.0.s8 %v2237
      %v2239 = vlaneseq
      %v2240 = vshrl.u32 %v2239, 7
      %v2241 = vsub.s32 %v2238, %v2240
      %v2242 = vrot.slane %v2234, %v2241
      %2244 = vset.pattern.permute.xlu0 0
      %2245 = vperm.xlu0 %2244, %v1113
      %v2246 = vpop.permute.xlu0 %2245
      %v2249 = vunpack.c.l.s4 839922192
      %v2250 = vunpack.c.0.s8 %v2249
      %v2251 = vlaneseq
      %v2252 = vshrl.u32 %v2251, 7
      %v2253 = vsub.s32 %v2250, %v2252
      %v2254 = vrot.slane %v2246, %v2253
      %2256 = vset.pattern.permute.xlu0 0
      %2257 = vperm.xlu0 %2256, %v1114
      %v2258 = vpop.permute.xlu0 %2257
      %v2261 = vunpack.c.l.s4 839922192
      %v2262 = vunpack.c.0.s8 %v2261
      %v2263 = vlaneseq
      %v2264 = vshrl.u32 %v2263, 7
      %v2265 = vsub.s32 %v2262, %v2264
      %v2266 = vrot.slane %v2258, %v2265
      %2268 = vset.pattern.permute.xlu0 0
      %2269 = vperm.xlu0 %2268, %v1115
      %v2270 = vpop.permute.xlu0 %2269
      %v2273 = vunpack.c.l.s4 839922192
      %v2274 = vunpack.c.0.s8 %v2273
      %v2275 = vlaneseq
      %v2276 = vshrl.u32 %v2275, 7
      %v2277 = vsub.s32 %v2274, %v2276
      %v2278 = vrot.slane %v2270, %v2277
      %2280 = vset.pattern.permute.xlu0 0
      %2281 = vperm.xlu0 %2280, %v1116
      %v2282 = vpop.permute.xlu0 %2281
      %v2285 = vunpack.c.l.s4 839922192
      %v2286 = vunpack.c.0.s8 %v2285
      %v2287 = vlaneseq
      %v2288 = vshrl.u32 %v2287, 7
      %v2289 = vsub.s32 %v2286, %v2288
      %v2290 = vrot.slane %v2282, %v2289
      %2292 = vset.pattern.permute.xlu0 0
      %2293 = vperm.xlu0 %2292, %v1117
      %v2294 = vpop.permute.xlu0 %2293
      %v2297 = vunpack.c.l.s4 839922192
      %v2298 = vunpack.c.0.s8 %v2297
      %v2299 = vlaneseq
      %v2300 = vshrl.u32 %v2299, 7
      %v2301 = vsub.s32 %v2298, %v2300
      %v2302 = vrot.slane %v2294, %v2301
      %2304 = vset.pattern.permute.xlu0 0
      %2305 = vperm.xlu0 %2304, %v1118
      %v2306 = vpop.permute.xlu0 %2305
      %v2309 = vunpack.c.l.s4 839922192
      %v2310 = vunpack.c.0.s8 %v2309
      %v2311 = vlaneseq
      %v2312 = vshrl.u32 %v2311, 7
      %v2313 = vsub.s32 %v2310, %v2312
      %v2314 = vrot.slane %v2306, %v2313
      %2316 = vset.pattern.permute.xlu0 0
      %2317 = vperm.xlu0 %2316, %v1119
      %v2318 = vpop.permute.xlu0 %2317
      %v2321 = vunpack.c.l.s4 839922192
      %v2322 = vunpack.c.0.s8 %v2321
      %v2323 = vlaneseq
      %v2324 = vshrl.u32 %v2323, 7
      %v2325 = vsub.s32 %v2322, %v2324
      %v2326 = vrot.slane %v2318, %v2325
      %2328 = vset.pattern.permute.xlu0 0
      %2329 = vperm.xlu0 %2328, %v1120
      %v2330 = vpop.permute.xlu0 %2329
      %v2333 = vunpack.c.l.s4 839922192
      %v2334 = vunpack.c.0.s8 %v2333
      %v2335 = vlaneseq
      %v2336 = vshrl.u32 %v2335, 7
      %v2337 = vsub.s32 %v2334, %v2336
      %v2338 = vrot.slane %v2330, %v2337
      %2340 = vset.pattern.permute.xlu0 0
      %2341 = vperm.xlu0 %2340, %v1121
      %v2342 = vpop.permute.xlu0 %2341
      %v2345 = vunpack.c.l.s4 839922192
      %v2346 = vunpack.c.0.s8 %v2345
      %v2347 = vlaneseq
      %v2348 = vshrl.u32 %v2347, 7
      %v2349 = vsub.s32 %v2346, %v2348
      %v2350 = vrot.slane %v2342, %v2349
      %2352 = vset.pattern.permute.xlu0 0
      %2353 = vperm.xlu0 %2352, %v1122
      %v2354 = vpop.permute.xlu0 %2353
      %v2357 = vunpack.c.l.s4 839922192
      %v2358 = vunpack.c.0.s8 %v2357
      %v2359 = vlaneseq
      %v2360 = vshrl.u32 %v2359, 7
      %v2361 = vsub.s32 %v2358, %v2360
      %v2362 = vrot.slane %v2354, %v2361
      %2364 = vset.pattern.permute.xlu0 0
      %2365 = vperm.xlu0 %2364, %v1123
      %v2366 = vpop.permute.xlu0 %2365
      %v2369 = vunpack.c.l.s4 839922192
      %v2370 = vunpack.c.0.s8 %v2369
      %v2371 = vlaneseq
      %v2372 = vshrl.u32 %v2371, 7
      %v2373 = vsub.s32 %v2370, %v2372
      %v2374 = vrot.slane %v2366, %v2373
      %2376 = vset.pattern.permute.xlu0 0
      %2377 = vperm.xlu0 %2376, %v1124
      %v2378 = vpop.permute.xlu0 %2377
      %v2381 = vunpack.c.l.s4 839922192
      %v2382 = vunpack.c.0.s8 %v2381
      %v2383 = vlaneseq
      %v2384 = vshrl.u32 %v2383, 7
      %v2385 = vsub.s32 %v2382, %v2384
      %v2386 = vrot.slane %v2378, %v2385
      %2388 = vset.pattern.permute.xlu0 0
      %2389 = vperm.xlu0 %2388, %v1125
      %v2390 = vpop.permute.xlu0 %2389
      %v2393 = vunpack.c.l.s4 839922192
      %v2394 = vunpack.c.0.s8 %v2393
      %v2395 = vlaneseq
      %v2396 = vshrl.u32 %v2395, 7
      %v2397 = vsub.s32 %v2394, %v2396
      %v2398 = vrot.slane %v2390, %v2397
      %2400 = vset.pattern.permute.xlu0 0
      %2401 = vperm.xlu0 %2400, %v1126
      %v2402 = vpop.permute.xlu0 %2401
      %v2405 = vunpack.c.l.s4 839922192
      %v2406 = vunpack.c.0.s8 %v2405
      %v2407 = vlaneseq
      %v2408 = vshrl.u32 %v2407, 7
      %v2409 = vsub.s32 %v2406, %v2408
      %v2410 = vrot.slane %v2402, %v2409
      %2412 = vset.pattern.permute.xlu0 0
      %2413 = vperm.xlu0 %2412, %v1127
      %v2414 = vpop.permute.xlu0 %2413
      %v2417 = vunpack.c.l.s4 839922192
      %v2418 = vunpack.c.0.s8 %v2417
      %v2419 = vlaneseq
      %v2420 = vshrl.u32 %v2419, 7
      %v2421 = vsub.s32 %v2418, %v2420
      %v2422 = vrot.slane %v2414, %v2421
      %2424 = vset.pattern.permute.xlu0 0
      %2425 = vperm.xlu0 %2424, %v1128
      %v2426 = vpop.permute.xlu0 %2425
      %v2429 = vunpack.c.l.s4 839922192
      %v2430 = vunpack.c.0.s8 %v2429
      %v2431 = vlaneseq
      %v2432 = vshrl.u32 %v2431, 7
      %v2433 = vsub.s32 %v2430, %v2432
      %v2434 = vrot.slane %v2426, %v2433
      %v2467 = vunpack.c.l.b16 %v2062
      %v2468 = vunpack.c.l.b16 %v2074
      %v2469 = vunpack.c.l.b16 %v2086
      %v2470 = vunpack.c.l.b16 %v2098
      %v2471 = vunpack.c.l.b16 %v2110
      %v2472 = vunpack.c.l.b16 %v2122
      %v2473 = vunpack.c.l.b16 %v2134
      %v2474 = vunpack.c.l.b16 %v2146
      %v2475 = vunpack.c.l.b16 %v2158
      %v2476 = vunpack.c.l.b16 %v2170
      %v2477 = vunpack.c.l.b16 %v2182
      %v2478 = vunpack.c.l.b16 %v2194
      %v2479 = vunpack.c.l.b16 %v2206
      %v2480 = vunpack.c.l.b16 %v2218
      %v2481 = vunpack.c.l.b16 %v2230
      %v2482 = vunpack.c.l.b16 %v2242
      %v2483 = vunpack.c.l.b16 %v2254
      %v2484 = vunpack.c.l.b16 %v2266
      %v2485 = vunpack.c.l.b16 %v2278
      %v2486 = vunpack.c.l.b16 %v2290
      %v2487 = vunpack.c.l.b16 %v2302
      %v2488 = vunpack.c.l.b16 %v2314
      %v2489 = vunpack.c.l.b16 %v2326
      %v2490 = vunpack.c.l.b16 %v2338
      %v2491 = vunpack.c.l.b16 %v2350
      %v2492 = vunpack.c.l.b16 %v2362
      %v2493 = vunpack.c.l.b16 %v2374
      %v2494 = vunpack.c.l.b16 %v2386
      %v2495 = vunpack.c.l.b16 %v2398
      %v2496 = vunpack.c.l.b16 %v2410
      %v2497 = vunpack.c.l.b16 %v2422
      %v2498 = vunpack.c.l.b16 %v2434
      %v2499 = vpack.c.b16 %v2468, %v2467
      %v2500 = vpack.c.b16 %v2470, %v2469
      %v2501 = vpack.c.b16 %v2472, %v2471
      %v2502 = vpack.c.b16 %v2474, %v2473
      %v2503 = vpack.c.b16 %v2476, %v2475
      %v2504 = vpack.c.b16 %v2478, %v2477
      %v2505 = vpack.c.b16 %v2480, %v2479
      %v2506 = vpack.c.b16 %v2482, %v2481
      %v2507 = vpack.c.b16 %v2484, %v2483
      %v2508 = vpack.c.b16 %v2486, %v2485
      %v2509 = vpack.c.b16 %v2488, %v2487
      %v2510 = vpack.c.b16 %v2490, %v2489
      %v2511 = vpack.c.b16 %v2492, %v2491
      %v2512 = vpack.c.b16 %v2494, %v2493
      %v2513 = vpack.c.b16 %v2496, %v2495
      %v2514 = vpack.c.b16 %v2498, %v2497
      %v2516 = vshrl.u32 %v2499, 16
      %v2518 = vrot.slane %v2516, 7
      %v2519 = vshll.u32 %v2499, 16
      %v2521 = vor.u32 %v2518, %v2519
      %v2523 = vshrl.u32 %v2500, 16
      %v2525 = vrot.slane %v2523, 7
      %v2526 = vshll.u32 %v2500, 16
      %v2528 = vor.u32 %v2525, %v2526
      %v2529 = vsel %vm1772, %v2518, %v2528
      %v2531 = vshrl.u32 %v2501, 16
      %v2533 = vrot.slane %v2531, 7
      %v2534 = vshll.u32 %v2501, 16
      %v2536 = vor.u32 %v2533, %v2534
      %v2537 = vsel %vm1772, %v2525, %v2536
      %v2539 = vshrl.u32 %v2502, 16
      %v2541 = vrot.slane %v2539, 7
      %v2542 = vshll.u32 %v2502, 16
      %v2544 = vor.u32 %v2541, %v2542
      %v2545 = vsel %vm1772, %v2533, %v2544
      %v2547 = vshrl.u32 %v2503, 16
      %v2549 = vrot.slane %v2547, 7
      %v2550 = vshll.u32 %v2503, 16
      %v2552 = vor.u32 %v2549, %v2550
      %v2553 = vsel %vm1772, %v2541, %v2552
      %v2555 = vshrl.u32 %v2504, 16
      %v2557 = vrot.slane %v2555, 7
      %v2558 = vshll.u32 %v2504, 16
      %v2560 = vor.u32 %v2557, %v2558
      %v2561 = vsel %vm1772, %v2549, %v2560
      %v2563 = vshrl.u32 %v2505, 16
      %v2565 = vrot.slane %v2563, 7
      %v2566 = vshll.u32 %v2505, 16
      %v2568 = vor.u32 %v2565, %v2566
      %v2569 = vsel %vm1772, %v2557, %v2568
      %v2571 = vshrl.u32 %v2506, 16
      %v2573 = vrot.slane %v2571, 7
      %v2574 = vshll.u32 %v2506, 16
      %v2576 = vor.u32 %v2573, %v2574
      %v2577 = vsel %vm1772, %v2565, %v2576
      %v2579 = vshrl.u32 %v2507, 16
      %v2581 = vrot.slane %v2579, 7
      %v2582 = vshll.u32 %v2507, 16
      %v2584 = vor.u32 %v2581, %v2582
      %v2585 = vsel %vm1772, %v2573, %v2584
      %v2587 = vshrl.u32 %v2508, 16
      %v2589 = vrot.slane %v2587, 7
      %v2590 = vshll.u32 %v2508, 16
      %v2592 = vor.u32 %v2589, %v2590
      %v2593 = vsel %vm1772, %v2581, %v2592
      %v2595 = vshrl.u32 %v2509, 16
      %v2597 = vrot.slane %v2595, 7
      %v2598 = vshll.u32 %v2509, 16
      %v2600 = vor.u32 %v2597, %v2598
      %v2601 = vsel %vm1772, %v2589, %v2600
      %v2603 = vshrl.u32 %v2510, 16
      %v2605 = vrot.slane %v2603, 7
      %v2606 = vshll.u32 %v2510, 16
      %v2608 = vor.u32 %v2605, %v2606
      %v2609 = vsel %vm1772, %v2597, %v2608
      %v2611 = vshrl.u32 %v2511, 16
      %v2613 = vrot.slane %v2611, 7
      %v2614 = vshll.u32 %v2511, 16
      %v2616 = vor.u32 %v2613, %v2614
      %v2617 = vsel %vm1772, %v2605, %v2616
      %v2619 = vshrl.u32 %v2512, 16
      %v2621 = vrot.slane %v2619, 7
      %v2622 = vshll.u32 %v2512, 16
      %v2624 = vor.u32 %v2621, %v2622
      %v2625 = vsel %vm1772, %v2613, %v2624
      %v2627 = vshrl.u32 %v2513, 16
      %v2629 = vrot.slane %v2627, 7
      %v2630 = vshll.u32 %v2513, 16
      %v2632 = vor.u32 %v2629, %v2630
      %v2633 = vsel %vm1772, %v2621, %v2632
      %v2635 = vshrl.u32 %v2514, 16
      %v2637 = vrot.slane %v2635, 7
      %v2638 = vshll.u32 %v2514, 16
      %v2640 = vor.u32 %v2637, %v2638
      %v2641 = vsel %vm1772, %v2629, %v2640
      %v2659 = vmul.bf16 %v2034, %v2521
      %v2660 = vmul.bf16 %v2035, %v2529
      %v2661 = vmul.bf16 %v2036, %v2537
      %v2662 = vmul.bf16 %v2037, %v2545
      %v2663 = vmul.bf16 %v2038, %v2553
      %v2664 = vmul.bf16 %v2039, %v2561
      %v2665 = vmul.bf16 %v2040, %v2569
      %v2666 = vmul.bf16 %v2041, %v2577
      %v2667 = vmul.bf16 %v2042, %v2585
      %v2668 = vmul.bf16 %v2043, %v2593
      %v2669 = vmul.bf16 %v2044, %v2601
      %v2670 = vmul.bf16 %v2045, %v2609
      %v2671 = vmul.bf16 %v2046, %v2617
      %v2672 = vmul.bf16 %v2047, %v2625
      %v2673 = vmul.bf16 %v2048, %v2633
      %v2674 = vmul.bf16 %v2049, %v2641
      %v2675 = vmul.bf16 %v2050, %v2637
      %v2677 = vshrl.u32 %v2659, 16
      %v2679 = vshll.u32 %v2659, 16
      %v2681 = vrot.slane %v2679, 1
      %v2682 = vor.u32 %v2677, %v2681
      %v2684 = vshll.u32 %v2660, 16
      %v2686 = vrot.slane %v2684, 1
      %v2687 = vsel %vm1610, %v2682, %v2686
      %v2688 = vshrl.u32 %v2660, 16
      %v2690 = vor.u32 %v2688, %v2686
      %v2692 = vshll.u32 %v2661, 16
      %v2694 = vrot.slane %v2692, 1
      %v2695 = vsel %vm1610, %v2690, %v2694
      %v2696 = vshrl.u32 %v2661, 16
      %v2698 = vor.u32 %v2696, %v2694
      %v2700 = vshll.u32 %v2662, 16
      %v2702 = vrot.slane %v2700, 1
      %v2703 = vsel %vm1610, %v2698, %v2702
      %v2704 = vshrl.u32 %v2662, 16
      %v2706 = vor.u32 %v2704, %v2702
      %v2708 = vshll.u32 %v2663, 16
      %v2710 = vrot.slane %v2708, 1
      %v2711 = vsel %vm1610, %v2706, %v2710
      %v2712 = vshrl.u32 %v2663, 16
      %v2714 = vor.u32 %v2712, %v2710
      %v2716 = vshll.u32 %v2664, 16
      %v2718 = vrot.slane %v2716, 1
      %v2719 = vsel %vm1610, %v2714, %v2718
      %v2720 = vshrl.u32 %v2664, 16
      %v2722 = vor.u32 %v2720, %v2718
      %v2724 = vshll.u32 %v2665, 16
      %v2726 = vrot.slane %v2724, 1
      %v2727 = vsel %vm1610, %v2722, %v2726
      %v2728 = vshrl.u32 %v2665, 16
      %v2730 = vor.u32 %v2728, %v2726
      %v2732 = vshll.u32 %v2666, 16
      %v2734 = vrot.slane %v2732, 1
      %v2735 = vsel %vm1610, %v2730, %v2734
      %v2736 = vshrl.u32 %v2666, 16
      %v2738 = vor.u32 %v2736, %v2734
      %v2740 = vshll.u32 %v2667, 16
      %v2742 = vrot.slane %v2740, 1
      %v2743 = vsel %vm1610, %v2738, %v2742
      %v2744 = vshrl.u32 %v2667, 16
      %v2746 = vor.u32 %v2744, %v2742
      %v2748 = vshll.u32 %v2668, 16
      %v2750 = vrot.slane %v2748, 1
      %v2751 = vsel %vm1610, %v2746, %v2750
      %v2752 = vshrl.u32 %v2668, 16
      %v2754 = vor.u32 %v2752, %v2750
      %v2756 = vshll.u32 %v2669, 16
      %v2758 = vrot.slane %v2756, 1
      %v2759 = vsel %vm1610, %v2754, %v2758
      %v2760 = vshrl.u32 %v2669, 16
      %v2762 = vor.u32 %v2760, %v2758
      %v2764 = vshll.u32 %v2670, 16
      %v2766 = vrot.slane %v2764, 1
      %v2767 = vsel %vm1610, %v2762, %v2766
      %v2768 = vshrl.u32 %v2670, 16
      %v2770 = vor.u32 %v2768, %v2766
      %v2772 = vshll.u32 %v2671, 16
      %v2774 = vrot.slane %v2772, 1
      %v2775 = vsel %vm1610, %v2770, %v2774
      %v2776 = vshrl.u32 %v2671, 16
      %v2778 = vor.u32 %v2776, %v2774
      %v2780 = vshll.u32 %v2672, 16
      %v2782 = vrot.slane %v2780, 1
      %v2783 = vsel %vm1610, %v2778, %v2782
      %v2784 = vshrl.u32 %v2672, 16
      %v2786 = vor.u32 %v2784, %v2782
      %v2788 = vshll.u32 %v2673, 16
      %v2790 = vrot.slane %v2788, 1
      %v2791 = vsel %vm1610, %v2786, %v2790
      %v2792 = vshrl.u32 %v2673, 16
      %v2794 = vor.u32 %v2792, %v2790
      %v2796 = vshll.u32 %v2674, 16
      %v2798 = vrot.slane %v2796, 1
      %v2799 = vsel %vm1610, %v2794, %v2798
      %v2800 = vshrl.u32 %v2674, 16
      %v2802 = vor.u32 %v2800, %v2798
      %v2804 = vshll.u32 %v2675, 16
      %v2806 = vrot.slane %v2804, 1
      %v2807 = vsel %vm1610, %v2802, %v2806
      %2808 = vrot.lane.b32.xlu0 %v2687, 8
      %v2809 = vpop.permute.xlu0 %2808
      %2810 = vrot.lane.b32.xlu0 %v2695, 8
      %v2811 = vpop.permute.xlu0 %2810
      %2812 = vrot.lane.b32.xlu0 %v2703, 8
      %v2813 = vpop.permute.xlu0 %2812
      %2814 = vrot.lane.b32.xlu0 %v2711, 8
      %v2815 = vpop.permute.xlu0 %2814
      %2816 = vrot.lane.b32.xlu0 %v2719, 8
      %v2817 = vpop.permute.xlu0 %2816
      %2818 = vrot.lane.b32.xlu0 %v2727, 8
      %v2819 = vpop.permute.xlu0 %2818
      %2820 = vrot.lane.b32.xlu0 %v2735, 8
      %v2821 = vpop.permute.xlu0 %2820
      %2822 = vrot.lane.b32.xlu0 %v2743, 8
      %v2823 = vpop.permute.xlu0 %2822
      %2824 = vrot.lane.b32.xlu0 %v2751, 8
      %v2825 = vpop.permute.xlu0 %2824
      %2826 = vrot.lane.b32.xlu0 %v2759, 8
      %v2827 = vpop.permute.xlu0 %2826
      %2828 = vrot.lane.b32.xlu0 %v2767, 8
      %v2829 = vpop.permute.xlu0 %2828
      %2830 = vrot.lane.b32.xlu0 %v2775, 8
      %v2831 = vpop.permute.xlu0 %2830
      %2832 = vrot.lane.b32.xlu0 %v2783, 8
      %v2833 = vpop.permute.xlu0 %2832
      %2834 = vrot.lane.b32.xlu0 %v2791, 8
      %v2835 = vpop.permute.xlu0 %2834
      %2836 = vrot.lane.b32.xlu0 %v2799, 8
      %v2837 = vpop.permute.xlu0 %2836
      %2838 = vrot.lane.b32.xlu0 %v2807, 8
      %v2839 = vpop.permute.xlu0 %2838
      %vm2856 = vcmask 97344
      %2857 = vst.msk [vmem:[#allocation3] sm:$0xff] %vm2856, %v2809
      %2858 = vst.msk [vmem:[#allocation3 + $0x8] sm:$0xff] %vm2856, %v2811
      %2859 = vst.msk [vmem:[#allocation3 + $0x10] sm:$0xff] %vm2856, %v2813
      %2860 = vst.msk [vmem:[#allocation3 + $0x18] sm:$0xff] %vm2856, %v2815
      %2861 = vst.msk [vmem:[#allocation3 + $0x20] sm:$0xff] %vm2856, %v2817
      %2862 = vst.msk [vmem:[#allocation3 + $0x28] sm:$0xff] %vm2856, %v2819
      %2863 = vst.msk [vmem:[#allocation3 + $0x30] sm:$0xff] %vm2856, %v2821
      %2864 = vst.msk [vmem:[#allocation3 + $0x38] sm:$0xff] %vm2856, %v2823
      %2865 = vst.msk [vmem:[#allocation3 + $0x40] sm:$0xff] %vm2856, %v2825
      %2866 = vst.msk [vmem:[#allocation3 + $0x48] sm:$0xff] %vm2856, %v2827
      %2867 = vst.msk [vmem:[#allocation3 + $0x50] sm:$0xff] %vm2856, %v2829
      %2868 = vst.msk [vmem:[#allocation3 + $0x58] sm:$0xff] %vm2856, %v2831
      %2869 = vst.msk [vmem:[#allocation3 + $0x60] sm:$0xff] %vm2856, %v2833
      %2870 = vst.msk [vmem:[#allocation3 + $0x68] sm:$0xff] %vm2856, %v2835
      %2871 = vst.msk [vmem:[#allocation3 + $0x70] sm:$0xff] %vm2856, %v2837
      %2872 = vst.msk [vmem:[#allocation3 + $0x78] sm:$0xff] %vm2856, %v2839
      %v2873 = vld [vmem:[#allocation2 + $0x8] sm:$0x80]
      %v2874 = vld [vmem:[#allocation2 + $0x10] sm:$0xff]
      %v2875 = vld [vmem:[#allocation2 + $0x18] sm:$0xff]
      %v2876 = vld [vmem:[#allocation2 + $0x20] sm:$0xff]
      %v2877 = vld [vmem:[#allocation2 + $0x28] sm:$0xff]
      %v2878 = vld [vmem:[#allocation2 + $0x30] sm:$0xff]
      %v2879 = vld [vmem:[#allocation2 + $0x38] sm:$0xff]
      %v2880 = vld [vmem:[#allocation2 + $0x40] sm:$0xff]
      %v2881 = vld [vmem:[#allocation2 + $0x48] sm:$0xff]
      %v2882 = vld [vmem:[#allocation2 + $0x50] sm:$0xff]
      %v2883 = vld [vmem:[#allocation2 + $0x58] sm:$0xff]
      %v2884 = vld [vmem:[#allocation2 + $0x60] sm:$0xff]
      %v2885 = vld [vmem:[#allocation2 + $0x68] sm:$0xff]
      %v2886 = vld [vmem:[#allocation2 + $0x70] sm:$0xff]
      %v2887 = vld [vmem:[#allocation2 + $0x78] sm:$0xff]
      %v2888 = vld [vmem:[#allocation2 + $0x80] sm:$0xff]
      %v2889 = vld [vmem:[#allocation2 + $0x88] sm:$0xff]
      %v2890 = vmul.bf16 %v2873, %v1614
      %v2891 = vmul.bf16 %v2874, %v1622
      %v2892 = vmul.bf16 %v2875, %v1630
      %v2893 = vmul.bf16 %v2876, %v1638
      %v2894 = vmul.bf16 %v2877, %v1646
      %v2895 = vmul.bf16 %v2878, %v1654
      %v2896 = vmul.bf16 %v2879, %v1662
      %v2897 = vmul.bf16 %v2880, %v1670
      %v2898 = vmul.bf16 %v2881, %v1678
      %v2899 = vmul.bf16 %v2882, %v1686
      %v2900 = vmul.bf16 %v2883, %v1694
      %v2901 = vmul.bf16 %v2884, %v1702
      %v2902 = vmul.bf16 %v2885, %v1710
      %v2903 = vmul.bf16 %v2886, %v1718
      %v2904 = vmul.bf16 %v2887, %v1726
      %v2905 = vmul.bf16 %v2888, %v1734
      %v2906 = vmul.bf16 %v2889, %v1737
      %v2908 = vshrl.u32 %v2890, 16
      %v2910 = vrot.slane %v2908, 7
      %v2912 = vshrl.u32 %v2891, 16
      %v2914 = vrot.slane %v2912, 7
      %v2915 = vshll.u32 %v2891, 16
      %v2917 = vor.u32 %v2914, %v2915
      %v2918 = vsel %vm1772, %v2910, %v2917
      %v2920 = vshrl.u32 %v2892, 16
      %v2922 = vrot.slane %v2920, 7
      %v2923 = vshll.u32 %v2892, 16
      %v2925 = vor.u32 %v2922, %v2923
      %v2926 = vsel %vm1772, %v2914, %v2925
      %v2928 = vshrl.u32 %v2893, 16
      %v2930 = vrot.slane %v2928, 7
      %v2931 = vshll.u32 %v2893, 16
      %v2933 = vor.u32 %v2930, %v2931
      %v2934 = vsel %vm1772, %v2922, %v2933
      %v2936 = vshrl.u32 %v2894, 16
      %v2938 = vrot.slane %v2936, 7
      %v2939 = vshll.u32 %v2894, 16
      %v2941 = vor.u32 %v2938, %v2939
      %v2942 = vsel %vm1772, %v2930, %v2941
      %v2944 = vshrl.u32 %v2895, 16
      %v2946 = vrot.slane %v2944, 7
      %v2947 = vshll.u32 %v2895, 16
      %v2949 = vor.u32 %v2946, %v2947
      %v2950 = vsel %vm1772, %v2938, %v2949
      %v2952 = vshrl.u32 %v2896, 16
      %v2954 = vrot.slane %v2952, 7
      %v2955 = vshll.u32 %v2896, 16
      %v2957 = vor.u32 %v2954, %v2955
      %v2958 = vsel %vm1772, %v2946, %v2957
      %v2960 = vshrl.u32 %v2897, 16
      %v2962 = vrot.slane %v2960, 7
      %v2963 = vshll.u32 %v2897, 16
      %v2965 = vor.u32 %v2962, %v2963
      %v2966 = vsel %vm1772, %v2954, %v2965
      %v2968 = vshrl.u32 %v2898, 16
      %v2970 = vrot.slane %v2968, 7
      %v2971 = vshll.u32 %v2898, 16
      %v2973 = vor.u32 %v2970, %v2971
      %v2974 = vsel %vm1772, %v2962, %v2973
      %v2976 = vshrl.u32 %v2899, 16
      %v2978 = vrot.slane %v2976, 7
      %v2979 = vshll.u32 %v2899, 16
      %v2981 = vor.u32 %v2978, %v2979
      %v2982 = vsel %vm1772, %v2970, %v2981
      %v2984 = vshrl.u32 %v2900, 16
      %v2986 = vrot.slane %v2984, 7
      %v2987 = vshll.u32 %v2900, 16
      %v2989 = vor.u32 %v2986, %v2987
      %v2990 = vsel %vm1772, %v2978, %v2989
      %v2992 = vshrl.u32 %v2901, 16
      %v2994 = vrot.slane %v2992, 7
      %v2995 = vshll.u32 %v2901, 16
      %v2997 = vor.u32 %v2994, %v2995
      %v2998 = vsel %vm1772, %v2986, %v2997
      %v3000 = vshrl.u32 %v2902, 16
      %v3002 = vrot.slane %v3000, 7
      %v3003 = vshll.u32 %v2902, 16
      %v3005 = vor.u32 %v3002, %v3003
      %v3006 = vsel %vm1772, %v2994, %v3005
      %v3008 = vshrl.u32 %v2903, 16
      %v3010 = vrot.slane %v3008, 7
      %v3011 = vshll.u32 %v2903, 16
      %v3013 = vor.u32 %v3010, %v3011
      %v3014 = vsel %vm1772, %v3002, %v3013
      %v3016 = vshrl.u32 %v2904, 16
      %v3018 = vrot.slane %v3016, 7
      %v3019 = vshll.u32 %v2904, 16
      %v3021 = vor.u32 %v3018, %v3019
      %v3022 = vsel %vm1772, %v3010, %v3021
      %v3024 = vshrl.u32 %v2905, 16
      %v3026 = vrot.slane %v3024, 7
      %v3027 = vshll.u32 %v2905, 16
      %v3029 = vor.u32 %v3026, %v3027
      %v3030 = vsel %vm1772, %v3018, %v3029
      %v3032 = vshrl.u32 %v2906, 16
      %v3034 = vrot.slane %v3032, 7
      %v3035 = vshll.u32 %v2906, 16
      %v3037 = vor.u32 %v3034, %v3035
      %v3038 = vsel %vm1772, %v3026, %v3037
      %3039 = vrot.lane.b32.xlu0 %v2918, 12
      %v3040 = vpop.permute.xlu0 %3039
      %3041 = vrot.lane.b32.xlu0 %v2926, 12
      %v3042 = vpop.permute.xlu0 %3041
      %3043 = vrot.lane.b32.xlu0 %v2934, 12
      %v3044 = vpop.permute.xlu0 %3043
      %3045 = vrot.lane.b32.xlu0 %v2942, 12
      %v3046 = vpop.permute.xlu0 %3045
      %3047 = vrot.lane.b32.xlu0 %v2950, 12
      %v3048 = vpop.permute.xlu0 %3047
      %3049 = vrot.lane.b32.xlu0 %v2958, 12
      %v3050 = vpop.permute.xlu0 %3049
      %3051 = vrot.lane.b32.xlu0 %v2966, 12
      %v3052 = vpop.permute.xlu0 %3051
      %3053 = vrot.lane.b32.xlu0 %v2974, 12
      %v3054 = vpop.permute.xlu0 %3053
      %3055 = vrot.lane.b32.xlu0 %v2982, 12
      %v3056 = vpop.permute.xlu0 %3055
      %3057 = vrot.lane.b32.xlu0 %v2990, 12
      %v3058 = vpop.permute.xlu0 %3057
      %3059 = vrot.lane.b32.xlu0 %v2998, 12
      %v3060 = vpop.permute.xlu0 %3059
      %3061 = vrot.lane.b32.xlu0 %v3006, 12
      %v3062 = vpop.permute.xlu0 %3061
      %3063 = vrot.lane.b32.xlu0 %v3014, 12
      %v3064 = vpop.permute.xlu0 %3063
      %3065 = vrot.lane.b32.xlu0 %v3022, 12
      %v3066 = vpop.permute.xlu0 %3065
      %3067 = vrot.lane.b32.xlu0 %v3030, 12
      %v3068 = vpop.permute.xlu0 %3067
      %3069 = vrot.lane.b32.xlu0 %v3038, 12
      %v3070 = vpop.permute.xlu0 %3069
      %vm3087 = vcmask 130144
      %3088 = vst.msk [vmem:[#allocation3] sm:$0xff] %vm3087, %v3040
      %3089 = vst.msk [vmem:[#allocation3 + $0x8] sm:$0xff] %vm3087, %v3042
      %3090 = vst.msk [vmem:[#allocation3 + $0x10] sm:$0xff] %vm3087, %v3044
      %3091 = vst.msk [vmem:[#allocation3 + $0x18] sm:$0xff] %vm3087, %v3046
      %3092 = vst.msk [vmem:[#allocation3 + $0x20] sm:$0xff] %vm3087, %v3048
      %3093 = vst.msk [vmem:[#allocation3 + $0x28] sm:$0xff] %vm3087, %v3050
      %3094 = vst.msk [vmem:[#allocation3 + $0x30] sm:$0xff] %vm3087, %v3052
      %3095 = vst.msk [vmem:[#allocation3 + $0x38] sm:$0xff] %vm3087, %v3054
      %3096 = vst.msk [vmem:[#allocation3 + $0x40] sm:$0xff] %vm3087, %v3056
      %3097 = vst.msk [vmem:[#allocation3 + $0x48] sm:$0xff] %vm3087, %v3058
      %3098 = vst.msk [vmem:[#allocation3 + $0x50] sm:$0xff] %vm3087, %v3060
      %3099 = vst.msk [vmem:[#allocation3 + $0x58] sm:$0xff] %vm3087, %v3062
      %3100 = vst.msk [vmem:[#allocation3 + $0x60] sm:$0xff] %vm3087, %v3064
      %3101 = vst.msk [vmem:[#allocation3 + $0x68] sm:$0xff] %vm3087, %v3066
      %3102 = vst.msk [vmem:[#allocation3 + $0x70] sm:$0xff] %vm3087, %v3068
      %3103 = vst.msk [vmem:[#allocation3 + $0x78] sm:$0xff] %vm3087, %v3070
      %v3104 = vld [vmem:[#allocation2 + $0x10] sm:$0xff]
      %v3105 = vld [vmem:[#allocation2 + $0x18] sm:$0xff]
      %v3106 = vld [vmem:[#allocation2 + $0x20] sm:$0xff]
      %v3107 = vld [vmem:[#allocation2 + $0x28] sm:$0xff]
      %v3108 = vld [vmem:[#allocation2 + $0x30] sm:$0xff]
      %v3109 = vld [vmem:[#allocation2 + $0x38] sm:$0xff]
      %v3110 = vld [vmem:[#allocation2 + $0x40] sm:$0xff]
      %v3111 = vld [vmem:[#allocation2 + $0x48] sm:$0xff]
      %v3112 = vld [vmem:[#allocation2 + $0x50] sm:$0xff]
      %v3113 = vld [vmem:[#allocation2 + $0x58] sm:$0xff]
      %v3114 = vld [vmem:[#allocation2 + $0x60] sm:$0xff]
      %v3115 = vld [vmem:[#allocation2 + $0x68] sm:$0xff]
      %v3116 = vld [vmem:[#allocation2 + $0x70] sm:$0xff]
      %v3117 = vld [vmem:[#allocation2 + $0x78] sm:$0xff]
      %v3118 = vld [vmem:[#allocation2 + $0x80] sm:$0xff]
      %v3119 = vld [vmem:[#allocation2 + $0x88] sm:$0xff]
      %3136 = vrot.lane.b32.xlu0 %v3104, 16
      %v3137 = vpop.permute.xlu0 %3136
      %3138 = vrot.lane.b32.xlu0 %v3105, 16
      %v3139 = vpop.permute.xlu0 %3138
      %3140 = vrot.lane.b32.xlu0 %v3106, 16
      %v3141 = vpop.permute.xlu0 %3140
      %3142 = vrot.lane.b32.xlu0 %v3107, 16
      %v3143 = vpop.permute.xlu0 %3142
      %3144 = vrot.lane.b32.xlu0 %v3108, 16
      %v3145 = vpop.permute.xlu0 %3144
      %3146 = vrot.lane.b32.xlu0 %v3109, 16
      %v3147 = vpop.permute.xlu0 %3146
      %3148 = vrot.lane.b32.xlu0 %v3110, 16
      %v3149 = vpop.permute.xlu0 %3148
      %3150 = vrot.lane.b32.xlu0 %v3111, 16
      %v3151 = vpop.permute.xlu0 %3150
      %3152 = vrot.lane.b32.xlu0 %v3112, 16
      %v3153 = vpop.permute.xlu0 %3152
      %3154 = vrot.lane.b32.xlu0 %v3113, 16
      %v3155 = vpop.permute.xlu0 %3154
      %3156 = vrot.lane.b32.xlu0 %v3114, 16
      %v3157 = vpop.permute.xlu0 %3156
      %3158 = vrot.lane.b32.xlu0 %v3115, 16
      %v3159 = vpop.permute.xlu0 %3158
      %3160 = vrot.lane.b32.xlu0 %v3116, 16
      %v3161 = vpop.permute.xlu0 %3160
      %3162 = vrot.lane.b32.xlu0 %v3117, 16
      %v3163 = vpop.permute.xlu0 %3162
      %3164 = vrot.lane.b32.xlu0 %v3118, 16
      %v3165 = vpop.permute.xlu0 %3164
      %3166 = vrot.lane.b32.xlu0 %v3119, 16
      %v3167 = vpop.permute.xlu0 %3166
      %vm3184 = vcmask 162944
      %3185 = vst.msk [vmem:[#allocation3] sm:$0xff] %vm3184, %v3137
      %3186 = vst.msk [vmem:[#allocation3 + $0x8] sm:$0xff] %vm3184, %v3139
      %3187 = vst.msk [vmem:[#allocation3 + $0x10] sm:$0xff] %vm3184, %v3141
      %3188 = vst.msk [vmem:[#allocation3 + $0x18] sm:$0xff] %vm3184, %v3143
      %3189 = vst.msk [vmem:[#allocation3 + $0x20] sm:$0xff] %vm3184, %v3145
      %3190 = vst.msk [vmem:[#allocation3 + $0x28] sm:$0xff] %vm3184, %v3147
      %3191 = vst.msk [vmem:[#allocation3 + $0x30] sm:$0xff] %vm3184, %v3149
      %3192 = vst.msk [vmem:[#allocation3 + $0x38] sm:$0xff] %vm3184, %v3151
      %3193 = vst.msk [vmem:[#allocation3 + $0x40] sm:$0xff] %vm3184, %v3153
      %3194 = vst.msk [vmem:[#allocation3 + $0x48] sm:$0xff] %vm3184, %v3155
      %3195 = vst.msk [vmem:[#allocation3 + $0x50] sm:$0xff] %vm3184, %v3157
      %3196 = vst.msk [vmem:[#allocation3 + $0x58] sm:$0xff] %vm3184, %v3159
      %3197 = vst.msk [vmem:[#allocation3 + $0x60] sm:$0xff] %vm3184, %v3161
      %3198 = vst.msk [vmem:[#allocation3 + $0x68] sm:$0xff] %vm3184, %v3163
      %3199 = vst.msk [vmem:[#allocation3 + $0x70] sm:$0xff] %vm3184, %v3165
      %3200 = vst.msk [vmem:[#allocation3 + $0x78] sm:$0xff] %vm3184, %v3167
      %v3201 = vld [vmem:[#allocation2 + $0x10] sm:$0xff]
      %v3202 = vld [vmem:[#allocation2 + $0x18] sm:$0xff]
      %v3203 = vld [vmem:[#allocation2 + $0x20] sm:$0xff]
      %v3204 = vld [vmem:[#allocation2 + $0x28] sm:$0xff]
      %v3205 = vld [vmem:[#allocation2 + $0x30] sm:$0xff]
      %v3206 = vld [vmem:[#allocation2 + $0x38] sm:$0xff]
      %v3207 = vld [vmem:[#allocation2 + $0x40] sm:$0xff]
      %v3208 = vld [vmem:[#allocation2 + $0x48] sm:$0xff]
      %v3209 = vld [vmem:[#allocation2 + $0x50] sm:$0xff]
      %v3210 = vld [vmem:[#allocation2 + $0x58] sm:$0xff]
      %v3211 = vld [vmem:[#allocation2 + $0x60] sm:$0xff]
      %v3212 = vld [vmem:[#allocation2 + $0x68] sm:$0xff]
      %v3213 = vld [vmem:[#allocation2 + $0x70] sm:$0xff]
      %v3214 = vld [vmem:[#allocation2 + $0x78] sm:$0xff]
      %v3215 = vld [vmem:[#allocation2 + $0x80] sm:$0xff]
      %v3216 = vld [vmem:[#allocation2 + $0x88] sm:$0xff]
      %v3217 = vld [vmem:[#allocation2 + $0x90] sm:$0x1]
      %v3218 = vmul.bf16 %v3201, %v2521
      %v3219 = vmul.bf16 %v3202, %v2529
      %v3220 = vmul.bf16 %v3203, %v2537
      %v3221 = vmul.bf16 %v3204, %v2545
      %v3222 = vmul.bf16 %v3205, %v2553
      %v3223 = vmul.bf16 %v3206, %v2561
      %v3224 = vmul.bf16 %v3207, %v2569
      %v3225 = vmul.bf16 %v3208, %v2577
      %v3226 = vmul.bf16 %v3209, %v2585
      %v3227 = vmul.bf16 %v3210, %v2593
      %v3228 = vmul.bf16 %v3211, %v2601
      %v3229 = vmul.bf16 %v3212, %v2609
      %v3230 = vmul.bf16 %v3213, %v2617
      %v3231 = vmul.bf16 %v3214, %v2625
      %v3232 = vmul.bf16 %v3215, %v2633
      %v3233 = vmul.bf16 %v3216, %v2641
      %v3234 = vmul.bf16 %v3217, %v2637
      %v3236 = vshrl.u32 %v3218, 16
      %v3238 = vshll.u32 %v3218, 16
      %v3240 = vrot.slane %v3238, 1
      %v3241 = vor.u32 %v3236, %v3240
      %v3243 = vshll.u32 %v3219, 16
      %v3245 = vrot.slane %v3243, 1
      %v3246 = vsel %vm1610, %v3241, %v3245
      %v3247 = vshrl.u32 %v3219, 16
      %v3249 = vor.u32 %v3247, %v3245
      %v3251 = vshll.u32 %v3220, 16
      %v3253 = vrot.slane %v3251, 1
      %v3254 = vsel %vm1610, %v3249, %v3253
      %v3255 = vshrl.u32 %v3220, 16
      %v3257 = vor.u32 %v3255, %v3253
      %v3259 = vshll.u32 %v3221, 16
      %v3261 = vrot.slane %v3259, 1
      %v3262 = vsel %vm1610, %v3257, %v3261
      %v3263 = vshrl.u32 %v3221, 16
      %v3265 = vor.u32 %v3263, %v3261
      %v3267 = vshll.u32 %v3222, 16
      %v3269 = vrot.slane %v3267, 1
      %v3270 = vsel %vm1610, %v3265, %v3269
      %v3271 = vshrl.u32 %v3222, 16
      %v3273 = vor.u32 %v3271, %v3269
      %v3275 = vshll.u32 %v3223, 16
      %v3277 = vrot.slane %v3275, 1
      %v3278 = vsel %vm1610, %v3273, %v3277
      %v3279 = vshrl.u32 %v3223, 16
      %v3281 = vor.u32 %v3279, %v3277
      %v3283 = vshll.u32 %v3224, 16
      %v3285 = vrot.slane %v3283, 1
      %v3286 = vsel %vm1610, %v3281, %v3285
      %v3287 = vshrl.u32 %v3224, 16
      %v3289 = vor.u32 %v3287, %v3285
      %v3291 = vshll.u32 %v3225, 16
      %v3293 = vrot.slane %v3291, 1
      %v3294 = vsel %vm1610, %v3289, %v3293
      %v3295 = vshrl.u32 %v3225, 16
      %v3297 = vor.u32 %v3295, %v3293
      %v3299 = vshll.u32 %v3226, 16
      %v3301 = vrot.slane %v3299, 1
      %v3302 = vsel %vm1610, %v3297, %v3301
      %v3303 = vshrl.u32 %v3226, 16
      %v3305 = vor.u32 %v3303, %v3301
      %v3307 = vshll.u32 %v3227, 16
      %v3309 = vrot.slane %v3307, 1
      %v3310 = vsel %vm1610, %v3305, %v3309
      %v3311 = vshrl.u32 %v3227, 16
      %v3313 = vor.u32 %v3311, %v3309
      %v3315 = vshll.u32 %v3228, 16
      %v3317 = vrot.slane %v3315, 1
      %v3318 = vsel %vm1610, %v3313, %v3317
      %v3319 = vshrl.u32 %v3228, 16
      %v3321 = vor.u32 %v3319, %v3317
      %v3323 = vshll.u32 %v3229, 16
      %v3325 = vrot.slane %v3323, 1
      %v3326 = vsel %vm1610, %v3321, %v3325
      %v3327 = vshrl.u32 %v3229, 16
      %v3329 = vor.u32 %v3327, %v3325
      %v3331 = vshll.u32 %v3230, 16
      %v3333 = vrot.slane %v3331, 1
      %v3334 = vsel %vm1610, %v3329, %v3333
      %v3335 = vshrl.u32 %v3230, 16
      %v3337 = vor.u32 %v3335, %v3333
      %v3339 = vshll.u32 %v3231, 16
      %v3341 = vrot.slane %v3339, 1
      %v3342 = vsel %vm1610, %v3337, %v3341
      %v3343 = vshrl.u32 %v3231, 16
      %v3345 = vor.u32 %v3343, %v3341
      %v3347 = vshll.u32 %v3232, 16
      %v3349 = vrot.slane %v3347, 1
      %v3350 = vsel %vm1610, %v3345, %v3349
      %v3351 = vshrl.u32 %v3232, 16
      %v3353 = vor.u32 %v3351, %v3349
      %v3355 = vshll.u32 %v3233, 16
      %v3357 = vrot.slane %v3355, 1
      %v3358 = vsel %vm1610, %v3353, %v3357
      %v3359 = vshrl.u32 %v3233, 16
      %v3361 = vor.u32 %v3359, %v3357
      %v3363 = vshll.u32 %v3234, 16
      %v3365 = vrot.slane %v3363, 1
      %v3366 = vsel %vm1610, %v3361, %v3365
      %3367 = vrot.lane.b32.xlu0 %v3246, 20
      %v3368 = vpop.permute.xlu0 %3367
      %3369 = vrot.lane.b32.xlu0 %v3254, 20
      %v3370 = vpop.permute.xlu0 %3369
      %3371 = vrot.lane.b32.xlu0 %v3262, 20
      %v3372 = vpop.permute.xlu0 %3371
      %3373 = vrot.lane.b32.xlu0 %v3270, 20
      %v3374 = vpop.permute.xlu0 %3373
      %3375 = vrot.lane.b32.xlu0 %v3278, 20
      %v3376 = vpop.permute.xlu0 %3375
      %3377 = vrot.lane.b32.xlu0 %v3286, 20
      %v3378 = vpop.permute.xlu0 %3377
      %3379 = vrot.lane.b32.xlu0 %v3294, 20
      %v3380 = vpop.permute.xlu0 %3379
      %3381 = vrot.lane.b32.xlu0 %v3302, 20
      %v3382 = vpop.permute.xlu0 %3381
      %3383 = vrot.lane.b32.xlu0 %v3310, 20
      %v3384 = vpop.permute.xlu0 %3383
      %3385 = vrot.lane.b32.xlu0 %v3318, 20
      %v3386 = vpop.permute.xlu0 %3385
      %3387 = vrot.lane.b32.xlu0 %v3326, 20
      %v3388 = vpop.permute.xlu0 %3387
      %3389 = vrot.lane.b32.xlu0 %v3334, 20
      %v3390 = vpop.permute.xlu0 %3389
      %3391 = vrot.lane.b32.xlu0 %v3342, 20
      %v3392 = vpop.permute.xlu0 %3391
      %3393 = vrot.lane.b32.xlu0 %v3350, 20
      %v3394 = vpop.permute.xlu0 %3393
      %3395 = vrot.lane.b32.xlu0 %v3358, 20
      %v3396 = vpop.permute.xlu0 %3395
      %3397 = vrot.lane.b32.xlu0 %v3366, 20
      %v3398 = vpop.permute.xlu0 %3397
      %vm3415 = vcmask 195744
      %3416 = vst.msk [vmem:[#allocation3] sm:$0xff] %vm3415, %v3368
      %3417 = vst.msk [vmem:[#allocation3 + $0x8] sm:$0xff] %vm3415, %v3370
      %3418 = vst.msk [vmem:[#allocation3 + $0x10] sm:$0xff] %vm3415, %v3372
      %3419 = vst.msk [vmem:[#allocation3 + $0x18] sm:$0xff] %vm3415, %v3374
      %3420 = vst.msk [vmem:[#allocation3 + $0x20] sm:$0xff] %vm3415, %v3376
      %3421 = vst.msk [vmem:[#allocation3 + $0x28] sm:$0xff] %vm3415, %v3378
      %3422 = vst.msk [vmem:[#allocation3 + $0x30] sm:$0xff] %vm3415, %v3380
      %3423 = vst.msk [vmem:[#allocation3 + $0x38] sm:$0xff] %vm3415, %v3382
      %3424 = vst.msk [vmem:[#allocation3 + $0x40] sm:$0xff] %vm3415, %v3384
      %3425 = vst.msk [vmem:[#allocation3 + $0x48] sm:$0xff] %vm3415, %v3386
      %3426 = vst.msk [vmem:[#allocation3 + $0x50] sm:$0xff] %vm3415, %v3388
      %3427 = vst.msk [vmem:[#allocation3 + $0x58] sm:$0xff] %vm3415, %v3390
      %3428 = vst.msk [vmem:[#allocation3 + $0x60] sm:$0xff] %vm3415, %v3392
      %3429 = vst.msk [vmem:[#allocation3 + $0x68] sm:$0xff] %vm3415, %v3394
      %3430 = vst.msk [vmem:[#allocation3 + $0x70] sm:$0xff] %vm3415, %v3396
      %3431 = vst.msk [vmem:[#allocation3 + $0x78] sm:$0xff] %vm3415, %v3398
      %v3432 = vld [vmem:[#allocation2 + $0x10] sm:$0x80]
      %v3433 = vld [vmem:[#allocation2 + $0x18] sm:$0xff]
      %v3434 = vld [vmem:[#allocation2 + $0x20] sm:$0xff]
      %v3435 = vld [vmem:[#allocation2 + $0x28] sm:$0xff]
      %v3436 = vld [vmem:[#allocation2 + $0x30] sm:$0xff]
      %v3437 = vld [vmem:[#allocation2 + $0x38] sm:$0xff]
      %v3438 = vld [vmem:[#allocation2 + $0x40] sm:$0xff]
      %v3439 = vld [vmem:[#allocation2 + $0x48] sm:$0xff]
      %v3440 = vld [vmem:[#allocation2 + $0x50] sm:$0xff]
      %v3441 = vld [vmem:[#allocation2 + $0x58] sm:$0xff]
      %v3442 = vld [vmem:[#allocation2 + $0x60] sm:$0xff]
      %v3443 = vld [vmem:[#allocation2 + $0x68] sm:$0xff]
      %v3444 = vld [vmem:[#allocation2 + $0x70] sm:$0xff]
      %v3445 = vld [vmem:[#allocation2 + $0x78] sm:$0xff]
      %v3446 = vld [vmem:[#allocation2 + $0x80] sm:$0xff]
      %v3447 = vld [vmem:[#allocation2 + $0x88] sm:$0xff]
      %v3448 = vld [vmem:[#allocation2 + $0x90] sm:$0xff]
      %v3449 = vmul.bf16 %v3432, %v1614
      %v3450 = vmul.bf16 %v3433, %v1622
      %v3451 = vmul.bf16 %v3434, %v1630
      %v3452 = vmul.bf16 %v3435, %v1638
      %v3453 = vmul.bf16 %v3436, %v1646
      %v3454 = vmul.bf16 %v3437, %v1654
      %v3455 = vmul.bf16 %v3438, %v1662
      %v3456 = vmul.bf16 %v3439, %v1670
      %v3457 = vmul.bf16 %v3440, %v1678
      %v3458 = vmul.bf16 %v3441, %v1686
      %v3459 = vmul.bf16 %v3442, %v1694
      %v3460 = vmul.bf16 %v3443, %v1702
      %v3461 = vmul.bf16 %v3444, %v1710
      %v3462 = vmul.bf16 %v3445, %v1718
      %v3463 = vmul.bf16 %v3446, %v1726
      %v3464 = vmul.bf16 %v3447, %v1734
      %v3465 = vmul.bf16 %v3448, %v1737
      %v3467 = vshrl.u32 %v3449, 16
      %v3469 = vrot.slane %v3467, 7
      %v3471 = vshrl.u32 %v3450, 16
      %v3473 = vrot.slane %v3471, 7
      %v3474 = vshll.u32 %v3450, 16
      %v3476 = vor.u32 %v3473, %v3474
      %v3477 = vsel %vm1772, %v3469, %v3476
      %v3479 = vshrl.u32 %v3451, 16
      %v3481 = vrot.slane %v3479, 7
      %v3482 = vshll.u32 %v3451, 16
      %v3484 = vor.u32 %v3481, %v3482
      %v3485 = vsel %vm1772, %v3473, %v3484
      %v3487 = vshrl.u32 %v3452, 16
      %v3489 = vrot.slane %v3487, 7
      %v3490 = vshll.u32 %v3452, 16
      %v3492 = vor.u32 %v3489, %v3490
      %v3493 = vsel %vm1772, %v3481, %v3492
      %v3495 = vshrl.u32 %v3453, 16
      %v3497 = vrot.slane %v3495, 7
      %v3498 = vshll.u32 %v3453, 16
      %v3500 = vor.u32 %v3497, %v3498
      %v3501 = vsel %vm1772, %v3489, %v3500
      %v3503 = vshrl.u32 %v3454, 16
      %v3505 = vrot.slane %v3503, 7
      %v3506 = vshll.u32 %v3454, 16
      %v3508 = vor.u32 %v3505, %v3506
      %v3509 = vsel %vm1772, %v3497, %v3508
      %v3511 = vshrl.u32 %v3455, 16
      %v3513 = vrot.slane %v3511, 7
      %v3514 = vshll.u32 %v3455, 16
      %v3516 = vor.u32 %v3513, %v3514
      %v3517 = vsel %vm1772, %v3505, %v3516
      %v3519 = vshrl.u32 %v3456, 16
      %v3521 = vrot.slane %v3519, 7
      %v3522 = vshll.u32 %v3456, 16
      %v3524 = vor.u32 %v3521, %v3522
      %v3525 = vsel %vm1772, %v3513, %v3524
      %v3527 = vshrl.u32 %v3457, 16
      %v3529 = vrot.slane %v3527, 7
      %v3530 = vshll.u32 %v3457, 16
      %v3532 = vor.u32 %v3529, %v3530
      %v3533 = vsel %vm1772, %v3521, %v3532
      %v3535 = vshrl.u32 %v3458, 16
      %v3537 = vrot.slane %v3535, 7
      %v3538 = vshll.u32 %v3458, 16
      %v3540 = vor.u32 %v3537, %v3538
      %v3541 = vsel %vm1772, %v3529, %v3540
      %v3543 = vshrl.u32 %v3459, 16
      %v3545 = vrot.slane %v3543, 7
      %v3546 = vshll.u32 %v3459, 16
      %v3548 = vor.u32 %v3545, %v3546
      %v3549 = vsel %vm1772, %v3537, %v3548
      %v3551 = vshrl.u32 %v3460, 16
      %v3553 = vrot.slane %v3551, 7
      %v3554 = vshll.u32 %v3460, 16
      %v3556 = vor.u32 %v3553, %v3554
      %v3557 = vsel %vm1772, %v3545, %v3556
      %v3559 = vshrl.u32 %v3461, 16
      %v3561 = vrot.slane %v3559, 7
      %v3562 = vshll.u32 %v3461, 16
      %v3564 = vor.u32 %v3561, %v3562
      %v3565 = vsel %vm1772, %v3553, %v3564
      %v3567 = vshrl.u32 %v3462, 16
      %v3569 = vrot.slane %v3567, 7
      %v3570 = vshll.u32 %v3462, 16
      %v3572 = vor.u32 %v3569, %v3570
      %v3573 = vsel %vm1772, %v3561, %v3572
      %v3575 = vshrl.u32 %v3463, 16
      %v3577 = vrot.slane %v3575, 7
      %v3578 = vshll.u32 %v3463, 16
      %v3580 = vor.u32 %v3577, %v3578
      %v3581 = vsel %vm1772, %v3569, %v3580
      %v3583 = vshrl.u32 %v3464, 16
      %v3585 = vrot.slane %v3583, 7
      %v3586 = vshll.u32 %v3464, 16
      %v3588 = vor.u32 %v3585, %v3586
      %v3589 = vsel %vm1772, %v3577, %v3588
      %v3591 = vshrl.u32 %v3465, 16
      %v3593 = vrot.slane %v3591, 7
      %v3594 = vshll.u32 %v3465, 16
      %v3596 = vor.u32 %v3593, %v3594
      %v3597 = vsel %vm1772, %v3585, %v3596
      %3598 = vrot.lane.b32.xlu0 %v3477, 24
      %v3599 = vpop.permute.xlu0 %3598
      %3600 = vrot.lane.b32.xlu0 %v3485, 24
      %v3601 = vpop.permute.xlu0 %3600
      %3602 = vrot.lane.b32.xlu0 %v3493, 24
      %v3603 = vpop.permute.xlu0 %3602
      %3604 = vrot.lane.b32.xlu0 %v3501, 24
      %v3605 = vpop.permute.xlu0 %3604
      %3606 = vrot.lane.b32.xlu0 %v3509, 24
      %v3607 = vpop.permute.xlu0 %3606
      %3608 = vrot.lane.b32.xlu0 %v3517, 24
      %v3609 = vpop.permute.xlu0 %3608
      %3610 = vrot.lane.b32.xlu0 %v3525, 24
      %v3611 = vpop.permute.xlu0 %3610
      %3612 = vrot.lane.b32.xlu0 %v3533, 24
      %v3613 = vpop.permute.xlu0 %3612
      %3614 = vrot.lane.b32.xlu0 %v3541, 24
      %v3615 = vpop.permute.xlu0 %3614
      %3616 = vrot.lane.b32.xlu0 %v3549, 24
      %v3617 = vpop.permute.xlu0 %3616
      %3618 = vrot.lane.b32.xlu0 %v3557, 24
      %v3619 = vpop.permute.xlu0 %3618
      %3620 = vrot.lane.b32.xlu0 %v3565, 24
      %v3621 = vpop.permute.xlu0 %3620
      %3622 = vrot.lane.b32.xlu0 %v3573, 24
      %v3623 = vpop.permute.xlu0 %3622
      %3624 = vrot.lane.b32.xlu0 %v3581, 24
      %v3625 = vpop.permute.xlu0 %3624
      %3626 = vrot.lane.b32.xlu0 %v3589, 24
      %v3627 = vpop.permute.xlu0 %3626
      %3628 = vrot.lane.b32.xlu0 %v3597, 24
      %v3629 = vpop.permute.xlu0 %3628
      %vm3646 = vcmask 228544
      %3647 = vst.msk [vmem:[#allocation3] sm:$0xff] %vm3646, %v3599
      %3648 = vst.msk [vmem:[#allocation3 + $0x8] sm:$0xff] %vm3646, %v3601
      %3649 = vst.msk [vmem:[#allocation3 + $0x10] sm:$0xff] %vm3646, %v3603
      %3650 = vst.msk [vmem:[#allocation3 + $0x18] sm:$0xff] %vm3646, %v3605
      %3651 = vst.msk [vmem:[#allocation3 + $0x20] sm:$0xff] %vm3646, %v3607
      %3652 = vst.msk [vmem:[#allocation3 + $0x28] sm:$0xff] %vm3646, %v3609
      %3653 = vst.msk [vmem:[#allocation3 + $0x30] sm:$0xff] %vm3646, %v3611
      %3654 = vst.msk [vmem:[#allocation3 + $0x38] sm:$0xff] %vm3646, %v3613
      %3655 = vst.msk [vmem:[#allocation3 + $0x40] sm:$0xff] %vm3646, %v3615
      %3656 = vst.msk [vmem:[#allocation3 + $0x48] sm:$0xff] %vm3646, %v3617
      %3657 = vst.msk [vmem:[#allocation3 + $0x50] sm:$0xff] %vm3646, %v3619
      %3658 = vst.msk [vmem:[#allocation3 + $0x58] sm:$0xff] %vm3646, %v3621
      %3659 = vst.msk [vmem:[#allocation3 + $0x60] sm:$0xff] %vm3646, %v3623
      %3660 = vst.msk [vmem:[#allocation3 + $0x68] sm:$0xff] %vm3646, %v3625
      %3661 = vst.msk [vmem:[#allocation3 + $0x70] sm:$0xff] %vm3646, %v3627
      %3662 = vst.msk [vmem:[#allocation3 + $0x78] sm:$0xff] %vm3646, %v3629
      %v3663 = vld [vmem:[#allocation2 + $0x18] sm:$0xff]
      %v3664 = vld [vmem:[#allocation2 + $0x20] sm:$0xff]
      %v3665 = vld [vmem:[#allocation2 + $0x28] sm:$0xff]
      %v3666 = vld [vmem:[#allocation2 + $0x30] sm:$0xff]
      %v3667 = vld [vmem:[#allocation2 + $0x38] sm:$0xff]
      %v3668 = vld [vmem:[#allocation2 + $0x40] sm:$0xff]
      %v3669 = vld [vmem:[#allocation2 + $0x48] sm:$0xff]
      %v3670 = vld [vmem:[#allocation2 + $0x50] sm:$0xff]
      %v3671 = vld [vmem:[#allocation2 + $0x58] sm:$0xff]
      %v3672 = vld [vmem:[#allocation2 + $0x60] sm:$0xff]
      %v3673 = vld [vmem:[#allocation2 + $0x68] sm:$0xff]
      %v3674 = vld [vmem:[#allocation2 + $0x70] sm:$0xff]
      %v3675 = vld [vmem:[#allocation2 + $0x78] sm:$0xff]
      %v3676 = vld [vmem:[#allocation2 + $0x80] sm:$0xff]
      %v3677 = vld [vmem:[#allocation2 + $0x88] sm:$0xff]
      %v3678 = vld [vmem:[#allocation2 + $0x90] sm:$0xff]
      %3695 = vrot.lane.b32.xlu0 %v3663, 28
      %v3696 = vpop.permute.xlu0 %3695
      %3697 = vrot.lane.b32.xlu0 %v3664, 28
      %v3698 = vpop.permute.xlu0 %3697
      %3699 = vrot.lane.b32.xlu0 %v3665, 28
      %v3700 = vpop.permute.xlu0 %3699
      %3701 = vrot.lane.b32.xlu0 %v3666, 28
      %v3702 = vpop.permute.xlu0 %3701
      %3703 = vrot.lane.b32.xlu0 %v3667, 28
      %v3704 = vpop.permute.xlu0 %3703
      %3705 = vrot.lane.b32.xlu0 %v3668, 28
      %v3706 = vpop.permute.xlu0 %3705
      %3707 = vrot.lane.b32.xlu0 %v3669, 28
      %v3708 = vpop.permute.xlu0 %3707
      %3709 = vrot.lane.b32.xlu0 %v3670, 28
      %v3710 = vpop.permute.xlu0 %3709
      %3711 = vrot.lane.b32.xlu0 %v3671, 28
      %v3712 = vpop.permute.xlu0 %3711
      %3713 = vrot.lane.b32.xlu0 %v3672, 28
      %v3714 = vpop.permute.xlu0 %3713
      %3715 = vrot.lane.b32.xlu0 %v3673, 28
      %v3716 = vpop.permute.xlu0 %3715
      %3717 = vrot.lane.b32.xlu0 %v3674, 28
      %v3718 = vpop.permute.xlu0 %3717
      %3719 = vrot.lane.b32.xlu0 %v3675, 28
      %v3720 = vpop.permute.xlu0 %3719
      %3721 = vrot.lane.b32.xlu0 %v3676, 28
      %v3722 = vpop.permute.xlu0 %3721
      %3723 = vrot.lane.b32.xlu0 %v3677, 28
      %v3724 = vpop.permute.xlu0 %3723
      %3725 = vrot.lane.b32.xlu0 %v3678, 28
      %v3726 = vpop.permute.xlu0 %3725
      %vm3743 = vcmask 261344
      %3744 = vst.msk [vmem:[#allocation3] sm:$0xff] %vm3743, %v3696
      %3745 = vst.msk [vmem:[#allocation3 + $0x8] sm:$0xff] %vm3743, %v3698
      %3746 = vst.msk [vmem:[#allocation3 + $0x10] sm:$0xff] %vm3743, %v3700
      %3747 = vst.msk [vmem:[#allocation3 + $0x18] sm:$0xff] %vm3743, %v3702
      %3748 = vst.msk [vmem:[#allocation3 + $0x20] sm:$0xff] %vm3743, %v3704
      %3749 = vst.msk [vmem:[#allocation3 + $0x28] sm:$0xff] %vm3743, %v3706
      %3750 = vst.msk [vmem:[#allocation3 + $0x30] sm:$0xff] %vm3743, %v3708
      %3751 = vst.msk [vmem:[#allocation3 + $0x38] sm:$0xff] %vm3743, %v3710
      %3752 = vst.msk [vmem:[#allocation3 + $0x40] sm:$0xff] %vm3743, %v3712
      %3753 = vst.msk [vmem:[#allocation3 + $0x48] sm:$0xff] %vm3743, %v3714
      %3754 = vst.msk [vmem:[#allocation3 + $0x50] sm:$0xff] %vm3743, %v3716
      %3755 = vst.msk [vmem:[#allocation3 + $0x58] sm:$0xff] %vm3743, %v3718
      %3756 = vst.msk [vmem:[#allocation3 + $0x60] sm:$0xff] %vm3743, %v3720
      %3757 = vst.msk [vmem:[#allocation3 + $0x68] sm:$0xff] %vm3743, %v3722
      %3758 = vst.msk [vmem:[#allocation3 + $0x70] sm:$0xff] %vm3743, %v3724
      %3759 = vst.msk [vmem:[#allocation3 + $0x78] sm:$0xff] %vm3743, %v3726
      %v3760 = vld [vmem:[#allocation2 + $0x18] sm:$0xff]
      %v3761 = vld [vmem:[#allocation2 + $0x20] sm:$0xff]
      %v3762 = vld [vmem:[#allocation2 + $0x28] sm:$0xff]
      %v3763 = vld [vmem:[#allocation2 + $0x30] sm:$0xff]
      %v3764 = vld [vmem:[#allocation2 + $0x38] sm:$0xff]
      %v3765 = vld [vmem:[#allocation2 + $0x40] sm:$0xff]
      %v3766 = vld [vmem:[#allocation2 + $0x48] sm:$0xff]
      %v3767 = vld [vmem:[#allocation2 + $0x50] sm:$0xff]
      %v3768 = vld [vmem:[#allocation2 + $0x58] sm:$0xff]
      %v3769 = vld [vmem:[#allocation2 + $0x60] sm:$0xff]
      %v3770 = vld [vmem:[#allocation2 + $0x68] sm:$0xff]
      %v3771 = vld [vmem:[#allocation2 + $0x70] sm:$0xff]
      %v3772 = vld [vmem:[#allocation2 + $0x78] sm:$0xff]
      %v3773 = vld [vmem:[#allocation2 + $0x80] sm:$0xff]
      %v3774 = vld [vmem:[#allocation2 + $0x88] sm:$0xff]
      %v3775 = vld [vmem:[#allocation2 + $0x90] sm:$0xff]
      %v3776 = vld [vmem:[#allocation2 + $0x98] sm:$0x1]
      %v3777 = vmul.bf16 %v3760, %v2521
      %v3778 = vmul.bf16 %v3761, %v2529
      %v3779 = vmul.bf16 %v3762, %v2537
      %v3780 = vmul.bf16 %v3763, %v2545
      %v3781 = vmul.bf16 %v3764, %v2553
      %v3782 = vmul.bf16 %v3765, %v2561
      %v3783 = vmul.bf16 %v3766, %v2569
      %v3784 = vmul.bf16 %v3767, %v2577
      %v3785 = vmul.bf16 %v3768, %v2585
      %v3786 = vmul.bf16 %v3769, %v2593
      %v3787 = vmul.bf16 %v3770, %v2601
      %v3788 = vmul.bf16 %v3771, %v2609
      %v3789 = vmul.bf16 %v3772, %v2617
      %v3790 = vmul.bf16 %v3773, %v2625
      %v3791 = vmul.bf16 %v3774, %v2633
      %v3792 = vmul.bf16 %v3775, %v2641
      %v3793 = vmul.bf16 %v3776, %v2637
      %v3795 = vshrl.u32 %v3777, 16
      %v3797 = vshll.u32 %v3777, 16
      %v3799 = vrot.slane %v3797, 1
      %v3800 = vor.u32 %v3795, %v3799
      %v3802 = vshll.u32 %v3778, 16
      %v3804 = vrot.slane %v3802, 1
      %v3805 = vsel %vm1610, %v3800, %v3804
      %v3806 = vshrl.u32 %v3778, 16
      %v3808 = vor.u32 %v3806, %v3804
      %v3810 = vshll.u32 %v3779, 16
      %v3812 = vrot.slane %v3810, 1
      %v3813 = vsel %vm1610, %v3808, %v3812
      %v3814 = vshrl.u32 %v3779, 16
      %v3816 = vor.u32 %v3814, %v3812
      %v3818 = vshll.u32 %v3780, 16
      %v3820 = vrot.slane %v3818, 1
      %v3821 = vsel %vm1610, %v3816, %v3820
      %v3822 = vshrl.u32 %v3780, 16
      %v3824 = vor.u32 %v3822, %v3820
      %v3826 = vshll.u32 %v3781, 16
      %v3828 = vrot.slane %v3826, 1
      %v3829 = vsel %vm1610, %v3824, %v3828
      %v3830 = vshrl.u32 %v3781, 16
      %v3832 = vor.u32 %v3830, %v3828
      %v3834 = vshll.u32 %v3782, 16
      %v3836 = vrot.slane %v3834, 1
      %v3837 = vsel %vm1610, %v3832, %v3836
      %v3838 = vshrl.u32 %v3782, 16
      %v3840 = vor.u32 %v3838, %v3836
      %v3842 = vshll.u32 %v3783, 16
      %v3844 = vrot.slane %v3842, 1
      %v3845 = vsel %vm1610, %v3840, %v3844
      %v3846 = vshrl.u32 %v3783, 16
      %v3848 = vor.u32 %v3846, %v3844
      %v3850 = vshll.u32 %v3784, 16
      %v3852 = vrot.slane %v3850, 1
      %v3853 = vsel %vm1610, %v3848, %v3852
      %v3854 = vshrl.u32 %v3784, 16
      %v3856 = vor.u32 %v3854, %v3852
      %v3858 = vshll.u32 %v3785, 16
      %v3860 = vrot.slane %v3858, 1
      %v3861 = vsel %vm1610, %v3856, %v3860
      %v3862 = vshrl.u32 %v3785, 16
      %v3864 = vor.u32 %v3862, %v3860
      %v3866 = vshll.u32 %v3786, 16
      %v3868 = vrot.slane %v3866, 1
      %v3869 = vsel %vm1610, %v3864, %v3868
      %v3870 = vshrl.u32 %v3786, 16
      %v3872 = vor.u32 %v3870, %v3868
      %v3874 = vshll.u32 %v3787, 16
      %v3876 = vrot.slane %v3874, 1
      %v3877 = vsel %vm1610, %v3872, %v3876
      %v3878 = vshrl.u32 %v3787, 16
      %v3880 = vor.u32 %v3878, %v3876
      %v3882 = vshll.u32 %v3788, 16
      %v3884 = vrot.slane %v3882, 1
      %v3885 = vsel %vm1610, %v3880, %v3884
      %v3886 = vshrl.u32 %v3788, 16
      %v3888 = vor.u32 %v3886, %v3884
      %v3890 = vshll.u32 %v3789, 16
      %v3892 = vrot.slane %v3890, 1
      %v3893 = vsel %vm1610, %v3888, %v3892
      %v3894 = vshrl.u32 %v3789, 16
      %v3896 = vor.u32 %v3894, %v3892
      %v3898 = vshll.u32 %v3790, 16
      %v3900 = vrot.slane %v3898, 1
      %v3901 = vsel %vm1610, %v3896, %v3900
      %v3902 = vshrl.u32 %v3790, 16
      %v3904 = vor.u32 %v3902, %v3900
      %v3906 = vshll.u32 %v3791, 16
      %v3908 = vrot.slane %v3906, 1
      %v3909 = vsel %vm1610, %v3904, %v3908
      %v3910 = vshrl.u32 %v3791, 16
      %v3912 = vor.u32 %v3910, %v3908
      %v3914 = vshll.u32 %v3792, 16
      %v3916 = vrot.slane %v3914, 1
      %v3917 = vsel %vm1610, %v3912, %v3916
      %v3918 = vshrl.u32 %v3792, 16
      %v3920 = vor.u32 %v3918, %v3916
      %v3922 = vshll.u32 %v3793, 16
      %v3924 = vrot.slane %v3922, 1
      %v3925 = vsel %vm1610, %v3920, %v3924
      %3926 = vrot.lane.b32.xlu0 %v3805, 32
      %v3927 = vpop.permute.xlu0 %3926
      %3928 = vrot.lane.b32.xlu0 %v3813, 32
      %v3929 = vpop.permute.xlu0 %3928
      %3930 = vrot.lane.b32.xlu0 %v3821, 32
      %v3931 = vpop.permute.xlu0 %3930
      %3932 = vrot.lane.b32.xlu0 %v3829, 32
      %v3933 = vpop.permute.xlu0 %3932
      %3934 = vrot.lane.b32.xlu0 %v3837, 32
      %v3935 = vpop.permute.xlu0 %3934
      %3936 = vrot.lane.b32.xlu0 %v3845, 32
      %v3937 = vpop.permute.xlu0 %3936
      %3938 = vrot.lane.b32.xlu0 %v3853, 32
      %v3939 = vpop.permute.xlu0 %3938
      %3940 = vrot.lane.b32.xlu0 %v3861, 32
      %v3941 = vpop.permute.xlu0 %3940
      %3942 = vrot.lane.b32.xlu0 %v3869, 32
      %v3943 = vpop.permute.xlu0 %3942
      %3944 = vrot.lane.b32.xlu0 %v3877, 32
      %v3945 = vpop.permute.xlu0 %3944
      %3946 = vrot.lane.b32.xlu0 %v3885, 32
      %v3947 = vpop.permute.xlu0 %3946
      %3948 = vrot.lane.b32.xlu0 %v3893, 32
      %v3949 = vpop.permute.xlu0 %3948
      %3950 = vrot.lane.b32.xlu0 %v3901, 32
      %v3951 = vpop.permute.xlu0 %3950
      %3952 = vrot.lane.b32.xlu0 %v3909, 32
      %v3953 = vpop.permute.xlu0 %3952
      %3954 = vrot.lane.b32.xlu0 %v3917, 32
      %v3955 = vpop.permute.xlu0 %3954
      %3956 = vrot.lane.b32.xlu0 %v3925, 32
      %v3957 = vpop.permute.xlu0 %3956
      %vm3974 = vcmask 294144
      %3975 = vst.msk [vmem:[#allocation3] sm:$0xff] %vm3974, %v3927
      %3976 = vst.msk [vmem:[#allocation3 + $0x8] sm:$0xff] %vm3974, %v3929
      %3977 = vst.msk [vmem:[#allocation3 + $0x10] sm:$0xff] %vm3974, %v3931
      %3978 = vst.msk [vmem:[#allocation3 + $0x18] sm:$0xff] %vm3974, %v3933
      %3979 = vst.msk [vmem:[#allocation3 + $0x20] sm:$0xff] %vm3974, %v3935
      %3980 = vst.msk [vmem:[#allocation3 + $0x28] sm:$0xff] %vm3974, %v3937
      %3981 = vst.msk [vmem:[#allocation3 + $0x30] sm:$0xff] %vm3974, %v3939
      %3982 = vst.msk [vmem:[#allocation3 + $0x38] sm:$0xff] %vm3974, %v3941
      %3983 = vst.msk [vmem:[#allocation3 + $0x40] sm:$0xff] %vm3974, %v3943
      %3984 = vst.msk [vmem:[#allocation3 + $0x48] sm:$0xff] %vm3974, %v3945
      %3985 = vst.msk [vmem:[#allocation3 + $0x50] sm:$0xff] %vm3974, %v3947
      %3986 = vst.msk [vmem:[#allocation3 + $0x58] sm:$0xff] %vm3974, %v3949
      %3987 = vst.msk [vmem:[#allocation3 + $0x60] sm:$0xff] %vm3974, %v3951
      %3988 = vst.msk [vmem:[#allocation3 + $0x68] sm:$0xff] %vm3974, %v3953
      %3989 = vst.msk [vmem:[#allocation3 + $0x70] sm:$0xff] %vm3974, %v3955
      %3990 = vst.msk [vmem:[#allocation3 + $0x78] sm:$0xff] %vm3974, %v3957
      %v3991 = vld [vmem:[#allocation3] sm:$0xff]
      %v3992 = vld [vmem:[#allocation3 + $0x8] sm:$0xff]
      %v3993 = vld [vmem:[#allocation3 + $0x10] sm:$0xff]
      %v3994 = vld [vmem:[#allocation3 + $0x18] sm:$0xff]
      %v3995 = vld [vmem:[#allocation3 + $0x20] sm:$0xff]
      %v3996 = vld [vmem:[#allocation3 + $0x28] sm:$0xff]
      %v3997 = vld [vmem:[#allocation3 + $0x30] sm:$0xff]
      %v3998 = vld [vmem:[#allocation3 + $0x38] sm:$0xff]
      %v3999 = vld [vmem:[#allocation3 + $0x40] sm:$0xff]
      %v4000 = vld [vmem:[#allocation3 + $0x48] sm:$0xff]
      %v4001 = vld [vmem:[#allocation3 + $0x50] sm:$0xff]
      %v4002 = vld [vmem:[#allocation3 + $0x58] sm:$0xff]
      %v4003 = vld [vmem:[#allocation3 + $0x60] sm:$0xff]
      %v4004 = vld [vmem:[#allocation3 + $0x68] sm:$0xff]
      %v4005 = vld [vmem:[#allocation3 + $0x70] sm:$0xff]
      %v4006 = vld [vmem:[#allocation3 + $0x78] sm:$0xff]
      %v4007 = vld [vmem:[%s3] sm:$0xf]
      %v4008 = vld [vmem:[%s3 + $0x4] sm:$0xf]
      %v4009 = vld [vmem:[%s3 + $0x8] sm:$0xf]
      %v4010 = vld [vmem:[%s3 + $0xc] sm:$0xf]
      %v4011 = vld [vmem:[%s3 + $0x10] sm:$0x3]
      %v4012 = vld [vmem:[%s4] sm:$0x1]
      %v4014 = vlaneseq
      %v4015 = vshrl.u32 %v4014, 7
      %v4016 = vsub.s32 0, %v4015
      %v4017 = vrot.slane %v4012, %v4016
      %v4024 = vunpack.c.l.b16 %v4007
      %v4025 = vunpack.c.l.b16 %v4008
      %v4026 = vunpack.c.l.b16 %v4009
      %v4027 = vunpack.c.l.b16 %v4010
      %v4028 = vunpack.c.l.b16 %v4011
      %v4029 = vpack.c.b16 %v4025, %v4024
      %v4030 = vpack.c.b16 %v4027, %v4026
      %v4031 = vpack.c.b16 %v4028, %v4028
      %vm4034 = vcmask 293888
      %v4036 = vsel %vm4034, %v3991, 0
      %v4039 = vsel %vm4034, %v3992, 0
      %v4042 = vsel %vm4034, %v3993, 0
      %v4045 = vsel %vm4034, %v3994, 0
      %v4048 = vsel %vm4034, %v3995, 0
      %v4051 = vsel %vm4034, %v3996, 0
      %v4054 = vsel %vm4034, %v3997, 0
      %v4057 = vsel %vm4034, %v3998, 0
      %v4060 = vsel %vm4034, %v3999, 0
      %v4063 = vsel %vm4034, %v4000, 0
      %v4066 = vsel %vm4034, %v4001, 0
      %v4069 = vsel %vm4034, %v4002, 0
      %v4072 = vsel %vm4034, %v4003, 0
      %v4075 = vsel %vm4034, %v4004, 0
      %v4078 = vsel %vm4034, %v4005, 0
      %v4081 = vsel %vm4034, %v4006, 0
      %vm4083 = vcmask 1041408
      %v4085 = vsel %vm4083, %v4031, 0
      %4087 = vmatprep.subr.bf16.mxu0 0
      %4088 = vmatpush1.bf16.msra.mxu0 %v4029
      %4089 = vmatprep.subr.bf16.mxu0 0
      %4090 = vmatpush1.bf16.msra.mxu0 %v4030
      %4091 = vmatprep.subr.bf16.mxu0 0
      %4092 = vmatpush1.bf16.msra.mxu0 %v4085
      %4093 = vmatprep.subr.bf16.mxu0 0
      %4094 = vmatpush1.bf16.msra.mxu0 0
      %4095 = vmatprep.subr.bf16.mxu0 0
      %4096 = vmatpush1.bf16.msra.mxu0 0
      %4097 = vmatprep.subr.bf16.mxu0 0
      %4098 = vmatpush1.bf16.msra.mxu0 0
      %4099 = vmatprep.subr.bf16.mxu0 0
      %4100 = vmatpush1.bf16.msra.mxu0 0
      %4101 = vmatprep.subr.bf16.mxu0 0
      %4102 = vmatpush1.bf16.msra.mxu0 0
      %4103 = vmatprep.subr.bf16.mxu0 0
      %4104 = vmatpush1.bf16.msra.mxu0 0
      %4105 = vmatprep.subr.bf16.mxu0 0
      %4106 = vmatpush1.bf16.msra.mxu0 0
      %4107 = vmatprep.subr.bf16.mxu0 0
      %4108 = vmatpush1.bf16.msra.mxu0 0
      %4109 = vmatprep.subr.bf16.mxu0 0
      %4110 = vmatpush1.bf16.msra.mxu0 0
      %4111 = vmatprep.subr.bf16.mxu0 0
      %4112 = vmatpush1.bf16.msra.mxu0 0
      %4113 = vmatprep.subr.bf16.mxu0 0
      %4114 = vmatpush1.bf16.msra.mxu0 0
      %4115 = vmatprep.subr.bf16.mxu0 0
      %4116 = vmatpush1.bf16.msra.mxu0 0
      %4117 = vmatprep.subr.bf16.mxu0 0
      %4118 = vmatpush1.bf16.msra.mxu0 0
      %4119 = vmatprep.mubr.bf16.mxu0 0
      %4120 = vmatmul.mubr.bf16.gmra.mrb[0].mxu0 %v4036
      %v4121 = vpop.f32.mrb[0].mxu0
      %v4122 = vadd.f32 %v4017, %v4121
      %v4123 = vpop.f32.mrb[0].mxu0
      %v4124 = vpop.f32.mrb[0].mxu0
      %v4125 = vadd.f32 %v4017, %v4124
      %v4126 = vpop.f32.mrb[0].mxu0
      %4127 = vmatprep.mubr.bf16.mxu0 0
      %4128 = vmatmul.mubr.bf16.gmra.mrb[0].mxu0 %v4039
      %v4129 = vpop.f32.mrb[0].mxu0
      %v4130 = vadd.f32 %v4017, %v4129
      %v4131 = vpop.f32.mrb[0].mxu0
      %v4132 = vpop.f32.mrb[0].mxu0
      %v4133 = vadd.f32 %v4017, %v4132
      %v4134 = vpop.f32.mrb[0].mxu0
      %4135 = vmatprep.mubr.bf16.mxu0 0
      %4136 = vmatmul.mubr.bf16.gmra.mrb[0].mxu0 %v4042
      %v4137 = vpop.f32.mrb[0].mxu0
      %v4138 = vadd.f32 %v4017, %v4137
      %v4139 = vpop.f32.mrb[0].mxu0
      %v4140 = vpop.f32.mrb[0].mxu0
      %v4141 = vadd.f32 %v4017, %v4140
      %v4142 = vpop.f32.mrb[0].mxu0
      %4143 = vmatprep.mubr.bf16.mxu0 0
      %4144 = vmatmul.mubr.bf16.gmra.mrb[0].mxu0 %v4045
      %v4145 = vpop.f32.mrb[0].mxu0
      %v4146 = vadd.f32 %v4017, %v4145
      %v4147 = vpop.f32.mrb[0].mxu0
      %v4148 = vpop.f32.mrb[0].mxu0
      %v4149 = vadd.f32 %v4017, %v4148
      %v4150 = vpop.f32.mrb[0].mxu0
      %4151 = vmatprep.mubr.bf16.mxu0 0
      %4152 = vmatmul.mubr.bf16.gmra.mrb[0].mxu0 %v4048
      %v4153 = vpop.f32.mrb[0].mxu0
      %v4154 = vadd.f32 %v4017, %v4153
      %v4155 = vpop.f32.mrb[0].mxu0
      %v4156 = vpop.f32.mrb[0].mxu0
      %v4157 = vadd.f32 %v4017, %v4156
      %v4158 = vpop.f32.mrb[0].mxu0
      %4159 = vmatprep.mubr.bf16.mxu0 0
      %4160 = vmatmul.mubr.bf16.gmra.mrb[0].mxu0 %v4051
      %v4161 = vpop.f32.mrb[0].mxu0
      %v4162 = vadd.f32 %v4017, %v4161
      %v4163 = vpop.f32.mrb[0].mxu0
      %v4164 = vpop.f32.mrb[0].mxu0
      %v4165 = vadd.f32 %v4017, %v4164
      %v4166 = vpop.f32.mrb[0].mxu0
      %4167 = vmatprep.mubr.bf16.mxu0 0
      %4168 = vmatmul.mubr.bf16.gmra.mrb[0].mxu0 %v4054
      %v4169 = vpop.f32.mrb[0].mxu0
      %v4170 = vadd.f32 %v4017, %v4169
      %v4171 = vpop.f32.mrb[0].mxu0
      %v4172 = vpop.f32.mrb[0].mxu0
      %v4173 = vadd.f32 %v4017, %v4172
      %v4174 = vpop.f32.mrb[0].mxu0
      %4175 = vmatprep.mubr.bf16.mxu0 0
      %4176 = vmatmul.mubr.bf16.gmra.mrb[0].mxu0 %v4057
      %v4177 = vpop.f32.mrb[0].mxu0
      %v4178 = vadd.f32 %v4017, %v4177
      %v4179 = vpop.f32.mrb[0].mxu0
      %v4180 = vpop.f32.mrb[0].mxu0
      %v4181 = vadd.f32 %v4017, %v4180
      %v4182 = vpop.f32.mrb[0].mxu0
      %4183 = vmatprep.mubr.bf16.mxu0 0
      %4184 = vmatmul.mubr.bf16.gmra.mrb[0].mxu0 %v4060
      %v4185 = vpop.f32.mrb[0].mxu0
      %v4186 = vadd.f32 %v4017, %v4185
      %v4187 = vpop.f32.mrb[0].mxu0
      %v4188 = vpop.f32.mrb[0].mxu0
      %v4189 = vadd.f32 %v4017, %v4188
      %v4190 = vpop.f32.mrb[0].mxu0
      %4191 = vmatprep.mubr.bf16.mxu0 0
      %4192 = vmatmul.mubr.bf16.gmra.mrb[0].mxu0 %v4063
      %v4193 = vpop.f32.mrb[0].mxu0
      %v4194 = vadd.f32 %v4017, %v4193
      %v4195 = vpop.f32.mrb[0].mxu0
      %v4196 = vpop.f32.mrb[0].mxu0
      %v4197 = vadd.f32 %v4017, %v4196
      %v4198 = vpop.f32.mrb[0].mxu0
      %4199 = vmatprep.mubr.bf16.mxu0 0
      %4200 = vmatmul.mubr.bf16.gmra.mrb[0].mxu0 %v4066
      %v4201 = vpop.f32.mrb[0].mxu0
      %v4202 = vadd.f32 %v4017, %v4201
      %v4203 = vpop.f32.mrb[0].mxu0
      %v4204 = vpop.f32.mrb[0].mxu0
      %v4205 = vadd.f32 %v4017, %v4204
      %v4206 = vpop.f32.mrb[0].mxu0
      %4207 = vmatprep.mubr.bf16.mxu0 0
      %4208 = vmatmul.mubr.bf16.gmra.mrb[0].mxu0 %v4069
      %v4209 = vpop.f32.mrb[0].mxu0
      %v4210 = vadd.f32 %v4017, %v4209
      %v4211 = vpop.f32.mrb[0].mxu0
      %v4212 = vpop.f32.mrb[0].mxu0
      %v4213 = vadd.f32 %v4017, %v4212
      %v4214 = vpop.f32.mrb[0].mxu0
      %4215 = vmatprep.mubr.bf16.mxu0 0
      %4216 = vmatmul.mubr.bf16.gmra.mrb[0].mxu0 %v4072
      %v4217 = vpop.f32.mrb[0].mxu0
      %v4218 = vadd.f32 %v4017, %v4217
      %v4219 = vpop.f32.mrb[0].mxu0
      %v4220 = vpop.f32.mrb[0].mxu0
      %v4221 = vadd.f32 %v4017, %v4220
      %v4222 = vpop.f32.mrb[0].mxu0
      %4223 = vmatprep.mubr.bf16.mxu0 0
      %4224 = vmatmul.mubr.bf16.gmra.mrb[0].mxu0 %v4075
      %v4225 = vpop.f32.mrb[0].mxu0
      %v4226 = vadd.f32 %v4017, %v4225
      %v4227 = vpop.f32.mrb[0].mxu0
      %v4228 = vpop.f32.mrb[0].mxu0
      %v4229 = vadd.f32 %v4017, %v4228
      %v4230 = vpop.f32.mrb[0].mxu0
      %4231 = vmatprep.mubr.bf16.mxu0 0
      %4232 = vmatmul.mubr.bf16.gmra.mrb[0].mxu0 %v4078
      %v4233 = vpop.f32.mrb[0].mxu0
      %v4234 = vadd.f32 %v4017, %v4233
      %v4235 = vpop.f32.mrb[0].mxu0
      %v4236 = vpop.f32.mrb[0].mxu0
      %v4237 = vadd.f32 %v4017, %v4236
      %v4238 = vpop.f32.mrb[0].mxu0
      %4239 = vmatprep.mubr.bf16.mxu0 0
      %4240 = vmatmul.mubr.bf16.gmra.mrb[0].mxu0 %v4081
      %v4241 = vpop.f32.mrb[0].mxu0
      %v4242 = vadd.f32 %v4017, %v4241
      %v4243 = vpop.f32.mrb[0].mxu0
      %v4244 = vpop.f32.mrb[0].mxu0
      %v4245 = vadd.f32 %v4017, %v4244
      %v4246 = vpop.f32.mrb[0].mxu0
      %4247 = vdwg.mxu0
      %4248 = vst.msk [vmem:[#allocation4] sm:$0xff] %vm415, %v4122
      %4249 = vst.msk [vmem:[#allocation4 + $0x8] sm:$0xff] %vm415, %v4125
      %4250 = vst.msk [vmem:[#allocation4 + $0x10] sm:$0xff] %vm415, %v4130
      %4251 = vst.msk [vmem:[#allocation4 + $0x18] sm:$0xff] %vm415, %v4133
      %4252 = vst.msk [vmem:[#allocation4 + $0x20] sm:$0xff] %vm415, %v4138
      %4253 = vst.msk [vmem:[#allocation4 + $0x28] sm:$0xff] %vm415, %v4141
      %4254 = vst.msk [vmem:[#allocation4 + $0x30] sm:$0xff] %vm415, %v4146
      %4255 = vst.msk [vmem:[#allocation4 + $0x38] sm:$0xff] %vm415, %v4149
      %4256 = vst.msk [vmem:[#allocation4 + $0x40] sm:$0xff] %vm415, %v4154
      %4257 = vst.msk [vmem:[#allocation4 + $0x48] sm:$0xff] %vm415, %v4157
      %4258 = vst.msk [vmem:[#allocation4 + $0x50] sm:$0xff] %vm415, %v4162
      %4259 = vst.msk [vmem:[#allocation4 + $0x58] sm:$0xff] %vm415, %v4165
      %4260 = vst.msk [vmem:[#allocation4 + $0x60] sm:$0xff] %vm415, %v4170
      %4261 = vst.msk [vmem:[#allocation4 + $0x68] sm:$0xff] %vm415, %v4173
      %4262 = vst.msk [vmem:[#allocation4 + $0x70] sm:$0xff] %vm415, %v4178
      %4263 = vst.msk [vmem:[#allocation4 + $0x78] sm:$0xff] %vm415, %v4181
      %4264 = vst.msk [vmem:[#allocation4 + $0x80] sm:$0xff] %vm415, %v4186
      %4265 = vst.msk [vmem:[#allocation4 + $0x88] sm:$0xff] %vm415, %v4189
      %4266 = vst.msk [vmem:[#allocation4 + $0x90] sm:$0xff] %vm415, %v4194
      %4267 = vst.msk [vmem:[#allocation4 + $0x98] sm:$0xff] %vm415, %v4197
      %4268 = vst.msk [vmem:[#allocation4 + $0xa0] sm:$0xff] %vm415, %v4202
      %4269 = vst.msk [vmem:[#allocation4 + $0xa8] sm:$0xff] %vm415, %v4205
      %4270 = vst.msk [vmem:[#allocation4 + $0xb0] sm:$0xff] %vm415, %v4210
      %4271 = vst.msk [vmem:[#allocation4 + $0xb8] sm:$0xff] %vm415, %v4213
      %4272 = vst.msk [vmem:[#allocation4 + $0xc0] sm:$0xff] %vm415, %v4218
      %4273 = vst.msk [vmem:[#allocation4 + $0xc8] sm:$0xff] %vm415, %v4221
      %4274 = vst.msk [vmem:[#allocation4 + $0xd0] sm:$0xff] %vm415, %v4226
      %4275 = vst.msk [vmem:[#allocation4 + $0xd8] sm:$0xff] %vm415, %v4229
      %4276 = vst.msk [vmem:[#allocation4 + $0xe0] sm:$0xff] %vm415, %v4234
      %4277 = vst.msk [vmem:[#allocation4 + $0xe8] sm:$0xff] %vm415, %v4237
      %4278 = vst.msk [vmem:[#allocation4 + $0xf0] sm:$0xff] %vm415, %v4242
      %4279 = vst.msk [vmem:[#allocation4 + $0xf8] sm:$0xff] %vm415, %v4245
      %v4280 = vld [vmem:[#allocation4] ss:$2 sm:$0xff]
      %v4281 = vld [vmem:[%s485] ss:$2 sm:$0xff]
      %v4282 = vld [vmem:[%s487] ss:$2 sm:$0xff]
      %v4283 = vld [vmem:[%s489] ss:$2 sm:$0xff]
      %v4284 = vld [vmem:[%s491] ss:$2 sm:$0xff]
      %v4285 = vld [vmem:[%s493] ss:$2 sm:$0xff]
      %v4286 = vld [vmem:[%s495] ss:$2 sm:$0xff]
      %v4287 = vld [vmem:[%s497] ss:$2 sm:$0xff]
      %v4288 = vld [vmem:[%s499] ss:$2 sm:$0xff]
      %v4289 = vld [vmem:[%s501] ss:$2 sm:$0xff]
      %v4290 = vld [vmem:[%s503] ss:$2 sm:$0xff]
      %v4291 = vld [vmem:[%s505] ss:$2 sm:$0xff]
      %v4292 = vld [vmem:[%s507] ss:$2 sm:$0xff]
      %v4293 = vld [vmem:[%s509] ss:$2 sm:$0xff]
      %v4294 = vld [vmem:[%s511] ss:$2 sm:$0xff]
      %v4295 = vld [vmem:[%s513] ss:$2 sm:$0xff]
      %v4296 = vld [vmem:[%s515] ss:$2 sm:$0xff]
      %v4297 = vld [vmem:[%s517] ss:$2 sm:$0xff]
      %v4298 = vld [vmem:[%s519] ss:$2 sm:$0xff]
      %v4299 = vld [vmem:[%s521] ss:$2 sm:$0xff]
      %v4300 = vld [vmem:[%s523] ss:$2 sm:$0xff]
      %v4301 = vld [vmem:[%s525] ss:$2 sm:$0xff]
      %v4302 = vld [vmem:[%s527] ss:$2 sm:$0xff]
      %v4303 = vld [vmem:[%s529] ss:$2 sm:$0xff]
      %v4304 = vld [vmem:[%s531] ss:$2 sm:$0xff]
      %v4305 = vld [vmem:[%s533] ss:$2 sm:$0xff]
      %v4306 = vld [vmem:[%s535] ss:$2 sm:$0xff]
      %v4307 = vld [vmem:[%s537] ss:$2 sm:$0xff]
      %v4308 = vld [vmem:[%s539] ss:$2 sm:$0xff]
      %v4309 = vld [vmem:[%s541] ss:$2 sm:$0xff]
      %v4310 = vld [vmem:[%s543] ss:$2 sm:$0xff]
      %v4311 = vld [vmem:[%s545] ss:$2 sm:$0xff]
      %v4312 = vadd.f32 %v4280, %v4296
      %v4313 = vadd.f32 %v4281, %v4297
      %v4314 = vadd.f32 %v4282, %v4298
      %v4315 = vadd.f32 %v4283, %v4299
      %v4316 = vadd.f32 %v4284, %v4300
      %v4317 = vadd.f32 %v4285, %v4301
      %v4318 = vadd.f32 %v4286, %v4302
      %v4319 = vadd.f32 %v4287, %v4303
      %v4320 = vadd.f32 %v4288, %v4304
      %v4321 = vadd.f32 %v4289, %v4305
      %v4322 = vadd.f32 %v4290, %v4306
      %v4323 = vadd.f32 %v4291, %v4307
      %v4324 = vadd.f32 %v4292, %v4308
      %v4325 = vadd.f32 %v4293, %v4309
      %v4326 = vadd.f32 %v4294, %v4310
      %v4327 = vadd.f32 %v4295, %v4311
      %4328 = vst.msk [vmem:[#allocation5] sm:$0xff] %vm415, %v4312
      %4329 = vst.msk [vmem:[#allocation5 + $0x8] sm:$0xff] %vm415, %v4313
      %4330 = vst.msk [vmem:[#allocation5 + $0x10] sm:$0xff] %vm415, %v4314
      %4331 = vst.msk [vmem:[#allocation5 + $0x18] sm:$0xff] %vm415, %v4315
      %4332 = vst.msk [vmem:[#allocation5 + $0x20] sm:$0xff] %vm415, %v4316
      %4333 = vst.msk [vmem:[#allocation5 + $0x28] sm:$0xff] %vm415, %v4317
      %4334 = vst.msk [vmem:[#allocation5 + $0x30] sm:$0xff] %vm415, %v4318
      %4335 = vst.msk [vmem:[#allocation5 + $0x38] sm:$0xff] %vm415, %v4319
      %4336 = vst.msk [vmem:[#allocation5 + $0x40] sm:$0xff] %vm415, %v4320
      %4337 = vst.msk [vmem:[#allocation5 + $0x48] sm:$0xff] %vm415, %v4321
      %4338 = vst.msk [vmem:[#allocation5 + $0x50] sm:$0xff] %vm415, %v4322
      %4339 = vst.msk [vmem:[#allocation5 + $0x58] sm:$0xff] %vm415, %v4323
      %4340 = vst.msk [vmem:[#allocation5 + $0x60] sm:$0xff] %vm415, %v4324
      %4341 = vst.msk [vmem:[#allocation5 + $0x68] sm:$0xff] %vm415, %v4325
      %4342 = vst.msk [vmem:[#allocation5 + $0x70] sm:$0xff] %vm415, %v4326
      %4343 = vst.msk [vmem:[#allocation5 + $0x78] sm:$0xff] %vm415, %v4327
      %v4344 = vld [vmem:[#allocation5] sm:$0xff]
      %v4345 = vld [vmem:[#allocation5 + $0x10] sm:$0xff]
      %v4346 = vld [vmem:[#allocation5 + $0x20] sm:$0xff]
      %v4347 = vld [vmem:[#allocation5 + $0x30] sm:$0xff]
      %v4348 = vld [vmem:[#allocation5 + $0x40] sm:$0xff]
      %v4349 = vld [vmem:[#allocation5 + $0x50] sm:$0xff]
      %v4350 = vld [vmem:[#allocation5 + $0x60] sm:$0xff]
      %v4351 = vld [vmem:[#allocation5 + $0x70] sm:$0xff]
      %v4352 = vld [vmem:[%s587] sm:$0xff]
      %v4353 = vld [vmem:[%s587 + $0x10] sm:$0xff]
      %v4354 = vld [vmem:[%s587 + $0x20] sm:$0xff]
      %v4355 = vld [vmem:[%s587 + $0x30] sm:$0xff]
      %v4356 = vld [vmem:[%s587 + $0x40] sm:$0xff]
      %v4357 = vld [vmem:[%s587 + $0x50] sm:$0xff]
      %v4358 = vld [vmem:[%s587 + $0x60] sm:$0xff]
      %v4359 = vld [vmem:[%s587 + $0x70] sm:$0xff]
      %v4360 = vadd.f32 %v4344, %v4352
      %v4361 = vadd.f32 %v4345, %v4353
      %v4362 = vadd.f32 %v4346, %v4354
      %v4363 = vadd.f32 %v4347, %v4355
      %v4364 = vadd.f32 %v4348, %v4356
      %v4365 = vadd.f32 %v4349, %v4357
      %v4366 = vadd.f32 %v4350, %v4358
      %v4367 = vadd.f32 %v4351, %v4359
      %v4368 = vmul.f32 %v4360, 0.25
      %v4369 = vmul.f32 %v4361, 0.25
      %v4370 = vmul.f32 %v4362, 0.25
      %v4371 = vmul.f32 %v4363, 0.25
      %v4372 = vmul.f32 %v4364, 0.25
      %v4373 = vmul.f32 %v4365, 0.25
      %v4374 = vmul.f32 %v4366, 0.25
      %v4375 = vmul.f32 %v4367, 0.25
      %v4376 = vld [vmem:[%s10] sm:$0x1]
      %v4377 = vld [vmem:[%s11] sm:$0x1]
      %v4378 = vsel %vm415, %v4368, 0.0
      %v4379 = vsel %vm415, %v4369, 0.0
      %v4380 = vadd.f32 %v4378, %v4379
      %v4381 = vsel %vm415, %v4370, 0.0
      %v4382 = vadd.f32 %v4380, %v4381
      %v4383 = vsel %vm415, %v4371, 0.0
      %v4384 = vadd.f32 %v4382, %v4383
      %v4385 = vsel %vm415, %v4372, 0.0
      %v4386 = vadd.f32 %v4384, %v4385
      %v4387 = vsel %vm415, %v4373, 0.0
      %v4388 = vadd.f32 %v4386, %v4387
      %v4389 = vsel %vm415, %v4374, 0.0
      %v4390 = vadd.f32 %v4388, %v4389
      %v4391 = vsel %vm415, %v4375, 0.0
      %v4392 = vadd.f32 %v4390, %v4391
      %v4393 = vrot.slane %v4392, 4
      %v4394 = vadd.f32 %v4392, %v4393
      %v4395 = vrot.slane %v4394, 2
      %v4396 = vadd.f32 %v4394, %v4395
      %v4397 = vrot.slane %v4396, 1
      %v4398 = vadd.f32 %v4396, %v4397
      %v4399 = vmul.f32 %v4368, %v4368
      %v4400 = vmul.f32 %v4369, %v4369
      %v4401 = vmul.f32 %v4370, %v4370
      %v4402 = vmul.f32 %v4371, %v4371
      %v4403 = vmul.f32 %v4372, %v4372
      %v4404 = vmul.f32 %v4373, %v4373
      %v4405 = vmul.f32 %v4374, %v4374
      %v4406 = vmul.f32 %v4375, %v4375
      %v4407 = vsel %vm415, %v4399, 0.0
      %v4408 = vsel %vm415, %v4400, 0.0
      %v4409 = vadd.f32 %v4407, %v4408
      %v4410 = vsel %vm415, %v4401, 0.0
      %v4411 = vadd.f32 %v4409, %v4410
      %v4412 = vsel %vm415, %v4402, 0.0
      %v4413 = vadd.f32 %v4411, %v4412
      %v4414 = vsel %vm415, %v4403, 0.0
      %v4415 = vadd.f32 %v4413, %v4414
      %v4416 = vsel %vm415, %v4404, 0.0
      %v4417 = vadd.f32 %v4415, %v4416
      %v4418 = vsel %vm415, %v4405, 0.0
      %v4419 = vadd.f32 %v4417, %v4418
      %v4420 = vsel %vm415, %v4406, 0.0
      %v4421 = vadd.f32 %v4419, %v4420
      %v4422 = vrot.slane %v4421, 4
      %v4423 = vadd.f32 %v4421, %v4422
      %v4424 = vrot.slane %v4423, 2
      %v4425 = vadd.f32 %v4423, %v4424
      %v4426 = vrot.slane %v4425, 1
      %v4427 = vadd.f32 %v4425, %v4426
      %v4428 = vmul.f32 %v4398, 0.015625
      %v4429 = vmul.f32 %v4427, 0.015625
      %v4430 = vmul.f32 %v4428, %v4428
      %v4431 = vsub.f32 %v4429, %v4430
      %v4432 = vmax.f32 %v4431, 0.0
      %v4433 = vsub.f32 %v4368, %v4428
      %v4434 = vsub.f32 %v4369, %v4428
      %v4435 = vsub.f32 %v4370, %v4428
      %v4436 = vsub.f32 %v4371, %v4428
      %v4437 = vsub.f32 %v4372, %v4428
      %v4438 = vsub.f32 %v4373, %v4428
      %v4439 = vsub.f32 %v4374, %v4428
      %v4440 = vsub.f32 %v4375, %v4428
      %v4441 = vadd.f32 %v4432, 1e-05
      %v4442 = vrsqrt.pop %v4441
      %v4443 = vmul.f32 %v4433, %v4442
      %v4444 = vmul.f32 %v4434, %v4442
      %v4445 = vmul.f32 %v4435, %v4442
      %v4446 = vmul.f32 %v4436, %v4442
      %v4447 = vmul.f32 %v4437, %v4442
      %v4448 = vmul.f32 %v4438, %v4442
      %v4449 = vmul.f32 %v4439, %v4442
      %v4450 = vmul.f32 %v4440, %v4442
      %v4452 = vlaneseq
      %v4453 = vshrl.u32 %v4452, 7
      %v4454 = vsub.s32 0, %v4453
      %v4455 = vrot.slane %v4376, %v4454
      %v4457 = vmul.f32 %v4443, %v4455
      %v4458 = vmul.f32 %v4444, %v4455
      %v4459 = vmul.f32 %v4445, %v4455
      %v4460 = vmul.f32 %v4446, %v4455
      %v4461 = vmul.f32 %v4447, %v4455
      %v4462 = vmul.f32 %v4448, %v4455
      %v4463 = vmul.f32 %v4449, %v4455
      %v4464 = vmul.f32 %v4450, %v4455
      %v4466 = vlaneseq
      %v4467 = vshrl.u32 %v4466, 7
      %v4468 = vsub.s32 0, %v4467
      %v4469 = vrot.slane %v4377, %v4468
      %v4471 = vadd.f32 %v4457, %v4469
      %v4472 = vadd.f32 %v4458, %v4469
      %v4473 = vadd.f32 %v4459, %v4469
      %v4474 = vadd.f32 %v4460, %v4469
      %v4475 = vadd.f32 %v4461, %v4469
      %v4476 = vadd.f32 %v4462, %v4469
      %v4477 = vadd.f32 %v4463, %v4469
      %v4478 = vadd.f32 %v4464, %v4469
      %vm4479 = vcmp.ge.f32.partialorder %v4471, 0.0
      %vm4480 = vcmp.ge.f32.partialorder %v4472, 0.0
      %vm4481 = vcmp.ge.f32.partialorder %v4473, 0.0
      %vm4482 = vcmp.ge.f32.partialorder %v4474, 0.0
      %vm4483 = vcmp.ge.f32.partialorder %v4475, 0.0
      %vm4484 = vcmp.ge.f32.partialorder %v4476, 0.0
      %vm4485 = vcmp.ge.f32.partialorder %v4477, 0.0
      %vm4486 = vcmp.ge.f32.partialorder %v4478, 0.0
      %v4487 = vmul.f32 %v4471, 0.2
      %v4488 = vmul.f32 %v4472, 0.2
      %v4489 = vmul.f32 %v4473, 0.2
      %v4490 = vmul.f32 %v4474, 0.2
      %v4491 = vmul.f32 %v4475, 0.2
      %v4492 = vmul.f32 %v4476, 0.2
      %v4493 = vmul.f32 %v4477, 0.2
      %v4494 = vmul.f32 %v4478, 0.2
      %v4495 = vsel %vm4479, %v4471, %v4487
      %v4496 = vsel %vm4480, %v4472, %v4488
      %v4497 = vsel %vm4481, %v4473, %v4489
      %v4498 = vsel %vm4482, %v4474, %v4490
      %v4499 = vsel %vm4483, %v4475, %v4491
      %v4500 = vsel %vm4484, %v4476, %v4492
      %v4501 = vsel %vm4485, %v4477, %v4493
      %v4502 = vsel %vm4486, %v4478, %v4494
      %v4503 = vpack.c.bf16 %v4496, %v4495
      %v4504 = vpack.c.bf16 %v4498, %v4497
      %v4505 = vpack.c.bf16 %v4500, %v4499
      %v4506 = vpack.c.bf16 %v4502, %v4501
      %4507 = vst.msk [vmem:[#allocation2 + $0x10] sm:$0xff] %vm415, %v4503
      %4508 = vst.msk [vmem:[#allocation2 + $0x18] sm:$0xff] %vm415, %v4504
      %4509 = vst.msk [vmem:[#allocation2 + $0x20] sm:$0xff] %vm415, %v4505
      %4510 = vst.msk [vmem:[#allocation2 + $0x28] sm:$0xff] %vm415, %v4506
      %4511 = vst.msk [vmem:[#allocation2 + $0x30] sm:$0xff] %vm415, 0
      %4512 = vst.msk [vmem:[#allocation2 + $0x38] sm:$0xff] %vm415, 0
      %v4513 = vld [vmem:[%s2] sm:$0xf]
      %v4514 = vld [vmem:[%s2 + $0x4] sm:$0xf]
      %v4515 = vld [vmem:[%s2 + $0x8] sm:$0xf]
      %v4516 = vld [vmem:[%s2 + $0xc] sm:$0xf]
      %v4517 = vld [vmem:[%s2 + $0x10] sm:$0xf]
      %v4518 = vld [vmem:[%s2 + $0x14] sm:$0xf]
      %v4519 = vld [vmem:[%s2 + $0x18] sm:$0xf]
      %v4520 = vld [vmem:[%s2 + $0x1c] sm:$0xf]
      %s4521 = scalar_lea.vmem %s2, 32
      %v4522 = vld [vmem:[%s4521] sm:$0xf]
      %v4523 = vld [vmem:[%s4521 + $0x4] sm:$0xf]
      %v4524 = vld [vmem:[%s4521 + $0x8] sm:$0xf]
      %v4525 = vld [vmem:[%s4521 + $0xc] sm:$0xf]
      %v4526 = vld [vmem:[%s4521 + $0x10] sm:$0xf]
      %v4527 = vld [vmem:[%s4521 + $0x14] sm:$0xf]
      %v4528 = vld [vmem:[%s4521 + $0x18] sm:$0xf]
      %v4529 = vld [vmem:[%s4521 + $0x1c] sm:$0xf]
      %v4530 = vld [vmem:[#allocation2 + $0x8] sm:$0xf8]
      %v4531 = vld [vmem:[#allocation2 + $0x10] sm:$0xff]
      %v4532 = vld [vmem:[#allocation2 + $0x18] sm:$0xff]
      %v4533 = vld [vmem:[#allocation2 + $0x20] sm:$0xff]
      %v4534 = vld [vmem:[#allocation2 + $0x28] sm:$0xf]
      %4536 = vset.pattern.permute.xlu0 0
      %4537 = vperm.xlu0 %4536, %v4513
      %v4538 = vpop.permute.xlu0 %4537
      %v4541 = vunpack.c.l.s4 839922192
      %v4542 = vunpack.c.0.s8 %v4541
      %v4543 = vlaneseq
      %v4544 = vshrl.u32 %v4543, 7
      %v4545 = vsub.s32 %v4542, %v4544
      %v4546 = vrot.slane %v4538, %v4545
      %4548 = vset.pattern.permute.xlu0 0
      %4549 = vperm.xlu0 %4548, %v4514
      %v4550 = vpop.permute.xlu0 %4549
      %v4553 = vunpack.c.l.s4 839922192
      %v4554 = vunpack.c.0.s8 %v4553
      %v4555 = vlaneseq
      %v4556 = vshrl.u32 %v4555, 7
      %v4557 = vsub.s32 %v4554, %v4556
      %v4558 = vrot.slane %v4550, %v4557
      %4560 = vset.pattern.permute.xlu0 0
      %4561 = vperm.xlu0 %4560, %v4515
      %v4562 = vpop.permute.xlu0 %4561
      %v4565 = vunpack.c.l.s4 839922192
      %v4566 = vunpack.c.0.s8 %v4565
      %v4567 = vlaneseq
      %v4568 = vshrl.u32 %v4567, 7
      %v4569 = vsub.s32 %v4566, %v4568
      %v4570 = vrot.slane %v4562, %v4569
      %4572 = vset.pattern.permute.xlu0 0
      %4573 = vperm.xlu0 %4572, %v4516
      %v4574 = vpop.permute.xlu0 %4573
      %v4577 = vunpack.c.l.s4 839922192
      %v4578 = vunpack.c.0.s8 %v4577
      %v4579 = vlaneseq
      %v4580 = vshrl.u32 %v4579, 7
      %v4581 = vsub.s32 %v4578, %v4580
      %v4582 = vrot.slane %v4574, %v4581
      %4584 = vset.pattern.permute.xlu0 0
      %4585 = vperm.xlu0 %4584, %v4517
      %v4586 = vpop.permute.xlu0 %4585
      %v4589 = vunpack.c.l.s4 839922192
      %v4590 = vunpack.c.0.s8 %v4589
      %v4591 = vlaneseq
      %v4592 = vshrl.u32 %v4591, 7
      %v4593 = vsub.s32 %v4590, %v4592
      %v4594 = vrot.slane %v4586, %v4593
      %4596 = vset.pattern.permute.xlu0 0
      %4597 = vperm.xlu0 %4596, %v4518
      %v4598 = vpop.permute.xlu0 %4597
      %v4601 = vunpack.c.l.s4 839922192
      %v4602 = vunpack.c.0.s8 %v4601
      %v4603 = vlaneseq
      %v4604 = vshrl.u32 %v4603, 7
      %v4605 = vsub.s32 %v4602, %v4604
      %v4606 = vrot.slane %v4598, %v4605
      %4608 = vset.pattern.permute.xlu0 0
      %4609 = vperm.xlu0 %4608, %v4519
      %v4610 = vpop.permute.xlu0 %4609
      %v4613 = vunpack.c.l.s4 839922192
      %v4614 = vunpack.c.0.s8 %v4613
      %v4615 = vlaneseq
      %v4616 = vshrl.u32 %v4615, 7
      %v4617 = vsub.s32 %v4614, %v4616
      %v4618 = vrot.slane %v4610, %v4617
      %4620 = vset.pattern.permute.xlu0 0
      %4621 = vperm.xlu0 %4620, %v4520
      %v4622 = vpop.permute.xlu0 %4621
      %v4625 = vunpack.c.l.s4 839922192
      %v4626 = vunpack.c.0.s8 %v4625
      %v4627 = vlaneseq
      %v4628 = vshrl.u32 %v4627, 7
      %v4629 = vsub.s32 %v4626, %v4628
      %v4630 = vrot.slane %v4622, %v4629
      %v4639 = vunpack.c.l.b16 %v4546
      %v4640 = vunpack.c.l.b16 %v4558
      %v4641 = vunpack.c.l.b16 %v4570
      %v4642 = vunpack.c.l.b16 %v4582
      %v4643 = vunpack.c.l.b16 %v4594
      %v4644 = vunpack.c.l.b16 %v4606
      %v4645 = vunpack.c.l.b16 %v4618
      %v4646 = vunpack.c.l.b16 %v4630
      %v4647 = vpack.c.b16 %v4640, %v4639
      %v4648 = vpack.c.b16 %v4642, %v4641
      %v4649 = vpack.c.b16 %v4644, %v4643
      %v4650 = vpack.c.b16 %v4646, %v4645
      %vm4651 = vsmask.f32 3328
      %v4653 = vshrl.u32 %v4647, 16
      %v4655 = vrot.slane %v4653, 4
      %v4656 = vshll.u32 %v4647, 16
      %v4658 = vrot.slane %v4656, 5
      %v4659 = vor.u32 %v4655, %v4658
      %v4661 = vshrl.u32 %v4648, 16
      %v4663 = vrot.slane %v4661, 4
      %v4664 = vshll.u32 %v4648, 16
      %v4666 = vrot.slane %v4664, 5
      %v4667 = vor.u32 %v4663, %v4666
      %v4668 = vsel %vm4651, %v4659, %v4667
      %v4670 = vshrl.u32 %v4649, 16
      %v4672 = vrot.slane %v4670, 4
      %v4673 = vshll.u32 %v4649, 16
      %v4675 = vrot.slane %v4673, 5
      %v4676 = vor.u32 %v4672, %v4675
      %v4677 = vsel %vm4651, %v4667, %v4676
      %v4679 = vshrl.u32 %v4650, 16
      %v4681 = vrot.slane %v4679, 4
      %v4682 = vshll.u32 %v4650, 16
      %v4684 = vrot.slane %v4682, 5
      %v4685 = vor.u32 %v4681, %v4684
      %v4686 = vsel %vm4651, %v4676, %v4685
      %v4692 = vmul.bf16 %v4530, %v4659
      %v4693 = vmul.bf16 %v4531, %v4668
      %v4694 = vmul.bf16 %v4532, %v4677
      %v4695 = vmul.bf16 %v4533, %v4686
      %v4696 = vmul.bf16 %v4534, %v4685
      %vm4697 = vsmask.f32 4352
      %v4699 = vshrl.u32 %v4692, 16
      %v4701 = vrot.slane %v4699, 3
      %v4702 = vshll.u32 %v4692, 16
      %v4704 = vrot.slane %v4702, 4
      %v4705 = vor.u32 %v4701, %v4704
      %v4707 = vshrl.u32 %v4693, 16
      %v4709 = vrot.slane %v4707, 3
      %v4710 = vshll.u32 %v4693, 16
      %v4712 = vrot.slane %v4710, 4
      %v4713 = vor.u32 %v4709, %v4712
      %v4714 = vsel %vm4697, %v4705, %v4713
      %v4716 = vshrl.u32 %v4694, 16
      %v4718 = vrot.slane %v4716, 3
      %v4719 = vshll.u32 %v4694, 16
      %v4721 = vrot.slane %v4719, 4
      %v4722 = vor.u32 %v4718, %v4721
      %v4723 = vsel %vm4697, %v4713, %v4722
      %v4725 = vshrl.u32 %v4695, 16
      %v4727 = vrot.slane %v4725, 3
      %v4728 = vshll.u32 %v4695, 16
      %v4730 = vrot.slane %v4728, 4
      %v4731 = vor.u32 %v4727, %v4730
      %v4732 = vsel %vm4697, %v4722, %v4731
      %v4734 = vshrl.u32 %v4696, 16
      %v4736 = vrot.slane %v4734, 3
      %v4737 = vshll.u32 %v4696, 16
      %v4739 = vrot.slane %v4737, 4
      %v4740 = vor.u32 %v4736, %v4739
      %v4741 = vsel %vm4697, %v4731, %v4740
      %4746 = vst.msk [vmem:[#allocation3] sm:$0xff] %vm415, %v4714
      %4747 = vst.msk [vmem:[#allocation3 + $0x8] sm:$0xff] %vm415, %v4723
      %4748 = vst.msk [vmem:[#allocation3 + $0x10] sm:$0xff] %vm415, %v4732
      %4749 = vst.msk [vmem:[#allocation3 + $0x18] sm:$0xff] %vm415, %v4741
      %v4750 = vld [vmem:[#allocation2 + $0x8] sm:$0xf0]
      %v4751 = vld [vmem:[#allocation2 + $0x10] sm:$0xff]
      %v4752 = vld [vmem:[#allocation2 + $0x18] sm:$0xff]
      %v4753 = vld [vmem:[#allocation2 + $0x20] sm:$0xff]
      %v4754 = vld [vmem:[#allocation2 + $0x28] sm:$0xf]
      %vm4760 = vcmask 1043456
      %v4761 = vrot.slane %v4750, 4
      %v4762 = vrot.slane %v4751, 4
      %v4763 = vsel %vm4760, %v4761, %v4762
      %v4764 = vrot.slane %v4752, 4
      %v4765 = vsel %vm4760, %v4762, %v4764
      %v4766 = vrot.slane %v4753, 4
      %v4767 = vsel %vm4760, %v4764, %v4766
      %v4768 = vrot.slane %v4754, 4
      %v4769 = vsel %vm4760, %v4766, %v4768
      %4770 = vrot.lane.b32.xlu0 %v4763, 4
      %v4771 = vpop.permute.xlu0 %4770
      %4772 = vrot.lane.b32.xlu0 %v4765, 4
      %v4773 = vpop.permute.xlu0 %4772
      %4774 = vrot.lane.b32.xlu0 %v4767, 4
      %v4775 = vpop.permute.xlu0 %4774
      %4776 = vrot.lane.b32.xlu0 %v4769, 4
      %v4777 = vpop.permute.xlu0 %4776
      %4782 = vst.msk [vmem:[#allocation3] sm:$0xff] %vm2017, %v4771
      %4783 = vst.msk [vmem:[#allocation3 + $0x8] sm:$0xff] %vm2017, %v4773
      %4784 = vst.msk [vmem:[#allocation3 + $0x10] sm:$0xff] %vm2017, %v4775
      %4785 = vst.msk [vmem:[#allocation3 + $0x18] sm:$0xff] %vm2017, %v4777
      %v4786 = vld [vmem:[#allocation2 + $0x8] sm:$0xf0]
      %v4787 = vld [vmem:[#allocation2 + $0x10] sm:$0xff]
      %v4788 = vld [vmem:[#allocation2 + $0x18] sm:$0xff]
      %v4789 = vld [vmem:[#allocation2 + $0x20] sm:$0xff]
      %v4790 = vld [vmem:[#allocation2 + $0x28] sm:$0x1f]
      %4792 = vset.pattern.permute.xlu0 0
      %4793 = vperm.xlu0 %4792, %v4522
      %v4794 = vpop.permute.xlu0 %4793
      %v4797 = vunpack.c.l.s4 839922192
      %v4798 = vunpack.c.0.s8 %v4797
      %v4799 = vlaneseq
      %v4800 = vshrl.u32 %v4799, 7
      %v4801 = vsub.s32 %v4798, %v4800
      %v4802 = vrot.slane %v4794, %v4801
      %4804 = vset.pattern.permute.xlu0 0
      %4805 = vperm.xlu0 %4804, %v4523
      %v4806 = vpop.permute.xlu0 %4805
      %v4809 = vunpack.c.l.s4 839922192
      %v4810 = vunpack.c.0.s8 %v4809
      %v4811 = vlaneseq
      %v4812 = vshrl.u32 %v4811, 7
      %v4813 = vsub.s32 %v4810, %v4812
      %v4814 = vrot.slane %v4806, %v4813
      %4816 = vset.pattern.permute.xlu0 0
      %4817 = vperm.xlu0 %4816, %v4524
      %v4818 = vpop.permute.xlu0 %4817
      %v4821 = vunpack.c.l.s4 839922192
      %v4822 = vunpack.c.0.s8 %v4821
      %v4823 = vlaneseq
      %v4824 = vshrl.u32 %v4823, 7
      %v4825 = vsub.s32 %v4822, %v4824
      %v4826 = vrot.slane %v4818, %v4825
      %4828 = vset.pattern.permute.xlu0 0
      %4829 = vperm.xlu0 %4828, %v4525
      %v4830 = vpop.permute.xlu0 %4829
      %v4833 = vunpack.c.l.s4 839922192
      %v4834 = vunpack.c.0.s8 %v4833
      %v4835 = vlaneseq
      %v4836 = vshrl.u32 %v4835, 7
      %v4837 = vsub.s32 %v4834, %v4836
      %v4838 = vrot.slane %v4830, %v4837
      %4840 = vset.pattern.permute.xlu0 0
      %4841 = vperm.xlu0 %4840, %v4526
      %v4842 = vpop.permute.xlu0 %4841
      %v4845 = vunpack.c.l.s4 839922192
      %v4846 = vunpack.c.0.s8 %v4845
      %v4847 = vlaneseq
      %v4848 = vshrl.u32 %v4847, 7
      %v4849 = vsub.s32 %v4846, %v4848
      %v4850 = vrot.slane %v4842, %v4849
      %4852 = vset.pattern.permute.xlu0 0
      %4853 = vperm.xlu0 %4852, %v4527
      %v4854 = vpop.permute.xlu0 %4853
      %v4857 = vunpack.c.l.s4 839922192
      %v4858 = vunpack.c.0.s8 %v4857
      %v4859 = vlaneseq
      %v4860 = vshrl.u32 %v4859, 7
      %v4861 = vsub.s32 %v4858, %v4860
      %v4862 = vrot.slane %v4854, %v4861
      %4864 = vset.pattern.permute.xlu0 0
      %4865 = vperm.xlu0 %4864, %v4528
      %v4866 = vpop.permute.xlu0 %4865
      %v4869 = vunpack.c.l.s4 839922192
      %v4870 = vunpack.c.0.s8 %v4869
      %v4871 = vlaneseq
      %v4872 = vshrl.u32 %v4871, 7
      %v4873 = vsub.s32 %v4870, %v4872
      %v4874 = vrot.slane %v4866, %v4873
      %4876 = vset.pattern.permute.xlu0 0
      %4877 = vperm.xlu0 %4876, %v4529
      %v4878 = vpop.permute.xlu0 %4877
      %v4881 = vunpack.c.l.s4 839922192
      %v4882 = vunpack.c.0.s8 %v4881
      %v4883 = vlaneseq
      %v4884 = vshrl.u32 %v4883, 7
      %v4885 = vsub.s32 %v4882, %v4884
      %v4886 = vrot.slane %v4878, %v4885
      %v4895 = vunpack.c.l.b16 %v4802
      %v4896 = vunpack.c.l.b16 %v4814
      %v4897 = vunpack.c.l.b16 %v4826
      %v4898 = vunpack.c.l.b16 %v4838
      %v4899 = vunpack.c.l.b16 %v4850
      %v4900 = vunpack.c.l.b16 %v4862
      %v4901 = vunpack.c.l.b16 %v4874
      %v4902 = vunpack.c.l.b16 %v4886
      %v4903 = vpack.c.b16 %v4896, %v4895
      %v4904 = vpack.c.b16 %v4898, %v4897
      %v4905 = vpack.c.b16 %v4900, %v4899
      %v4906 = vpack.c.b16 %v4902, %v4901
      %v4908 = vshrl.u32 %v4903, 16
      %v4910 = vrot.slane %v4908, 3
      %v4911 = vshll.u32 %v4903, 16
      %v4913 = vrot.slane %v4911, 4
      %v4914 = vor.u32 %v4910, %v4913
      %v4916 = vshrl.u32 %v4904, 16
      %v4918 = vrot.slane %v4916, 3
      %v4919 = vshll.u32 %v4904, 16
      %v4921 = vrot.slane %v4919, 4
      %v4922 = vor.u32 %v4918, %v4921
      %v4923 = vsel %vm4697, %v4914, %v4922
      %v4925 = vshrl.u32 %v4905, 16
      %v4927 = vrot.slane %v4925, 3
      %v4928 = vshll.u32 %v4905, 16
      %v4930 = vrot.slane %v4928, 4
      %v4931 = vor.u32 %v4927, %v4930
      %v4932 = vsel %vm4697, %v4922, %v4931
      %v4934 = vshrl.u32 %v4906, 16
      %v4936 = vrot.slane %v4934, 3
      %v4937 = vshll.u32 %v4906, 16
      %v4939 = vrot.slane %v4937, 4
      %v4940 = vor.u32 %v4936, %v4939
      %v4941 = vsel %vm4697, %v4931, %v4940
      %v4947 = vmul.bf16 %v4786, %v4914
      %v4948 = vmul.bf16 %v4787, %v4923
      %v4949 = vmul.bf16 %v4788, %v4932
      %v4950 = vmul.bf16 %v4789, %v4941
      %v4951 = vmul.bf16 %v4790, %v4940
      %v4953 = vshrl.u32 %v4947, 16
      %v4955 = vrot.slane %v4953, 4
      %v4956 = vshll.u32 %v4947, 16
      %v4958 = vrot.slane %v4956, 5
      %v4959 = vor.u32 %v4955, %v4958
      %v4961 = vshrl.u32 %v4948, 16
      %v4963 = vrot.slane %v4961, 4
      %v4964 = vshll.u32 %v4948, 16
      %v4966 = vrot.slane %v4964, 5
      %v4967 = vor.u32 %v4963, %v4966
      %v4968 = vsel %vm4651, %v4959, %v4967
      %v4970 = vshrl.u32 %v4949, 16
      %v4972 = vrot.slane %v4970, 4
      %v4973 = vshll.u32 %v4949, 16
      %v4975 = vrot.slane %v4973, 5
      %v4976 = vor.u32 %v4972, %v4975
      %v4977 = vsel %vm4651, %v4967, %v4976
      %v4979 = vshrl.u32 %v4950, 16
      %v4981 = vrot.slane %v4979, 4
      %v4982 = vshll.u32 %v4950, 16
      %v4984 = vrot.slane %v4982, 5
      %v4985 = vor.u32 %v4981, %v4984
      %v4986 = vsel %vm4651, %v4976, %v4985
      %v4988 = vshrl.u32 %v4951, 16
      %v4990 = vrot.slane %v4988, 4
      %v4991 = vshll.u32 %v4951, 16
      %v4993 = vrot.slane %v4991, 5
      %v4994 = vor.u32 %v4990, %v4993
      %v4995 = vsel %vm4651, %v4985, %v4994
      %4996 = vrot.lane.b32.xlu0 %v4968, 8
      %v4997 = vpop.permute.xlu0 %4996
      %4998 = vrot.lane.b32.xlu0 %v4977, 8
      %v4999 = vpop.permute.xlu0 %4998
      %5000 = vrot.lane.b32.xlu0 %v4986, 8
      %v5001 = vpop.permute.xlu0 %5000
      %5002 = vrot.lane.b32.xlu0 %v4995, 8
      %v5003 = vpop.permute.xlu0 %5002
      %5008 = vst.msk [vmem:[#allocation3] sm:$0xff] %vm2856, %v4997
      %5009 = vst.msk [vmem:[#allocation3 + $0x8] sm:$0xff] %vm2856, %v4999
      %5010 = vst.msk [vmem:[#allocation3 + $0x10] sm:$0xff] %vm2856, %v5001
      %5011 = vst.msk [vmem:[#allocation3 + $0x18] sm:$0xff] %vm2856, %v5003
      %v5012 = vld [vmem:[#allocation2 + $0x8] sm:$0x80]
      %v5013 = vld [vmem:[#allocation2 + $0x10] sm:$0xff]
      %v5014 = vld [vmem:[#allocation2 + $0x18] sm:$0xff]
      %v5015 = vld [vmem:[#allocation2 + $0x20] sm:$0xff]
      %v5016 = vld [vmem:[#allocation2 + $0x28] sm:$0xff]
      %v5017 = vrot.slane %v4656, 1
      %v5018 = vor.u32 %v4653, %v5017
      %v5019 = vrot.slane %v4664, 1
      %v5020 = vsel %vm1610, %v5018, %v5019
      %v5021 = vor.u32 %v4661, %v5019
      %v5022 = vrot.slane %v4673, 1
      %v5023 = vsel %vm1610, %v5021, %v5022
      %v5024 = vor.u32 %v4670, %v5022
      %v5025 = vrot.slane %v4682, 1
      %v5026 = vsel %vm1610, %v5024, %v5025
      %v5027 = vor.u32 %v4679, %v5025
      %v5033 = vmul.bf16 %v5012, %v5017
      %v5034 = vmul.bf16 %v5013, %v5020
      %v5035 = vmul.bf16 %v5014, %v5023
      %v5036 = vmul.bf16 %v5015, %v5026
      %v5037 = vmul.bf16 %v5016, %v5027
      %v5039 = vshrl.u32 %v5033, 16
      %v5041 = vrot.slane %v5039, 7
      %v5043 = vshrl.u32 %v5034, 16
      %v5045 = vrot.slane %v5043, 7
      %v5046 = vshll.u32 %v5034, 16
      %v5048 = vor.u32 %v5045, %v5046
      %v5049 = vsel %vm1772, %v5041, %v5048
      %v5051 = vshrl.u32 %v5035, 16
      %v5053 = vrot.slane %v5051, 7
      %v5054 = vshll.u32 %v5035, 16
      %v5056 = vor.u32 %v5053, %v5054
      %v5057 = vsel %vm1772, %v5045, %v5056
      %v5059 = vshrl.u32 %v5036, 16
      %v5061 = vrot.slane %v5059, 7
      %v5062 = vshll.u32 %v5036, 16
      %v5064 = vor.u32 %v5061, %v5062
      %v5065 = vsel %vm1772, %v5053, %v5064
      %v5067 = vshrl.u32 %v5037, 16
      %v5069 = vrot.slane %v5067, 7
      %v5070 = vshll.u32 %v5037, 16
      %v5072 = vor.u32 %v5069, %v5070
      %v5073 = vsel %vm1772, %v5061, %v5072
      %5074 = vrot.lane.b32.xlu0 %v5049, 12
      %v5075 = vpop.permute.xlu0 %5074
      %5076 = vrot.lane.b32.xlu0 %v5057, 12
      %v5077 = vpop.permute.xlu0 %5076
      %5078 = vrot.lane.b32.xlu0 %v5065, 12
      %v5079 = vpop.permute.xlu0 %5078
      %5080 = vrot.lane.b32.xlu0 %v5073, 12
      %v5081 = vpop.permute.xlu0 %5080
      %5086 = vst.msk [vmem:[#allocation3] sm:$0xff] %vm3087, %v5075
      %5087 = vst.msk [vmem:[#allocation3 + $0x8] sm:$0xff] %vm3087, %v5077
      %5088 = vst.msk [vmem:[#allocation3 + $0x10] sm:$0xff] %vm3087, %v5079
      %5089 = vst.msk [vmem:[#allocation3 + $0x18] sm:$0xff] %vm3087, %v5081
      %v5090 = vld [vmem:[#allocation2 + $0x10] sm:$0xff]
      %v5091 = vld [vmem:[#allocation2 + $0x18] sm:$0xff]
      %v5092 = vld [vmem:[#allocation2 + $0x20] sm:$0xff]
      %v5093 = vld [vmem:[#allocation2 + $0x28] sm:$0xff]
      %5098 = vrot.lane.b32.xlu0 %v5090, 16
      %v5099 = vpop.permute.xlu0 %5098
      %5100 = vrot.lane.b32.xlu0 %v5091, 16
      %v5101 = vpop.permute.xlu0 %5100
      %5102 = vrot.lane.b32.xlu0 %v5092, 16
      %v5103 = vpop.permute.xlu0 %5102
      %5104 = vrot.lane.b32.xlu0 %v5093, 16
      %v5105 = vpop.permute.xlu0 %5104
      %5110 = vst.msk [vmem:[#allocation3] sm:$0xff] %vm3184, %v5099
      %5111 = vst.msk [vmem:[#allocation3 + $0x8] sm:$0xff] %vm3184, %v5101
      %5112 = vst.msk [vmem:[#allocation3 + $0x10] sm:$0xff] %vm3184, %v5103
      %5113 = vst.msk [vmem:[#allocation3 + $0x18] sm:$0xff] %vm3184, %v5105
      %v5114 = vld [vmem:[#allocation2 + $0x10] sm:$0xff]
      %v5115 = vld [vmem:[#allocation2 + $0x18] sm:$0xff]
      %v5116 = vld [vmem:[#allocation2 + $0x20] sm:$0xff]
      %v5117 = vld [vmem:[#allocation2 + $0x28] sm:$0xff]
      %v5118 = vld [vmem:[#allocation2 + $0x30] sm:$0x1]
      %v5119 = vrot.slane %v4908, 7
      %v5120 = vor.u32 %v5119, %v4911
      %v5121 = vrot.slane %v4916, 7
      %v5122 = vor.u32 %v5121, %v4919
      %v5123 = vsel %vm1772, %v5119, %v5122
      %v5124 = vrot.slane %v4925, 7
      %v5125 = vor.u32 %v5124, %v4928
      %v5126 = vsel %vm1772, %v5121, %v5125
      %v5127 = vrot.slane %v4934, 7
      %v5128 = vor.u32 %v5127, %v4937
      %v5129 = vsel %vm1772, %v5124, %v5128
      %v5135 = vmul.bf16 %v5114, %v5120
      %v5136 = vmul.bf16 %v5115, %v5123
      %v5137 = vmul.bf16 %v5116, %v5126
      %v5138 = vmul.bf16 %v5117, %v5129
      %v5139 = vmul.bf16 %v5118, %v5127
      %v5141 = vshrl.u32 %v5135, 16
      %v5143 = vshll.u32 %v5135, 16
      %v5145 = vrot.slane %v5143, 1
      %v5146 = vor.u32 %v5141, %v5145
      %v5148 = vshll.u32 %v5136, 16
      %v5150 = vrot.slane %v5148, 1
      %v5151 = vsel %vm1610, %v5146, %v5150
      %v5152 = vshrl.u32 %v5136, 16
      %v5154 = vor.u32 %v5152, %v5150
      %v5156 = vshll.u32 %v5137, 16
      %v5158 = vrot.slane %v5156, 1
      %v5159 = vsel %vm1610, %v5154, %v5158
      %v5160 = vshrl.u32 %v5137, 16
      %v5162 = vor.u32 %v5160, %v5158
      %v5164 = vshll.u32 %v5138, 16
      %v5166 = vrot.slane %v5164, 1
      %v5167 = vsel %vm1610, %v5162, %v5166
      %v5168 = vshrl.u32 %v5138, 16
      %v5170 = vor.u32 %v5168, %v5166
      %v5172 = vshll.u32 %v5139, 16
      %v5174 = vrot.slane %v5172, 1
      %v5175 = vsel %vm1610, %v5170, %v5174
      %5176 = vrot.lane.b32.xlu0 %v5151, 20
      %v5177 = vpop.permute.xlu0 %5176
      %5178 = vrot.lane.b32.xlu0 %v5159, 20
      %v5179 = vpop.permute.xlu0 %5178
      %5180 = vrot.lane.b32.xlu0 %v5167, 20
      %v5181 = vpop.permute.xlu0 %5180
      %5182 = vrot.lane.b32.xlu0 %v5175, 20
      %v5183 = vpop.permute.xlu0 %5182
      %5188 = vst.msk [vmem:[#allocation3] sm:$0xff] %vm3415, %v5177
      %5189 = vst.msk [vmem:[#allocation3 + $0x8] sm:$0xff] %vm3415, %v5179
      %5190 = vst.msk [vmem:[#allocation3 + $0x10] sm:$0xff] %vm3415, %v5181
      %5191 = vst.msk [vmem:[#allocation3 + $0x18] sm:$0xff] %vm3415, %v5183
      %v5192 = vld [vmem:[#allocation2 + $0x10] sm:$0xf8]
      %v5193 = vld [vmem:[#allocation2 + $0x18] sm:$0xff]
      %v5194 = vld [vmem:[#allocation2 + $0x20] sm:$0xff]
      %v5195 = vld [vmem:[#allocation2 + $0x28] sm:$0xff]
      %v5196 = vld [vmem:[#allocation2 + $0x30] sm:$0xf]
      %v5197 = vmul.bf16 %v5192, %v4659
      %v5198 = vmul.bf16 %v5193, %v4668
      %v5199 = vmul.bf16 %v5194, %v4677
      %v5200 = vmul.bf16 %v5195, %v4686
      %v5201 = vmul.bf16 %v5196, %v4685
      %v5203 = vshrl.u32 %v5197, 16
      %v5205 = vrot.slane %v5203, 3
      %v5206 = vshll.u32 %v5197, 16
      %v5208 = vrot.slane %v5206, 4
      %v5209 = vor.u32 %v5205, %v5208
      %v5211 = vshrl.u32 %v5198, 16
      %v5213 = vrot.slane %v5211, 3
      %v5214 = vshll.u32 %v5198, 16
      %v5216 = vrot.slane %v5214, 4
      %v5217 = vor.u32 %v5213, %v5216
      %v5218 = vsel %vm4697, %v5209, %v5217
      %v5220 = vshrl.u32 %v5199, 16
      %v5222 = vrot.slane %v5220, 3
      %v5223 = vshll.u32 %v5199, 16
      %v5225 = vrot.slane %v5223, 4
      %v5226 = vor.u32 %v5222, %v5225
      %v5227 = vsel %vm4697, %v5217, %v5226
      %v5229 = vshrl.u32 %v5200, 16
      %v5231 = vrot.slane %v5229, 3
      %v5232 = vshll.u32 %v5200, 16
      %v5234 = vrot.slane %v5232, 4
      %v5235 = vor.u32 %v5231, %v5234
      %v5236 = vsel %vm4697, %v5226, %v5235
      %v5238 = vshrl.u32 %v5201, 16
      %v5240 = vrot.slane %v5238, 3
      %v5241 = vshll.u32 %v5201, 16
      %v5243 = vrot.slane %v5241, 4
      %v5244 = vor.u32 %v5240, %v5243
      %v5245 = vsel %vm4697, %v5235, %v5244
      %5246 = vrot.lane.b32.xlu0 %v5218, 24
      %v5247 = vpop.permute.xlu0 %5246
      %5248 = vrot.lane.b32.xlu0 %v5227, 24
      %v5249 = vpop.permute.xlu0 %5248
      %5250 = vrot.lane.b32.xlu0 %v5236, 24
      %v5251 = vpop.permute.xlu0 %5250
      %5252 = vrot.lane.b32.xlu0 %v5245, 24
      %v5253 = vpop.permute.xlu0 %5252
      %5258 = vst.msk [vmem:[#allocation3] sm:$0xff] %vm3646, %v5247
      %5259 = vst.msk [vmem:[#allocation3 + $0x8] sm:$0xff] %vm3646, %v5249
      %5260 = vst.msk [vmem:[#allocation3 + $0x10] sm:$0xff] %vm3646, %v5251
      %5261 = vst.msk [vmem:[#allocation3 + $0x18] sm:$0xff] %vm3646, %v5253
      %v5262 = vld [vmem:[#allocation2 + $0x10] sm:$0xf0]
      %v5263 = vld [vmem:[#allocation2 + $0x18] sm:$0xff]
      %v5264 = vld [vmem:[#allocation2 + $0x20] sm:$0xff]
      %v5265 = vld [vmem:[#allocation2 + $0x28] sm:$0xff]
      %v5266 = vld [vmem:[#allocation2 + $0x30] sm:$0xf]
      %v5272 = vrot.slane %v5262, 4
      %v5273 = vrot.slane %v5263, 4
      %v5274 = vsel %vm4760, %v5272, %v5273
      %v5275 = vrot.slane %v5264, 4
      %v5276 = vsel %vm4760, %v5273, %v5275
      %v5277 = vrot.slane %v5265, 4
      %v5278 = vsel %vm4760, %v5275, %v5277
      %v5279 = vrot.slane %v5266, 4
      %v5280 = vsel %vm4760, %v5277, %v5279
      %5281 = vrot.lane.b32.xlu0 %v5274, 28
      %v5282 = vpop.permute.xlu0 %5281
      %5283 = vrot.lane.b32.xlu0 %v5276, 28
      %v5284 = vpop.permute.xlu0 %5283
      %5285 = vrot.lane.b32.xlu0 %v5278, 28
      %v5286 = vpop.permute.xlu0 %5285
      %5287 = vrot.lane.b32.xlu0 %v5280, 28
      %v5288 = vpop.permute.xlu0 %5287
      %5293 = vst.msk [vmem:[#allocation3] sm:$0xff] %vm3743, %v5282
      %5294 = vst.msk [vmem:[#allocation3 + $0x8] sm:$0xff] %vm3743, %v5284
      %5295 = vst.msk [vmem:[#allocation3 + $0x10] sm:$0xff] %vm3743, %v5286
      %5296 = vst.msk [vmem:[#allocation3 + $0x18] sm:$0xff] %vm3743, %v5288
      %v5297 = vld [vmem:[#allocation2 + $0x10] sm:$0xf0]
      %v5298 = vld [vmem:[#allocation2 + $0x18] sm:$0xff]
      %v5299 = vld [vmem:[#allocation2 + $0x20] sm:$0xff]
      %v5300 = vld [vmem:[#allocation2 + $0x28] sm:$0xff]
      %v5301 = vld [vmem:[#allocation2 + $0x30] sm:$0x1f]
      %v5302 = vmul.bf16 %v5297, %v4914
      %v5303 = vmul.bf16 %v5298, %v4923
      %v5304 = vmul.bf16 %v5299, %v4932
      %v5305 = vmul.bf16 %v5300, %v4941
      %v5306 = vmul.bf16 %v5301, %v4940
      %v5308 = vshrl.u32 %v5302, 16
      %v5310 = vrot.slane %v5308, 4
      %v5311 = vshll.u32 %v5302, 16
      %v5313 = vrot.slane %v5311, 5
      %v5314 = vor.u32 %v5310, %v5313
      %v5316 = vshrl.u32 %v5303, 16
      %v5318 = vrot.slane %v5316, 4
      %v5319 = vshll.u32 %v5303, 16
      %v5321 = vrot.slane %v5319, 5
      %v5322 = vor.u32 %v5318, %v5321
      %v5323 = vsel %vm4651, %v5314, %v5322
      %v5325 = vshrl.u32 %v5304, 16
      %v5327 = vrot.slane %v5325, 4
      %v5328 = vshll.u32 %v5304, 16
      %v5330 = vrot.slane %v5328, 5
      %v5331 = vor.u32 %v5327, %v5330
      %v5332 = vsel %vm4651, %v5322, %v5331
      %v5334 = vshrl.u32 %v5305, 16
      %v5336 = vrot.slane %v5334, 4
      %v5337 = vshll.u32 %v5305, 16
      %v5339 = vrot.slane %v5337, 5
      %v5340 = vor.u32 %v5336, %v5339
      %v5341 = vsel %vm4651, %v5331, %v5340
      %v5343 = vshrl.u32 %v5306, 16
      %v5345 = vrot.slane %v5343, 4
      %v5346 = vshll.u32 %v5306, 16
      %v5348 = vrot.slane %v5346, 5
      %v5349 = vor.u32 %v5345, %v5348
      %v5350 = vsel %vm4651, %v5340, %v5349
      %5351 = vrot.lane.b32.xlu0 %v5323, 32
      %v5352 = vpop.permute.xlu0 %5351
      %5353 = vrot.lane.b32.xlu0 %v5332, 32
      %v5354 = vpop.permute.xlu0 %5353
      %5355 = vrot.lane.b32.xlu0 %v5341, 32
      %v5356 = vpop.permute.xlu0 %5355
      %5357 = vrot.lane.b32.xlu0 %v5350, 32
      %v5358 = vpop.permute.xlu0 %5357
      %5363 = vst.msk [vmem:[#allocation3] sm:$0xff] %vm3974, %v5352
      %5364 = vst.msk [vmem:[#allocation3 + $0x8] sm:$0xff] %vm3974, %v5354
      %5365 = vst.msk [vmem:[#allocation3 + $0x10] sm:$0xff] %vm3974, %v5356
      %5366 = vst.msk [vmem:[#allocation3 + $0x18] sm:$0xff] %vm3974, %v5358
      %v5367 = vld [vmem:[#allocation3] sm:$0xff]
      %v5368 = vld [vmem:[#allocation3 + $0x8] sm:$0xff]
      %v5369 = vld [vmem:[#allocation3 + $0x10] sm:$0xff]
      %v5370 = vld [vmem:[#allocation3 + $0x18] sm:$0xff]
      %v5371 = vld [vmem:[%s5] sm:$0xf]
      %v5372 = vld [vmem:[%s5 + $0x4] sm:$0xf]
      %v5373 = vld [vmem:[%s5 + $0x8] sm:$0xf]
      %v5374 = vld [vmem:[%s5 + $0xc] sm:$0xf]
      %v5375 = vld [vmem:[%s5 + $0x10] sm:$0x3]
      %v5376 = vld [vmem:[%s6] sm:$0x1]
      %v5378 = vlaneseq
      %v5379 = vshrl.u32 %v5378, 7
      %v5380 = vsub.s32 0, %v5379
      %v5381 = vrot.slane %v5376, %v5380
      %v5388 = vunpack.c.l.b16 %v5371
      %v5389 = vunpack.c.l.b16 %v5372
      %v5390 = vunpack.c.l.b16 %v5373
      %v5391 = vunpack.c.l.b16 %v5374
      %v5392 = vunpack.c.l.b16 %v5375
      %v5393 = vpack.c.b16 %v5389, %v5388
      %v5394 = vpack.c.b16 %v5391, %v5390
      %v5395 = vpack.c.b16 %v5392, %v5392
      %v5399 = vsel %vm4034, %v5367, 0
      %v5402 = vsel %vm4034, %v5368, 0
      %v5405 = vsel %vm4034, %v5369, 0
      %v5408 = vsel %vm4034, %v5370, 0
      %v5411 = vsel %vm4083, %v5395, 0
      %5413 = vmatprep.subr.bf16.mxu0 0
      %5414 = vmatpush1.bf16.msra.mxu0 %v5393
      %5415 = vmatprep.subr.bf16.mxu0 0
      %5416 = vmatpush1.bf16.msra.mxu0 %v5394
      %5417 = vmatprep.subr.bf16.mxu0 0
      %5418 = vmatpush1.bf16.msra.mxu0 %v5411
      %5419 = vmatprep.subr.bf16.mxu0 0
      %5420 = vmatpush1.bf16.msra.mxu0 0
      %5421 = vmatprep.subr.bf16.mxu0 0
      %5422 = vmatpush1.bf16.msra.mxu0 0
      %5423 = vmatprep.subr.bf16.mxu0 0
      %5424 = vmatpush1.bf16.msra.mxu0 0
      %5425 = vmatprep.subr.bf16.mxu0 0
      %5426 = vmatpush1.bf16.msra.mxu0 0
      %5427 = vmatprep.subr.bf16.mxu0 0
      %5428 = vmatpush1.bf16.msra.mxu0 0
      %5429 = vmatprep.subr.bf16.mxu0 0
      %5430 = vmatpush1.bf16.msra.mxu0 0
      %5431 = vmatprep.subr.bf16.mxu0 0
      %5432 = vmatpush1.bf16.msra.mxu0 0
      %5433 = vmatprep.subr.bf16.mxu0 0
      %5434 = vmatpush1.bf16.msra.mxu0 0
      %5435 = vmatprep.subr.bf16.mxu0 0
      %5436 = vmatpush1.bf16.msra.mxu0 0
      %5437 = vmatprep.subr.bf16.mxu0 0
      %5438 = vmatpush1.bf16.msra.mxu0 0
      %5439 = vmatprep.subr.bf16.mxu0 0
      %5440 = vmatpush1.bf16.msra.mxu0 0
      %5441 = vmatprep.subr.bf16.mxu0 0
      %5442 = vmatpush1.bf16.msra.mxu0 0
      %5443 = vmatprep.subr.bf16.mxu0 0
      %5444 = vmatpush1.bf16.msra.mxu0 0
      %5445 = vmatprep.mubr.bf16.mxu0 0
      %5446 = vmatmul.mubr.bf16.gmra.mrb[0].mxu0 %v5399
      %v5447 = vpop.f32.mrb[0].mxu0
      %v5448 = vadd.f32 %v5381, %v5447
      %v5449 = vpop.f32.mrb[0].mxu0
      %v5450 = vpop.f32.mrb[0].mxu0
      %v5451 = vadd.f32 %v5381, %v5450
      %v5452 = vpop.f32.mrb[0].mxu0
      %5453 = vmatprep.mubr.bf16.mxu0 0
      %5454 = vmatmul.mubr.bf16.gmra.mrb[0].mxu0 %v5402
      %v5455 = vpop.f32.mrb[0].mxu0
      %v5456 = vadd.f32 %v5381, %v5455
      %v5457 = vpop.f32.mrb[0].mxu0
      %v5458 = vpop.f32.mrb[0].mxu0
      %v5459 = vadd.f32 %v5381, %v5458
      %v5460 = vpop.f32.mrb[0].mxu0
      %5461 = vmatprep.mubr.bf16.mxu0 0
      %5462 = vmatmul.mubr.bf16.gmra.mrb[0].mxu0 %v5405
      %v5463 = vpop.f32.mrb[0].mxu0
      %v5464 = vadd.f32 %v5381, %v5463
      %v5465 = vpop.f32.mrb[0].mxu0
      %v5466 = vpop.f32.mrb[0].mxu0
      %v5467 = vadd.f32 %v5381, %v5466
      %v5468 = vpop.f32.mrb[0].mxu0
      %5469 = vmatprep.mubr.bf16.mxu0 0
      %5470 = vmatmul.mubr.bf16.gmra.mrb[0].mxu0 %v5408
      %v5471 = vpop.f32.mrb[0].mxu0
      %v5472 = vadd.f32 %v5381, %v5471
      %v5473 = vpop.f32.mrb[0].mxu0
      %v5474 = vpop.f32.mrb[0].mxu0
      %v5475 = vadd.f32 %v5381, %v5474
      %v5476 = vpop.f32.mrb[0].mxu0
      %5477 = vdwg.mxu0
      %v5479 = vsel %vm415, %v612, 0
      %v5482 = vsel %vm415, %v613, 0
      %v5485 = vsel %vm415, %v614, 0
      %v5488 = vsel %vm415, %v615, 0
      %v5491 = vsel %vm4083, %v616, 0
      %5493 = vmatprep.subr.bf16.mxu0 0
      %5494 = vmatpush1.bf16.msra.mxu0 %v5491
      %5495 = vmatprep.subr.bf16.mxu0 0
      %5496 = vmatpush1.bf16.msra.mxu0 0
      %5497 = vmatprep.subr.bf16.mxu0 0
      %5498 = vmatpush1.bf16.msra.mxu0 0
      %5499 = vmatprep.subr.bf16.mxu0 0
      %5500 = vmatpush1.bf16.msra.mxu0 0
      %5501 = vmatprep.subr.bf16.mxu0 0
      %5502 = vmatpush1.bf16.msra.mxu0 0
      %5503 = vmatprep.subr.bf16.mxu0 0
      %5504 = vmatpush1.bf16.msra.mxu0 0
      %5505 = vmatprep.subr.bf16.mxu0 0
      %5506 = vmatpush1.bf16.msra.mxu0 0
      %5507 = vmatprep.subr.bf16.mxu0 0
      %5508 = vmatpush1.bf16.msra.mxu0 0
      %5509 = vmatprep.subr.bf16.mxu0 0
      %5510 = vmatpush1.bf16.msra.mxu0 0
      %5511 = vmatprep.subr.bf16.mxu0 0
      %5512 = vmatpush1.bf16.msra.mxu0 0
      %5513 = vmatprep.subr.bf16.mxu0 0
      %5514 = vmatpush1.bf16.msra.mxu0 0
      %5515 = vmatprep.subr.bf16.mxu0 0
      %5516 = vmatpush1.bf16.msra.mxu0 0
      %5517 = vmatprep.subr.bf16.mxu0 0
      %5518 = vmatpush1.bf16.msra.mxu0 0
      %5519 = vmatprep.subr.bf16.mxu0 0
      %5520 = vmatpush1.bf16.msra.mxu0 0
      %5521 = vmatprep.subr.bf16.mxu0 0
      %5522 = vmatpush1.bf16.msra.mxu0 0
      %5523 = vmatprep.subr.bf16.mxu0 0
      %5524 = vmatpush1.bf16.msra.mxu0 0
      %5525 = vmatprep.mubr.bf16.mxu0 0
      %5526 = vmatmul.mubr.bf16.gmra.mrb[0].mxu0 %v5479
      %v5527 = vpop.f32.mrb[0].mxu0
      %v5528 = vadd.f32 %v5448, %v5527
      %v5529 = vpop.f32.mrb[0].mxu0
      %v5530 = vpop.f32.mrb[0].mxu0
      %v5531 = vadd.f32 %v5451, %v5530
      %v5532 = vpop.f32.mrb[0].mxu0
      %5533 = vmatprep.mubr.bf16.mxu0 0
      %5534 = vmatmul.mubr.bf16.gmra.mrb[0].mxu0 %v5482
      %v5535 = vpop.f32.mrb[0].mxu0
      %v5536 = vadd.f32 %v5456, %v5535
      %v5537 = vpop.f32.mrb[0].mxu0
      %v5538 = vpop.f32.mrb[0].mxu0
      %v5539 = vadd.f32 %v5459, %v5538
      %v5540 = vpop.f32.mrb[0].mxu0
      %5541 = vmatprep.mubr.bf16.mxu0 0
      %5542 = vmatmul.mubr.bf16.gmra.mrb[0].mxu0 %v5485
      %v5543 = vpop.f32.mrb[0].mxu0
      %v5544 = vadd.f32 %v5464, %v5543
      %v5545 = vpop.f32.mrb[0].mxu0
      %v5546 = vpop.f32.mrb[0].mxu0
      %v5547 = vadd.f32 %v5467, %v5546
      %v5548 = vpop.f32.mrb[0].mxu0
      %5549 = vmatprep.mubr.bf16.mxu0 0
      %5550 = vmatmul.mubr.bf16.gmra.mrb[0].mxu0 %v5488
      %v5551 = vpop.f32.mrb[0].mxu0
      %v5552 = vadd.f32 %v5472, %v5551
      %v5553 = vpop.f32.mrb[0].mxu0
      %v5554 = vpop.f32.mrb[0].mxu0
      %v5555 = vadd.f32 %v5475, %v5554
      %v5556 = vpop.f32.mrb[0].mxu0
      %5557 = vdwg.mxu0
      %v5558 = vmul.f32 %v5528, 0.70710677
      %v5559 = vmul.f32 %v5531, 0.70710677
      %v5560 = vmul.f32 %v5536, 0.70710677
      %v5561 = vmul.f32 %v5539, 0.70710677
      %v5562 = vmul.f32 %v5544, 0.70710677
      %v5563 = vmul.f32 %v5547, 0.70710677
      %v5564 = vmul.f32 %v5552, 0.70710677
      %v5565 = vmul.f32 %v5555, 0.70710677
      %vm5566 = vcmask 64512
      %5567 = vst.msk [vmem:[%s413] sm:$0xff] %vm5566, %v5558
      %5568 = vst.msk [vmem:[%s413 + $0x8] sm:$0xff] %vm5566, %v5559
      %5569 = vst.msk [vmem:[%s413 + $0x10] sm:$0xff] %vm5566, %v5560
      %5570 = vst.msk [vmem:[%s413 + $0x18] sm:$0xff] %vm5566, %v5561
      %5571 = vst.msk [vmem:[%s413 + $0x20] sm:$0xff] %vm5566, %v5562
      %5572 = vst.msk [vmem:[%s413 + $0x28] sm:$0xff] %vm5566, %v5563
      %5573 = vst.msk [vmem:[%s413 + $0x30] sm:$0xff] %vm5566, %v5564
      %5574 = vst.msk [vmem:[%s413 + $0x38] sm:$0xff] %vm5566, %v5565
      %p5575 = scmp.lt.s32.totalorder %s23, 1
      %s5576 = scalar_select %p5575, %s23, 1
      %s5577 = smul.addr %s5576, 8
      %s5578 = smul.addr %s5577, 8
      %s5579 = scalar_lea.vmem %s12, %s5578
      // Predicated region
      $region69: #{tpu_custom_call.1} parent=67 // pred_check
        %p5580 = pneg %p298
      $region70: #{tpu_custom_call.1} parent=67 // pred_check_branch
        %5582 = sbr.rel (%p5580) target = $region72
      $region71: #{tpu_custom_call.1} parent=67 // pred_region
        _
      $region72: #{tpu_custom_call.1} parent=67 // pred_fallthru
        _
    $region68: #{tpu_custom_call.1} parent=5 // pred_fallthru
      _
    %p5583 = scmp.le.s32.totalorder 2, %s18
    // Predicated region
    $region73: #{tpu_custom_call.1} parent=5 // pred_check
      %p5584 = pneg %p5583
    $region74: #{tpu_custom_call.1} parent=5 // pred_check_branch
      %5586 = sbr.rel (%p5584) target = $region76
    $region75: #{tpu_custom_call.1} parent=5 // pred_region
      %s5587 = ssub.s32 %s18, 2
      // Predicated region
      $region77: #{tpu_custom_call.1} parent=75 // pred_check
        %p5588 = pneg %p304
      $region78: #{tpu_custom_call.1} parent=75 // pred_check_branch
        %5590 = sbr.rel (%p5588) target = $region80
      $region79: #{tpu_custom_call.1} parent=75 // pred_region
        %p5591 = scmp.lt.s32.totalorder %s24, 1
        %s5592 = scalar_select %p5591, %s24, 1
        %s5593 = smul.addr %s5592, 8
        %s5594 = smul.addr %s5593, 8
        %s5595 = scalar_lea.vmem %s12, %s5594
      $region80: #{tpu_custom_call.1} parent=75 // pred_fallthru
        _
    $region76: #{tpu_custom_call.1} parent=5 // pred_fallthru
      _
  $region6: #{tpu_custom_call.1} parent=0 // loop_footer
    %s22 = sadd.s32 1, %s18
  $region7: #{tpu_custom_call.1} parent=0 // loop_footer_branch
    %17 = sbr.rel target = $region3
  $region8: #{tpu_custom_call.1} parent=0 // loop_exit
    _

</llo_original>
